<compile_context>
chip_gen: v7x
topology: tpu7x:2x2x1
jax: 0.10.0
libtpu: 0.0.40
codegen_flags: <defaults>
</compile_context>

<pallas_src>
import functools

import jax
import jax.numpy as jnp
import numpy as np
from jax import lax
from jax.experimental import pallas as pl
from jax.experimental.pallas import tpu as pltpu


def _round_up(x, m):
    return (x + m - 1) // m * m


def _lstm_block_kernel(blkmax_ref, x_ref, wih_ref, whh_ref, b_ref, len_ref,
                       out_ref, h_sc, c_sc, *, tb, hp):
    """One grid step == tb timesteps of the LSTM recurrence for one batch block.

    blkmax_ref: (nb,)          i32  SMEM (scalar prefetch) max length per batch block
    x_ref:      (tb, bb, I)    f32  time-major input block
    wih_ref:    (I, 4*Hp)      bf16 input->gates weights (resident)
    whh_ref:    (Hp, 4*Hp)     bf16 hidden->gates weights (resident)
    b_ref:      (1, 4*Hp)      f32  gate bias (resident)
    len_ref:    (bb, 1)        i32  valid lengths for this batch block (resident)
    out_ref:    (tb, bb, Hp)   f32  time-major output block
    h_sc/c_sc:  (bb, Hp)       f32  recurrent state, persists across time blocks
    """
    b_blk = pl.program_id(0)
    t_blk = pl.program_id(1)
    t0 = t_blk * tb
    blk_max = blkmax_ref[b_blk]

    @pl.when(t0 < blk_max)
    def _compute():
        @pl.when(t_blk == 0)
        def _():
            h_sc[...] = jnp.zeros_like(h_sc)
            c_sc[...] = jnp.zeros_like(c_sc)

        bb = h_sc.shape[0]
        lens = len_ref[...]                                   # (bb, 1) i32
        bias = b_ref[...]                                     # (1, 4*Hp)
        # Hoisted validity mask for every step of this time block.
        valid_all = (t0 + lax.broadcasted_iota(jnp.int32, (bb, tb), 1)) < lens

        # Fully-unrolled recurrence (static indices -> simple static slices).
        # TODO(synk): for bb > 64, split the gate elementwise into two row
        #             halves to bound vreg pressure.
        for s in range(tb):
            x_bf = x_ref[s].astype(jnp.bfloat16)              # (bb, I)
            gx = jnp.dot(x_bf, wih_ref[...],
                         preferred_element_type=jnp.float32)  # (bb, 4*Hp)
            gh = jnp.dot(h_sc[...].astype(jnp.bfloat16), whh_ref[...],
                         preferred_element_type=jnp.float32)  # (bb, 4*Hp)
            gates = gx + gh + bias

            i_g = jax.nn.sigmoid(gates[:, 0 * hp:1 * hp])
            f_g = jax.nn.sigmoid(gates[:, 1 * hp:2 * hp])
            g_g = jnp.tanh(gates[:, 2 * hp:3 * hp])
            o_g = jax.nn.sigmoid(gates[:, 3 * hp:4 * hp])

            c_new = f_g * c_sc[...] + i_g * g_g
            h_new = o_g * jnp.tanh(c_new)
            c_sc[...] = c_new
            h_sc[...] = h_new

            # pad_packed_sequence semantics: exact zeros past each sequence end.
            out_ref[s] = jnp.where(valid_all[:, s:s + 1], h_new,
                                   0.0).astype(out_ref.dtype)

    @pl.when(t0 >= blk_max)
    def _skip():
        # Whole time block is past every sequence in this batch block.
        out_ref[...] = jnp.zeros_like(out_ref)


@functools.partial(jax.jit, static_argnames=("max_length", "tb", "bb"))
def packed_lstm_forward(inputs, lengths, w_ih, w_hh, bias,
                        max_length=None, tb=None, bb=None):
    """Equivalent of Packed(nn.LSTM(I, H, batch_first=True)).forward(inputs, lengths).

    inputs:  (B, T, I) float32, batch_first
    lengths: (B,) int   valid lengths
    w_ih:    (I, 4H)    pre-transposed, gate order (i, f, g, o)
    w_hh:    (H, 4H)    pre-transposed
    bias:    (4H,)      b_ih + b_hh
    returns: (B, L, H) float32 — positions t >= lengths[b] are exactly zero.
             L = T unless max_length is given.
    """
    B, T, I = inputs.shape
    H = w_hh.shape[0]

    # ---- padded/aligned problem sizes -------------------------------------
    Hp = _round_up(H, 128)                     # lane-dense gates & output stores
    if bb is None:
        if B <= 8:
            bb = 8
        else:
            # >=2 batch blocks (v7x megacore) and <=64 rows/block (vreg pressure).
            bb = min(64, _round_up((B + 1) // 2, 8))
    if tb is None:
        tb = min(16, _round_up(max(T, 1), 8))
    Bp = _round_up(B, bb)
    Tp = _round_up(T, tb)
    nb, nt = Bp // bb, Tp // tb

    # ---- pad parameters per-gate so each gate occupies an Hp-wide slot ------
    w_ih_p = (jnp.zeros((I, 4, Hp), jnp.float32)
              .at[:, :, :H].set(w_ih.reshape(I, 4, H))).reshape(I, 4 * Hp)
    w_hh_p = (jnp.zeros((Hp, 4, Hp), jnp.float32)
              .at[:H, :, :H].set(w_hh.reshape(H, 4, H))).reshape(Hp, 4 * Hp)
    bias_p = (jnp.zeros((1, 4, Hp), jnp.float32)
              .at[:, :, :H].set(bias.reshape(1, 4, H))).reshape(1, 4 * Hp)
    # Padded gate columns are all-zero => sigmoid(0)=0.5, tanh(0)=0, so the
    # padded hidden units stay exactly 0 and never contaminate real ones.
    w_ih_bf = w_ih_p.astype(jnp.bfloat16)
    w_hh_bf = w_hh_p.astype(jnp.bfloat16)

    # ---- sort rows by length (descending), like Packed, for block skipping --
    lengths_i = lengths.astype(jnp.int32)
    order = jnp.argsort(-lengths_i)
    inv_order = jnp.argsort(order)
    x_sorted = inputs[order]
    len_sorted = lengths_i[order]

    # ---- time-major, padded inputs ------------------------------------------
    x_tm = (jnp.zeros((Tp, Bp, I), inputs.dtype)
            .at[:T, :B, :].set(jnp.transpose(x_sorted, (1, 0, 2))))
    len_p = jnp.zeros((Bp, 1), jnp.int32).at[:B, 0].set(len_sorted)
    blk_max = jnp.max(len_p.reshape(nb, bb), axis=1).astype(jnp.int32)  # (nb,)

    # ---- VMEM budget (double-buffered streams + resident weights + scratch) -
    blk_x = tb * bb * I * 4
    blk_out = tb * bb * Hp * 4
    resident = I * 4 * Hp * 2 + Hp * 4 * Hp * 2 + 4 * Hp * 4 + bb * 4
    scratch = 2 * bb * Hp * 4
    est = 2 * (blk_x + blk_out) + 2 * resident + scratch
    # Cap below v7x's 64 MiB to leave Mosaic internal-scratch headroom.
    # TODO(synk): for very large H, tile the 4H dimension of W_hh as well.
    vmem_limit = int(min(max(2 * est, 32 * 1024 * 1024), 48 * 1024 * 1024))

    out_tm = pl.pallas_call(
        functools.partial(_lstm_block_kernel, tb=tb, hp=Hp),
        out_shape=jax.ShapeDtypeStruct((Tp, Bp, Hp), jnp.float32),
        grid_spec=pltpu.PrefetchScalarGridSpec(
            num_scalar_prefetch=1,
            grid=(nb, nt),
            in_specs=[
                pl.BlockSpec((tb, bb, I), lambda b, t, mx: (t, b, 0)),     # x
                pl.BlockSpec((I, 4 * Hp), lambda b, t, mx: (0, 0)),        # W_ih
                pl.BlockSpec((Hp, 4 * Hp), lambda b, t, mx: (0, 0)),       # W_hh
                pl.BlockSpec((1, 4 * Hp), lambda b, t, mx: (0, 0)),        # bias
                pl.BlockSpec((bb, 1), lambda b, t, mx: (b, 0)),            # lengths
            ],
            out_specs=pl.BlockSpec((tb, bb, Hp), lambda b, t, mx: (t, b, 0)),
            scratch_shapes=[
                pltpu.VMEM((bb, Hp), jnp.float32),   # h state
                pltpu.VMEM((bb, Hp), jnp.float32),   # c state
            ],
        ),
        compiler_params=pltpu.CompilerParams(
            # batch blocks are independent (v7x megacore splits them);
            # the time axis carries the recurrence.
            dimension_semantics=("parallel", "arbitrary"),
            vmem_limit_bytes=vmem_limit,
        ),
    )(blk_max, x_tm, w_ih_bf, w_hh_bf, bias_p, len_p)

    # drop time/batch/hidden padding, back to batch-major, and unsort rows
    out = jnp.transpose(out_tm[:T, :B, :H], (1, 0, 2))[inv_order]

    if max_length is not None:
        if max_length <= T:
            out = out[:, :max_length]
        else:
            out = jnp.pad(out, ((0, 0), (0, max_length - T), (0, 0)))
    # TODO(synk): max_length=None in PyTorch pads to max(lengths) (dynamic
    # shape); we return the full T instead (identical when max(lengths) == T).
    return out


def _reference_lstm(inputs, lengths, w_ih, w_hh, bias):
    """Pure-JAX reference (lax.scan) of the same masked-output LSTM."""
    B, T, I = inputs.shape
    H = w_hh.shape[0]
    x_tm = jnp.transpose(inputs, (1, 0, 2))

    def step(carry, x_t):
        h, c = carry
        gates = x_t @ w_ih + h @ w_hh + bias
        i_g = jax.nn.sigmoid(gates[:, 0 * H:1 * H])
        f_g = jax.nn.sigmoid(gates[:, 1 * H:2 * H])
        g_g = jnp.tanh(gates[:, 2 * H:3 * H])
        o_g = jax.nn.sigmoid(gates[:, 3 * H:4 * H])
        c = f_g * c + i_g * g_g
        h = o_g * jnp.tanh(c)
        return (h, c), h

    h0 = jnp.zeros((B, H), jnp.float32)
    c0 = jnp.zeros((B, H), jnp.float32)
    _, hs = lax.scan(step, (h0, c0), x_tm)                         # (T, B, H)
    out = jnp.transpose(hs, (1, 0, 2))                             # (B, T, H)
    t_ids = jnp.arange(T)[None, :, None]
    return jnp.where(t_ids < lengths[:, None, None], out, 0.0)


if __name__ == "__main__":
    B, T, I, H = 2, 8, 16, 32

    key = jax.random.PRNGKey(0)
    k_x, k_wih, k_whh, k_bih, k_bhh = jax.random.split(key, 5)

    # Deterministic "module" parameters: nn.LSTM(I, H) shapes, pre-transposed.
    scale = 1.0 / np.sqrt(H)
    w_ih = jax.random.uniform(k_wih, (I, 4 * H), jnp.float32, -scale, scale)
    w_hh = jax.random.uniform(k_whh, (H, 4 * H), jnp.float32, -scale, scale)
    b_ih = jax.random.uniform(k_bih, (4 * H,), jnp.float32, -scale, scale)
    b_hh = jax.random.uniform(k_bhh, (4 * H,), jnp.float32, -scale, scale)
    bias = b_ih + b_hh

    inputs = jax.random.normal(k_x, (B, T, I), jnp.float32)
    lengths = jnp.array([5, 8], dtype=jnp.int32)   # unsorted on purpose

    out = packed_lstm_forward(inputs, lengths, w_ih, w_hh, bias)
    out = jax.block_until_ready(out)

    # Reference uses the same bf16-rounded weights the kernel feeds the MXU,
    # so the check isolates kernel correctness from the intentional cast.
    w_ih_q = w_ih.astype(jnp.bfloat16).astype(jnp.float32)
    w_hh_q = w_hh.astype(jnp.bfloat16).astype(jnp.float32)
    ref = _reference_lstm(inputs, lengths, w_ih_q, w_hh_q, bias)
    np.testing.assert_allclose(np.asarray(out), np.asarray(ref),
                               atol=2e-2, rtol=2e-2)
    assert out.shape == (B, T, H)
    # Padded positions must be exactly zero (pad_packed_sequence semantics).
    assert float(jnp.abs(out[0, 5:]).max()) == 0.0

    print("KERNEL_OK")
</pallas_src>

<mosaic_0001>
module attributes {stable_mosaic.version = 11 : i64} {
  func.func @_lstm_block_kernel(%arg0: i32, %arg1: i32, %arg2: memref<1xi32, #tpu.memory_space<smem>>, %arg3: memref<8x8x16xf32, #tpu.memory_space<vmem>>, %arg4: memref<16x512xbf16, #tpu.memory_space<vmem>>, %arg5: memref<128x512xbf16, #tpu.memory_space<vmem>>, %arg6: memref<1x512xf32, #tpu.memory_space<vmem>>, %arg7: memref<8x1xi32, #tpu.memory_space<vmem>>, %arg8: memref<8x8x128xf32, #tpu.memory_space<vmem>>, %arg9: memref<8x128xf32, #tpu.memory_space<vmem>>, %arg10: memref<8x128xf32, #tpu.memory_space<vmem>>) attributes {dimension_semantics = [#tpu.dimension_semantics<parallel>, #tpu.dimension_semantics<arbitrary>], iteration_bounds = array<i64: 1, 1>, scalar_prefetch = 1 : i64, scratch_operands = 2 : i64, tpu.core_type = #tpu.core_type<tc>, window_params = [{transform_indices = @transform_0, window_bounds = array<i64: 8, 8, 16>}, {pipeline_mode = #tpu.pipeline_mode<synchronous>, transform_indices = @transform_1, window_bounds = array<i64: 16, 512>}, {pipeline_mode = #tpu.pipeline_mode<synchronous>, transform_indices = @transform_2, window_bounds = array<i64: 128, 512>}, {pipeline_mode = #tpu.pipeline_mode<synchronous>, transform_indices = @transform_3, window_bounds = array<i64: 1, 512>}, {transform_indices = @transform_4, window_bounds = array<i64: 8, 1>}, {transform_indices = @transform_5, window_bounds = array<i64: 8, 8, 128>}]} {
    %c8_i32 = arith.constant 8 : i32
    %0 = arith.muli %arg1, %c8_i32 : i32
    %1 = arith.index_cast %arg0 : i32 to index
    %2 = memref.load %arg2[%1] : memref<1xi32, #tpu.memory_space<smem>>
    %3 = arith.cmpi slt, %0, %2 : i32
    %4 = arith.extui %3 : i1 to i32
    %c0_i32 = arith.constant 0 : i32
    %5 = arith.cmpi ne, %4, %c0_i32 : i32
    scf.if %5 {
      %c0_i32_1 = arith.constant 0 : i32
      %9 = arith.cmpi eq, %arg1, %c0_i32_1 : i32
      %10 = arith.extui %9 : i1 to i32
      %c0_i32_2 = arith.constant 0 : i32
      %11 = arith.cmpi ne, %10, %c0_i32_2 : i32
      scf.if %11 {
        %cst_190 = arith.constant 0.000000e+00 : f32
        %403 = vector.broadcast %cst_190 : f32 to vector<8x128xf32>
        %c0_191 = arith.constant 0 : index
        %c0_192 = arith.constant 0 : index
        %404 = vector.load %arg9[%c0_191, %c0_192] : memref<8x128xf32, #tpu.memory_space<vmem>>, vector<8x128xf32>
        tpu.vector_store %arg9[%c0_191, %c0_192], %403 {strides = array<i32>} : memref<8x128xf32, #tpu.memory_space<vmem>>, vector<8x128xf32>,
        %cst_193 = arith.constant 0.000000e+00 : f32
        %405 = vector.broadcast %cst_193 : f32 to vector<8x128xf32>
        %c0_194 = arith.constant 0 : index
        %c0_195 = arith.constant 0 : index
        %406 = vector.load %arg10[%c0_194, %c0_195] : memref<8x128xf32, #tpu.memory_space<vmem>>, vector<8x128xf32>
        tpu.vector_store %arg10[%c0_194, %c0_195], %405 {strides = array<i32>} : memref<8x128xf32, #tpu.memory_space<vmem>>, vector<8x128xf32>,
      } else {
      }
      %c0 = arith.constant 0 : index
      %c0_3 = arith.constant 0 : index
      %12 = vector.load %arg7[%c0, %c0_3] : memref<8x1xi32, #tpu.memory_space<vmem>>, vector<8x1xi32>
      %c0_4 = arith.constant 0 : index
      %c0_5 = arith.constant 0 : index
      %13 = vector.load %arg6[%c0_4, %c0_5] : memref<1x512xf32, #tpu.memory_space<vmem>>, vector<1x512xf32>
      %14 = tpu.iota {dimensions = array<i32: 1>} : vector<8x8xi32>
      %15 = vector.broadcast %0 : i32 to vector<8x8xi32>
      %16 = arith.addi %15, %14 : vector<8x8xi32>
      %17 = vector.broadcast %12 : vector<8x1xi32> to vector<8x8xi32>
      %18 = arith.cmpi slt, %16, %17 : vector<8x8xi32>
      %c0_6 = arith.constant 0 : index
      %c0_7 = arith.constant 0 : index
      %c0_8 = arith.constant 0 : index
      %19 = vector.load %arg3[%c0_6, %c0_7, %c0_8] : memref<8x8x16xf32, #tpu.memory_space<vmem>>, vector<1x8x16xf32>
      %20 = vector.shape_cast %19 : vector<1x8x16xf32> to vector<8x16xf32>
      %21 = arith.truncf %20 : vector<8x16xf32> to vector<8x16xbf16>
      %c0_9 = arith.constant 0 : index
      %c0_10 = arith.constant 0 : index
      %22 = vector.load %arg4[%c0_9, %c0_10] : memref<16x512xbf16, #tpu.memory_space<vmem>>, vector<16x512xbf16>
      %cst = arith.constant dense<0.000000e+00> : vector<8x512xf32>
      %23 = tpu.matmul %21, %22, %cst {dimension_numbers = #tpu.dot_dimension_numbers<[1], [0], [0], [1], [0, 0, 1, 1], [], []>} : vector<8x16xbf16>, vector<16x512xbf16>, vector<8x512xf32> -> vector<8x512xf32>
      %c0_11 = arith.constant 0 : index
      %c0_12 = arith.constant 0 : index
      %24 = vector.load %arg9[%c0_11, %c0_12] : memref<8x128xf32, #tpu.memory_space<vmem>>, vector<8x128xf32>
      %25 = arith.truncf %24 : vector<8x128xf32> to vector<8x128xbf16>
      %c0_13 = arith.constant 0 : index
      %c0_14 = arith.constant 0 : index
      %26 = vector.load %arg5[%c0_13, %c0_14] : memref<128x512xbf16, #tpu.memory_space<vmem>>, vector<128x512xbf16>
      %cst_15 = arith.constant dense<0.000000e+00> : vector<8x512xf32>
      %27 = tpu.matmul %25, %26, %cst_15 {dimension_numbers = #tpu.dot_dimension_numbers<[1], [0], [0], [1], [0, 0, 1, 1], [], []>} : vector<8x128xbf16>, vector<128x512xbf16>, vector<8x512xf32> -> vector<8x512xf32>
      %28 = arith.addf %23, %27 : vector<8x512xf32>
      %29 = vector.broadcast %13 : vector<1x512xf32> to vector<8x512xf32>
      %30 = arith.addf %28, %29 : vector<8x512xf32>
      %31 = vector.extract_strided_slice %30 {offsets = [0, 0], sizes = [8, 128], strides = [1, 1]} : vector<8x512xf32> to vector<8x128xf32>
      %32 = arith.negf %31 : vector<8x128xf32>
      %33 = math.exp %32 : vector<8x128xf32>
      %cst_16 = arith.constant 1.000000e+00 : f32
      %34 = vector.broadcast %cst_16 : f32 to vector<8x128xf32>
      %35 = arith.addf %34, %33 : vector<8x128xf32>
      %36 = arith.divf %34, %35 : vector<8x128xf32>
      %37 = vector.extract_strided_slice %30 {offsets = [0, 128], sizes = [8, 128], strides = [1, 1]} : vector<8x512xf32> to vector<8x128xf32>
      %38 = arith.negf %37 : vector<8x128xf32>
      %39 = math.exp %38 : vector<8x128xf32>
      %cst_17 = arith.constant 1.000000e+00 : f32
      %40 = vector.broadcast %cst_17 : f32 to vector<8x128xf32>
      %41 = arith.addf %40, %39 : vector<8x128xf32>
      %42 = arith.divf %40, %41 : vector<8x128xf32>
      %43 = vector.extract_strided_slice %30 {offsets = [0, 256], sizes = [8, 128], strides = [1, 1]} : vector<8x512xf32> to vector<8x128xf32>
      %44 = math.tanh %43 : vector<8x128xf32>
      %45 = vector.extract_strided_slice %30 {offsets = [0, 384], sizes = [8, 128], strides = [1, 1]} : vector<8x512xf32> to vector<8x128xf32>
      %46 = arith.negf %45 : vector<8x128xf32>
      %47 = math.exp %46 : vector<8x128xf32>
      %cst_18 = arith.constant 1.000000e+00 : f32
      %48 = vector.broadcast %cst_18 : f32 to vector<8x128xf32>
      %49 = arith.addf %48, %47 : vector<8x128xf32>
      %50 = arith.divf %48, %49 : vector<8x128xf32>
      %c0_19 = arith.constant 0 : index
      %c0_20 = arith.constant 0 : index
      %51 = vector.load %arg10[%c0_19, %c0_20] : memref<8x128xf32, #tpu.memory_space<vmem>>, vector<8x128xf32>
      %52 = arith.mulf %42, %51 : vector<8x128xf32>
      %53 = arith.mulf %36, %44 : vector<8x128xf32>
      %54 = arith.addf %52, %53 : vector<8x128xf32>
      %55 = math.tanh %54 : vector<8x128xf32>
      %56 = arith.mulf %50, %55 : vector<8x128xf32>
      %c0_21 = arith.constant 0 : index
      %c0_22 = arith.constant 0 : index
      %57 = vector.load %arg10[%c0_21, %c0_22] : memref<8x128xf32, #tpu.memory_space<vmem>>, vector<8x128xf32>
      tpu.vector_store %arg10[%c0_21, %c0_22], %54 {strides = array<i32>} : memref<8x128xf32, #tpu.memory_space<vmem>>, vector<8x128xf32>,
      %c0_23 = arith.constant 0 : index
      %c0_24 = arith.constant 0 : index
      %58 = vector.load %arg9[%c0_23, %c0_24] : memref<8x128xf32, #tpu.memory_space<vmem>>, vector<8x128xf32>
      tpu.vector_store %arg9[%c0_23, %c0_24], %56 {strides = array<i32>} : memref<8x128xf32, #tpu.memory_space<vmem>>, vector<8x128xf32>,
      %59 = vector.extract_strided_slice %18 {offsets = [0, 0], sizes = [8, 1], strides = [1, 1]} : vector<8x8xi1> to vector<8x1xi1>
      %cst_25 = arith.constant 0.000000e+00 : f32
      %60 = vector.shape_cast %59 : vector<8x1xi1> to vector<8x1xi1>
      %61 = vector.broadcast %60 : vector<8x1xi1> to vector<8x128xi1>
      %62 = vector.broadcast %cst_25 : f32 to vector<8x128xf32>
      %63 = arith.select %61, %56, %62 : vector<8x128xi1>, vector<8x128xf32>
      %c0_26 = arith.constant 0 : index
      %c0_27 = arith.constant 0 : index
      %c0_28 = arith.constant 0 : index
      %64 = vector.load %arg8[%c0_26, %c0_27, %c0_28] : memref<8x8x128xf32, #tpu.memory_space<vmem>>, vector<1x8x128xf32>
      %65 = vector.shape_cast %64 : vector<1x8x128xf32> to vector<8x128xf32>
      %66 = vector.shape_cast %63 : vector<8x128xf32> to vector<1x8x128xf32>
      tpu.vector_store %arg8[%c0_26, %c0_27, %c0_28], %66 {strides = array<i32>} : memref<8x8x128xf32, #tpu.memory_space<vmem>>, vector<1x8x128xf32>,
      %c1 = arith.constant 1 : index
      %c0_29 = arith.constant 0 : index
      %c0_30 = arith.constant 0 : index
      %67 = vector.load %arg3[%c1, %c0_29, %c0_30] : memref<8x8x16xf32, #tpu.memory_space<vmem>>, vector<1x8x16xf32>
      %68 = vector.shape_cast %67 : vector<1x8x16xf32> to vector<8x16xf32>
      %69 = arith.truncf %68 : vector<8x16xf32> to vector<8x16xbf16>
      %c0_31 = arith.constant 0 : index
      %c0_32 = arith.constant 0 : index
      %70 = vector.load %arg4[%c0_31, %c0_32] : memref<16x512xbf16, #tpu.memory_space<vmem>>, vector<16x512xbf16>
      %cst_33 = arith.constant dense<0.000000e+00> : vector<8x512xf32>
      %71 = tpu.matmul %69, %70, %cst_33 {dimension_numbers = #tpu.dot_dimension_numbers<[1], [0], [0], [1], [0, 0, 1, 1], [], []>} : vector<8x16xbf16>, vector<16x512xbf16>, vector<8x512xf32> -> vector<8x512xf32>
      %c0_34 = arith.constant 0 : index
      %c0_35 = arith.constant 0 : index
      %72 = vector.load %arg9[%c0_34, %c0_35] : memref<8x128xf32, #tpu.memory_space<vmem>>, vector<8x128xf32>
      %73 = arith.truncf %72 : vector<8x128xf32> to vector<8x128xbf16>
      %c0_36 = arith.constant 0 : index
      %c0_37 = arith.constant 0 : index
      %74 = vector.load %arg5[%c0_36, %c0_37] : memref<128x512xbf16, #tpu.memory_space<vmem>>, vector<128x512xbf16>
      %cst_38 = arith.constant dense<0.000000e+00> : vector<8x512xf32>
      %75 = tpu.matmul %73, %74, %cst_38 {dimension_numbers = #tpu.dot_dimension_numbers<[1], [0], [0], [1], [0, 0, 1, 1], [], []>} : vector<8x128xbf16>, vector<128x512xbf16>, vector<8x512xf32> -> vector<8x512xf32>
      %76 = arith.addf %71, %75 : vector<8x512xf32>
      %77 = vector.broadcast %13 : vector<1x512xf32> to vector<8x512xf32>
      %78 = arith.addf %76, %77 : vector<8x512xf32>
      %79 = vector.extract_strided_slice %78 {offsets = [0, 0], sizes = [8, 128], strides = [1, 1]} : vector<8x512xf32> to vector<8x128xf32>
      %80 = arith.negf %79 : vector<8x128xf32>
      %81 = math.exp %80 : vector<8x128xf32>
      %cst_39 = arith.constant 1.000000e+00 : f32
      %82 = vector.broadcast %cst_39 : f32 to vector<8x128xf32>
      %83 = arith.addf %82, %81 : vector<8x128xf32>
      %84 = arith.divf %82, %83 : vector<8x128xf32>
      %85 = vector.extract_strided_slice %78 {offsets = [0, 128], sizes = [8, 128], strides = [1, 1]} : vector<8x512xf32> to vector<8x128xf32>
      %86 = arith.negf %85 : vector<8x128xf32>
      %87 = math.exp %86 : vector<8x128xf32>
      %cst_40 = arith.constant 1.000000e+00 : f32
      %88 = vector.broadcast %cst_40 : f32 to vector<8x128xf32>
      %89 = arith.addf %88, %87 : vector<8x128xf32>
      %90 = arith.divf %88, %89 : vector<8x128xf32>
      %91 = vector.extract_strided_slice %78 {offsets = [0, 256], sizes = [8, 128], strides = [1, 1]} : vector<8x512xf32> to vector<8x128xf32>
      %92 = math.tanh %91 : vector<8x128xf32>
      %93 = vector.extract_strided_slice %78 {offsets = [0, 384], sizes = [8, 128], strides = [1, 1]} : vector<8x512xf32> to vector<8x128xf32>
      %94 = arith.negf %93 : vector<8x128xf32>
      %95 = math.exp %94 : vector<8x128xf32>
      %cst_41 = arith.constant 1.000000e+00 : f32
      %96 = vector.broadcast %cst_41 : f32 to vector<8x128xf32>
      %97 = arith.addf %96, %95 : vector<8x128xf32>
      %98 = arith.divf %96, %97 : vector<8x128xf32>
      %c0_42 = arith.constant 0 : index
      %c0_43 = arith.constant 0 : index
      %99 = vector.load %arg10[%c0_42, %c0_43] : memref<8x128xf32, #tpu.memory_space<vmem>>, vector<8x128xf32>
      %100 = arith.mulf %90, %99 : vector<8x128xf32>
      %101 = arith.mulf %84, %92 : vector<8x128xf32>
      %102 = arith.addf %100, %101 : vector<8x128xf32>
      %103 = math.tanh %102 : vector<8x128xf32>
      %104 = arith.mulf %98, %103 : vector<8x128xf32>
      %c0_44 = arith.constant 0 : index
      %c0_45 = arith.constant 0 : index
      %105 = vector.load %arg10[%c0_44, %c0_45] : memref<8x128xf32, #tpu.memory_space<vmem>>, vector<8x128xf32>
      tpu.vector_store %arg10[%c0_44, %c0_45], %102 {strides = array<i32>} : memref<8x128xf32, #tpu.memory_space<vmem>>, vector<8x128xf32>,
      %c0_46 = arith.constant 0 : index
      %c0_47 = arith.constant 0 : index
      %106 = vector.load %arg9[%c0_46, %c0_47] : memref<8x128xf32, #tpu.memory_space<vmem>>, vector<8x128xf32>
      tpu.vector_store %arg9[%c0_46, %c0_47], %104 {strides = array<i32>} : memref<8x128xf32, #tpu.memory_space<vmem>>, vector<8x128xf32>,
      %107 = vector.extract_strided_slice %18 {offsets = [0, 1], sizes = [8, 1], strides = [1, 1]} : vector<8x8xi1> to vector<8x1xi1>
      %cst_48 = arith.constant 0.000000e+00 : f32
      %108 = vector.shape_cast %107 : vector<8x1xi1> to vector<8x1xi1>
      %109 = vector.broadcast %108 : vector<8x1xi1> to vector<8x128xi1>
      %110 = vector.broadcast %cst_48 : f32 to vector<8x128xf32>
      %111 = arith.select %109, %104, %110 : vector<8x128xi1>, vector<8x128xf32>
      %c1_49 = arith.constant 1 : index
      %c0_50 = arith.constant 0 : index
      %c0_51 = arith.constant 0 : index
      %112 = vector.load %arg8[%c1_49, %c0_50, %c0_51] : memref<8x8x128xf32, #tpu.memory_space<vmem>>, vector<1x8x128xf32>
      %113 = vector.shape_cast %112 : vector<1x8x128xf32> to vector<8x128xf32>
      %114 = vector.shape_cast %111 : vector<8x128xf32> to vector<1x8x128xf32>
      tpu.vector_store %arg8[%c1_49, %c0_50, %c0_51], %114 {strides = array<i32>} : memref<8x8x128xf32, #tpu.memory_space<vmem>>, vector<1x8x128xf32>,
      %c2 = arith.constant 2 : index
      %c0_52 = arith.constant 0 : index
      %c0_53 = arith.constant 0 : index
      %115 = vector.load %arg3[%c2, %c0_52, %c0_53] : memref<8x8x16xf32, #tpu.memory_space<vmem>>, vector<1x8x16xf32>
      %116 = vector.shape_cast %115 : vector<1x8x16xf32> to vector<8x16xf32>
      %117 = arith.truncf %116 : vector<8x16xf32> to vector<8x16xbf16>
      %c0_54 = arith.constant 0 : index
      %c0_55 = arith.constant 0 : index
      %118 = vector.load %arg4[%c0_54, %c0_55] : memref<16x512xbf16, #tpu.memory_space<vmem>>, vector<16x512xbf16>
      %cst_56 = arith.constant dense<0.000000e+00> : vector<8x512xf32>
      %119 = tpu.matmul %117, %118, %cst_56 {dimension_numbers = #tpu.dot_dimension_numbers<[1], [0], [0], [1], [0, 0, 1, 1], [], []>} : vector<8x16xbf16>, vector<16x512xbf16>, vector<8x512xf32> -> vector<8x512xf32>
      %c0_57 = arith.constant 0 : index
      %c0_58 = arith.constant 0 : index
      %120 = vector.load %arg9[%c0_57, %c0_58] : memref<8x128xf32, #tpu.memory_space<vmem>>, vector<8x128xf32>
      %121 = arith.truncf %120 : vector<8x128xf32> to vector<8x128xbf16>
      %c0_59 = arith.constant 0 : index
      %c0_60 = arith.constant 0 : index
      %122 = vector.load %arg5[%c0_59, %c0_60] : memref<128x512xbf16, #tpu.memory_space<vmem>>, vector<128x512xbf16>
      %cst_61 = arith.constant dense<0.000000e+00> : vector<8x512xf32>
      %123 = tpu.matmul %121, %122, %cst_61 {dimension_numbers = #tpu.dot_dimension_numbers<[1], [0], [0], [1], [0, 0, 1, 1], [], []>} : vector<8x128xbf16>, vector<128x512xbf16>, vector<8x512xf32> -> vector<8x512xf32>
      %124 = arith.addf %119, %123 : vector<8x512xf32>
      %125 = vector.broadcast %13 : vector<1x512xf32> to vector<8x512xf32>
      %126 = arith.addf %124, %125 : vector<8x512xf32>
      %127 = vector.extract_strided_slice %126 {offsets = [0, 0], sizes = [8, 128], strides = [1, 1]} : vector<8x512xf32> to vector<8x128xf32>
      %128 = arith.negf %127 : vector<8x128xf32>
      %129 = math.exp %128 : vector<8x128xf32>
      %cst_62 = arith.constant 1.000000e+00 : f32
      %130 = vector.broadcast %cst_62 : f32 to vector<8x128xf32>
      %131 = arith.addf %130, %129 : vector<8x128xf32>
      %132 = arith.divf %130, %131 : vector<8x128xf32>
      %133 = vector.extract_strided_slice %126 {offsets = [0, 128], sizes = [8, 128], strides = [1, 1]} : vector<8x512xf32> to vector<8x128xf32>
      %134 = arith.negf %133 : vector<8x128xf32>
      %135 = math.exp %134 : vector<8x128xf32>
      %cst_63 = arith.constant 1.000000e+00 : f32
      %136 = vector.broadcast %cst_63 : f32 to vector<8x128xf32>
      %137 = arith.addf %136, %135 : vector<8x128xf32>
      %138 = arith.divf %136, %137 : vector<8x128xf32>
      %139 = vector.extract_strided_slice %126 {offsets = [0, 256], sizes = [8, 128], strides = [1, 1]} : vector<8x512xf32> to vector<8x128xf32>
      %140 = math.tanh %139 : vector<8x128xf32>
      %141 = vector.extract_strided_slice %126 {offsets = [0, 384], sizes = [8, 128], strides = [1, 1]} : vector<8x512xf32> to vector<8x128xf32>
      %142 = arith.negf %141 : vector<8x128xf32>
      %143 = math.exp %142 : vector<8x128xf32>
      %cst_64 = arith.constant 1.000000e+00 : f32
      %144 = vector.broadcast %cst_64 : f32 to vector<8x128xf32>
      %145 = arith.addf %144, %143 : vector<8x128xf32>
      %146 = arith.divf %144, %145 : vector<8x128xf32>
      %c0_65 = arith.constant 0 : index
      %c0_66 = arith.constant 0 : index
      %147 = vector.load %arg10[%c0_65, %c0_66] : memref<8x128xf32, #tpu.memory_space<vmem>>, vector<8x128xf32>
      %148 = arith.mulf %138, %147 : vector<8x128xf32>
      %149 = arith.mulf %132, %140 : vector<8x128xf32>
      %150 = arith.addf %148, %149 : vector<8x128xf32>
      %151 = math.tanh %150 : vector<8x128xf32>
      %152 = arith.mulf %146, %151 : vector<8x128xf32>
      %c0_67 = arith.constant 0 : index
      %c0_68 = arith.constant 0 : index
      %153 = vector.load %arg10[%c0_67, %c0_68] : memref<8x128xf32, #tpu.memory_space<vmem>>, vector<8x128xf32>
      tpu.vector_store %arg10[%c0_67, %c0_68], %150 {strides = array<i32>} : memref<8x128xf32, #tpu.memory_space<vmem>>, vector<8x128xf32>,
      %c0_69 = arith.constant 0 : index
      %c0_70 = arith.constant 0 : index
      %154 = vector.load %arg9[%c0_69, %c0_70] : memref<8x128xf32, #tpu.memory_space<vmem>>, vector<8x128xf32>
      tpu.vector_store %arg9[%c0_69, %c0_70], %152 {strides = array<i32>} : memref<8x128xf32, #tpu.memory_space<vmem>>, vector<8x128xf32>,
      %155 = vector.extract_strided_slice %18 {offsets = [0, 2], sizes = [8, 1], strides = [1, 1]} : vector<8x8xi1> to vector<8x1xi1>
      %cst_71 = arith.constant 0.000000e+00 : f32
      %156 = vector.shape_cast %155 : vector<8x1xi1> to vector<8x1xi1>
      %157 = vector.broadcast %156 : vector<8x1xi1> to vector<8x128xi1>
      %158 = vector.broadcast %cst_71 : f32 to vector<8x128xf32>
      %159 = arith.select %157, %152, %158 : vector<8x128xi1>, vector<8x128xf32>
      %c2_72 = arith.constant 2 : index
      %c0_73 = arith.constant 0 : index
      %c0_74 = arith.constant 0 : index
      %160 = vector.load %arg8[%c2_72, %c0_73, %c0_74] : memref<8x8x128xf32, #tpu.memory_space<vmem>>, vector<1x8x128xf32>
      %161 = vector.shape_cast %160 : vector<1x8x128xf32> to vector<8x128xf32>
      %162 = vector.shape_cast %159 : vector<8x128xf32> to vector<1x8x128xf32>
      tpu.vector_store %arg8[%c2_72, %c0_73, %c0_74], %162 {strides = array<i32>} : memref<8x8x128xf32, #tpu.memory_space<vmem>>, vector<1x8x128xf32>,
      %c3 = arith.constant 3 : index
      %c0_75 = arith.constant 0 : index
      %c0_76 = arith.constant 0 : index
      %163 = vector.load %arg3[%c3, %c0_75, %c0_76] : memref<8x8x16xf32, #tpu.memory_space<vmem>>, vector<1x8x16xf32>
      %164 = vector.shape_cast %163 : vector<1x8x16xf32> to vector<8x16xf32>
      %165 = arith.truncf %164 : vector<8x16xf32> to vector<8x16xbf16>
      %c0_77 = arith.constant 0 : index
      %c0_78 = arith.constant 0 : index
      %166 = vector.load %arg4[%c0_77, %c0_78] : memref<16x512xbf16, #tpu.memory_space<vmem>>, vector<16x512xbf16>
      %cst_79 = arith.constant dense<0.000000e+00> : vector<8x512xf32>
      %167 = tpu.matmul %165, %166, %cst_79 {dimension_numbers = #tpu.dot_dimension_numbers<[1], [0], [0], [1], [0, 0, 1, 1], [], []>} : vector<8x16xbf16>, vector<16x512xbf16>, vector<8x512xf32> -> vector<8x512xf32>
      %c0_80 = arith.constant 0 : index
      %c0_81 = arith.constant 0 : index
      %168 = vector.load %arg9[%c0_80, %c0_81] : memref<8x128xf32, #tpu.memory_space<vmem>>, vector<8x128xf32>
      %169 = arith.truncf %168 : vector<8x128xf32> to vector<8x128xbf16>
      %c0_82 = arith.constant 0 : index
      %c0_83 = arith.constant 0 : index
      %170 = vector.load %arg5[%c0_82, %c0_83] : memref<128x512xbf16, #tpu.memory_space<vmem>>, vector<128x512xbf16>
      %cst_84 = arith.constant dense<0.000000e+00> : vector<8x512xf32>
      %171 = tpu.matmul %169, %170, %cst_84 {dimension_numbers = #tpu.dot_dimension_numbers<[1], [0], [0], [1], [0, 0, 1, 1], [], []>} : vector<8x128xbf16>, vector<128x512xbf16>, vector<8x512xf32> -> vector<8x512xf32>
      %172 = arith.addf %167, %171 : vector<8x512xf32>
      %173 = vector.broadcast %13 : vector<1x512xf32> to vector<8x512xf32>
      %174 = arith.addf %172, %173 : vector<8x512xf32>
      %175 = vector.extract_strided_slice %174 {offsets = [0, 0], sizes = [8, 128], strides = [1, 1]} : vector<8x512xf32> to vector<8x128xf32>
      %176 = arith.negf %175 : vector<8x128xf32>
      %177 = math.exp %176 : vector<8x128xf32>
      %cst_85 = arith.constant 1.000000e+00 : f32
      %178 = vector.broadcast %cst_85 : f32 to vector<8x128xf32>
      %179 = arith.addf %178, %177 : vector<8x128xf32>
      %180 = arith.divf %178, %179 : vector<8x128xf32>
      %181 = vector.extract_strided_slice %174 {offsets = [0, 128], sizes = [8, 128], strides = [1, 1]} : vector<8x512xf32> to vector<8x128xf32>
      %182 = arith.negf %181 : vector<8x128xf32>
      %183 = math.exp %182 : vector<8x128xf32>
      %cst_86 = arith.constant 1.000000e+00 : f32
      %184 = vector.broadcast %cst_86 : f32 to vector<8x128xf32>
      %185 = arith.addf %184, %183 : vector<8x128xf32>
      %186 = arith.divf %184, %185 : vector<8x128xf32>
      %187 = vector.extract_strided_slice %174 {offsets = [0, 256], sizes = [8, 128], strides = [1, 1]} : vector<8x512xf32> to vector<8x128xf32>
      %188 = math.tanh %187 : vector<8x128xf32>
      %189 = vector.extract_strided_slice %174 {offsets = [0, 384], sizes = [8, 128], strides = [1, 1]} : vector<8x512xf32> to vector<8x128xf32>
      %190 = arith.negf %189 : vector<8x128xf32>
      %191 = math.exp %190 : vector<8x128xf32>
      %cst_87 = arith.constant 1.000000e+00 : f32
      %192 = vector.broadcast %cst_87 : f32 to vector<8x128xf32>
      %193 = arith.addf %192, %191 : vector<8x128xf32>
      %194 = arith.divf %192, %193 : vector<8x128xf32>
      %c0_88 = arith.constant 0 : index
      %c0_89 = arith.constant 0 : index
      %195 = vector.load %arg10[%c0_88, %c0_89] : memref<8x128xf32, #tpu.memory_space<vmem>>, vector<8x128xf32>
      %196 = arith.mulf %186, %195 : vector<8x128xf32>
      %197 = arith.mulf %180, %188 : vector<8x128xf32>
      %198 = arith.addf %196, %197 : vector<8x128xf32>
      %199 = math.tanh %198 : vector<8x128xf32>
      %200 = arith.mulf %194, %199 : vector<8x128xf32>
      %c0_90 = arith.constant 0 : index
      %c0_91 = arith.constant 0 : index
      %201 = vector.load %arg10[%c0_90, %c0_91] : memref<8x128xf32, #tpu.memory_space<vmem>>, vector<8x128xf32>
      tpu.vector_store %arg10[%c0_90, %c0_91], %198 {strides = array<i32>} : memref<8x128xf32, #tpu.memory_space<vmem>>, vector<8x128xf32>,
      %c0_92 = arith.constant 0 : index
      %c0_93 = arith.constant 0 : index
      %202 = vector.load %arg9[%c0_92, %c0_93] : memref<8x128xf32, #tpu.memory_space<vmem>>, vector<8x128xf32>
      tpu.vector_store %arg9[%c0_92, %c0_93], %200 {strides = array<i32>} : memref<8x128xf32, #tpu.memory_space<vmem>>, vector<8x128xf32>,
      %203 = vector.extract_strided_slice %18 {offsets = [0, 3], sizes = [8, 1], strides = [1, 1]} : vector<8x8xi1> to vector<8x1xi1>
      %cst_94 = arith.constant 0.000000e+00 : f32
      %204 = vector.shape_cast %203 : vector<8x1xi1> to vector<8x1xi1>
      %205 = vector.broadcast %204 : vector<8x1xi1> to vector<8x128xi1>
      %206 = vector.broadcast %cst_94 : f32 to vector<8x128xf32>
      %207 = arith.select %205, %200, %206 : vector<8x128xi1>, vector<8x128xf32>
      %c3_95 = arith.constant 3 : index
      %c0_96 = arith.constant 0 : index
      %c0_97 = arith.constant 0 : index
      %208 = vector.load %arg8[%c3_95, %c0_96, %c0_97] : memref<8x8x128xf32, #tpu.memory_space<vmem>>, vector<1x8x128xf32>
      %209 = vector.shape_cast %208 : vector<1x8x128xf32> to vector<8x128xf32>
      %210 = vector.shape_cast %207 : vector<8x128xf32> to vector<1x8x128xf32>
      tpu.vector_store %arg8[%c3_95, %c0_96, %c0_97], %210 {strides = array<i32>} : memref<8x8x128xf32, #tpu.memory_space<vmem>>, vector<1x8x128xf32>,
      %c4 = arith.constant 4 : index
      %c0_98 = arith.constant 0 : index
      %c0_99 = arith.constant 0 : index
      %211 = vector.load %arg3[%c4, %c0_98, %c0_99] : memref<8x8x16xf32, #tpu.memory_space<vmem>>, vector<1x8x16xf32>
      %212 = vector.shape_cast %211 : vector<1x8x16xf32> to vector<8x16xf32>
      %213 = arith.truncf %212 : vector<8x16xf32> to vector<8x16xbf16>
      %c0_100 = arith.constant 0 : index
      %c0_101 = arith.constant 0 : index
      %214 = vector.load %arg4[%c0_100, %c0_101] : memref<16x512xbf16, #tpu.memory_space<vmem>>, vector<16x512xbf16>
      %cst_102 = arith.constant dense<0.000000e+00> : vector<8x512xf32>
      %215 = tpu.matmul %213, %214, %cst_102 {dimension_numbers = #tpu.dot_dimension_numbers<[1], [0], [0], [1], [0, 0, 1, 1], [], []>} : vector<8x16xbf16>, vector<16x512xbf16>, vector<8x512xf32> -> vector<8x512xf32>
      %c0_103 = arith.constant 0 : index
      %c0_104 = arith.constant 0 : index
      %216 = vector.load %arg9[%c0_103, %c0_104] : memref<8x128xf32, #tpu.memory_space<vmem>>, vector<8x128xf32>
      %217 = arith.truncf %216 : vector<8x128xf32> to vector<8x128xbf16>
      %c0_105 = arith.constant 0 : index
      %c0_106 = arith.constant 0 : index
      %218 = vector.load %arg5[%c0_105, %c0_106] : memref<128x512xbf16, #tpu.memory_space<vmem>>, vector<128x512xbf16>
      %cst_107 = arith.constant dense<0.000000e+00> : vector<8x512xf32>
      %219 = tpu.matmul %217, %218, %cst_107 {dimension_numbers = #tpu.dot_dimension_numbers<[1], [0], [0], [1], [0, 0, 1, 1], [], []>} : vector<8x128xbf16>, vector<128x512xbf16>, vector<8x512xf32> -> vector<8x512xf32>
      %220 = arith.addf %215, %219 : vector<8x512xf32>
      %221 = vector.broadcast %13 : vector<1x512xf32> to vector<8x512xf32>
      %222 = arith.addf %220, %221 : vector<8x512xf32>
      %223 = vector.extract_strided_slice %222 {offsets = [0, 0], sizes = [8, 128], strides = [1, 1]} : vector<8x512xf32> to vector<8x128xf32>
      %224 = arith.negf %223 : vector<8x128xf32>
      %225 = math.exp %224 : vector<8x128xf32>
      %cst_108 = arith.constant 1.000000e+00 : f32
      %226 = vector.broadcast %cst_108 : f32 to vector<8x128xf32>
      %227 = arith.addf %226, %225 : vector<8x128xf32>
      %228 = arith.divf %226, %227 : vector<8x128xf32>
      %229 = vector.extract_strided_slice %222 {offsets = [0, 128], sizes = [8, 128], strides = [1, 1]} : vector<8x512xf32> to vector<8x128xf32>
      %230 = arith.negf %229 : vector<8x128xf32>
      %231 = math.exp %230 : vector<8x128xf32>
      %cst_109 = arith.constant 1.000000e+00 : f32
      %232 = vector.broadcast %cst_109 : f32 to vector<8x128xf32>
      %233 = arith.addf %232, %231 : vector<8x128xf32>
      %234 = arith.divf %232, %233 : vector<8x128xf32>
      %235 = vector.extract_strided_slice %222 {offsets = [0, 256], sizes = [8, 128], strides = [1, 1]} : vector<8x512xf32> to vector<8x128xf32>
      %236 = math.tanh %235 : vector<8x128xf32>
      %237 = vector.extract_strided_slice %222 {offsets = [0, 384], sizes = [8, 128], strides = [1, 1]} : vector<8x512xf32> to vector<8x128xf32>
      %238 = arith.negf %237 : vector<8x128xf32>
      %239 = math.exp %238 : vector<8x128xf32>
      %cst_110 = arith.constant 1.000000e+00 : f32
      %240 = vector.broadcast %cst_110 : f32 to vector<8x128xf32>
      %241 = arith.addf %240, %239 : vector<8x128xf32>
      %242 = arith.divf %240, %241 : vector<8x128xf32>
      %c0_111 = arith.constant 0 : index
      %c0_112 = arith.constant 0 : index
      %243 = vector.load %arg10[%c0_111, %c0_112] : memref<8x128xf32, #tpu.memory_space<vmem>>, vector<8x128xf32>
      %244 = arith.mulf %234, %243 : vector<8x128xf32>
      %245 = arith.mulf %228, %236 : vector<8x128xf32>
      %246 = arith.addf %244, %245 : vector<8x128xf32>
      %247 = math.tanh %246 : vector<8x128xf32>
      %248 = arith.mulf %242, %247 : vector<8x128xf32>
      %c0_113 = arith.constant 0 : index
      %c0_114 = arith.constant 0 : index
      %249 = vector.load %arg10[%c0_113, %c0_114] : memref<8x128xf32, #tpu.memory_space<vmem>>, vector<8x128xf32>
      tpu.vector_store %arg10[%c0_113, %c0_114], %246 {strides = array<i32>} : memref<8x128xf32, #tpu.memory_space<vmem>>, vector<8x128xf32>,
      %c0_115 = arith.constant 0 : index
      %c0_116 = arith.constant 0 : index
      %250 = vector.load %arg9[%c0_115, %c0_116] : memref<8x128xf32, #tpu.memory_space<vmem>>, vector<8x128xf32>
      tpu.vector_store %arg9[%c0_115, %c0_116], %248 {strides = array<i32>} : memref<8x128xf32, #tpu.memory_space<vmem>>, vector<8x128xf32>,
      %251 = vector.extract_strided_slice %18 {offsets = [0, 4], sizes = [8, 1], strides = [1, 1]} : vector<8x8xi1> to vector<8x1xi1>
      %cst_117 = arith.constant 0.000000e+00 : f32
      %252 = vector.shape_cast %251 : vector<8x1xi1> to vector<8x1xi1>
      %253 = vector.broadcast %252 : vector<8x1xi1> to vector<8x128xi1>
      %254 = vector.broadcast %cst_117 : f32 to vector<8x128xf32>
      %255 = arith.select %253, %248, %254 : vector<8x128xi1>, vector<8x128xf32>
      %c4_118 = arith.constant 4 : index
      %c0_119 = arith.constant 0 : index
      %c0_120 = arith.constant 0 : index
      %256 = vector.load %arg8[%c4_118, %c0_119, %c0_120] : memref<8x8x128xf32, #tpu.memory_space<vmem>>, vector<1x8x128xf32>
      %257 = vector.shape_cast %256 : vector<1x8x128xf32> to vector<8x128xf32>
      %258 = vector.shape_cast %255 : vector<8x128xf32> to vector<1x8x128xf32>
      tpu.vector_store %arg8[%c4_118, %c0_119, %c0_120], %258 {strides = array<i32>} : memref<8x8x128xf32, #tpu.memory_space<vmem>>, vector<1x8x128xf32>,
      %c5 = arith.constant 5 : index
      %c0_121 = arith.constant 0 : index
      %c0_122 = arith.constant 0 : index
      %259 = vector.load %arg3[%c5, %c0_121, %c0_122] : memref<8x8x16xf32, #tpu.memory_space<vmem>>, vector<1x8x16xf32>
      %260 = vector.shape_cast %259 : vector<1x8x16xf32> to vector<8x16xf32>
      %261 = arith.truncf %260 : vector<8x16xf32> to vector<8x16xbf16>
      %c0_123 = arith.constant 0 : index
      %c0_124 = arith.constant 0 : index
      %262 = vector.load %arg4[%c0_123, %c0_124] : memref<16x512xbf16, #tpu.memory_space<vmem>>, vector<16x512xbf16>
      %cst_125 = arith.constant dense<0.000000e+00> : vector<8x512xf32>
      %263 = tpu.matmul %261, %262, %cst_125 {dimension_numbers = #tpu.dot_dimension_numbers<[1], [0], [0], [1], [0, 0, 1, 1], [], []>} : vector<8x16xbf16>, vector<16x512xbf16>, vector<8x512xf32> -> vector<8x512xf32>
      %c0_126 = arith.constant 0 : index
      %c0_127 = arith.constant 0 : index
      %264 = vector.load %arg9[%c0_126, %c0_127] : memref<8x128xf32, #tpu.memory_space<vmem>>, vector<8x128xf32>
      %265 = arith.truncf %264 : vector<8x128xf32> to vector<8x128xbf16>
      %c0_128 = arith.constant 0 : index
      %c0_129 = arith.constant 0 : index
      %266 = vector.load %arg5[%c0_128, %c0_129] : memref<128x512xbf16, #tpu.memory_space<vmem>>, vector<128x512xbf16>
      %cst_130 = arith.constant dense<0.000000e+00> : vector<8x512xf32>
      %267 = tpu.matmul %265, %266, %cst_130 {dimension_numbers = #tpu.dot_dimension_numbers<[1], [0], [0], [1], [0, 0, 1, 1], [], []>} : vector<8x128xbf16>, vector<128x512xbf16>, vector<8x512xf32> -> vector<8x512xf32>
      %268 = arith.addf %263, %267 : vector<8x512xf32>
      %269 = vector.broadcast %13 : vector<1x512xf32> to vector<8x512xf32>
      %270 = arith.addf %268, %269 : vector<8x512xf32>
      %271 = vector.extract_strided_slice %270 {offsets = [0, 0], sizes = [8, 128], strides = [1, 1]} : vector<8x512xf32> to vector<8x128xf32>
      %272 = arith.negf %271 : vector<8x128xf32>
      %273 = math.exp %272 : vector<8x128xf32>
      %cst_131 = arith.constant 1.000000e+00 : f32
      %274 = vector.broadcast %cst_131 : f32 to vector<8x128xf32>
      %275 = arith.addf %274, %273 : vector<8x128xf32>
      %276 = arith.divf %274, %275 : vector<8x128xf32>
      %277 = vector.extract_strided_slice %270 {offsets = [0, 128], sizes = [8, 128], strides = [1, 1]} : vector<8x512xf32> to vector<8x128xf32>
      %278 = arith.negf %277 : vector<8x128xf32>
      %279 = math.exp %278 : vector<8x128xf32>
      %cst_132 = arith.constant 1.000000e+00 : f32
      %280 = vector.broadcast %cst_132 : f32 to vector<8x128xf32>
      %281 = arith.addf %280, %279 : vector<8x128xf32>
      %282 = arith.divf %280, %281 : vector<8x128xf32>
      %283 = vector.extract_strided_slice %270 {offsets = [0, 256], sizes = [8, 128], strides = [1, 1]} : vector<8x512xf32> to vector<8x128xf32>
      %284 = math.tanh %283 : vector<8x128xf32>
      %285 = vector.extract_strided_slice %270 {offsets = [0, 384], sizes = [8, 128], strides = [1, 1]} : vector<8x512xf32> to vector<8x128xf32>
      %286 = arith.negf %285 : vector<8x128xf32>
      %287 = math.exp %286 : vector<8x128xf32>
      %cst_133 = arith.constant 1.000000e+00 : f32
      %288 = vector.broadcast %cst_133 : f32 to vector<8x128xf32>
      %289 = arith.addf %288, %287 : vector<8x128xf32>
      %290 = arith.divf %288, %289 : vector<8x128xf32>
      %c0_134 = arith.constant 0 : index
      %c0_135 = arith.constant 0 : index
      %291 = vector.load %arg10[%c0_134, %c0_135] : memref<8x128xf32, #tpu.memory_space<vmem>>, vector<8x128xf32>
      %292 = arith.mulf %282, %291 : vector<8x128xf32>
      %293 = arith.mulf %276, %284 : vector<8x128xf32>
      %294 = arith.addf %292, %293 : vector<8x128xf32>
      %295 = math.tanh %294 : vector<8x128xf32>
      %296 = arith.mulf %290, %295 : vector<8x128xf32>
      %c0_136 = arith.constant 0 : index
      %c0_137 = arith.constant 0 : index
      %297 = vector.load %arg10[%c0_136, %c0_137] : memref<8x128xf32, #tpu.memory_space<vmem>>, vector<8x128xf32>
      tpu.vector_store %arg10[%c0_136, %c0_137], %294 {strides = array<i32>} : memref<8x128xf32, #tpu.memory_space<vmem>>, vector<8x128xf32>,
      %c0_138 = arith.constant 0 : index
      %c0_139 = arith.constant 0 : index
      %298 = vector.load %arg9[%c0_138, %c0_139] : memref<8x128xf32, #tpu.memory_space<vmem>>, vector<8x128xf32>
      tpu.vector_store %arg9[%c0_138, %c0_139], %296 {strides = array<i32>} : memref<8x128xf32, #tpu.memory_space<vmem>>, vector<8x128xf32>,
      %299 = vector.extract_strided_slice %18 {offsets = [0, 5], sizes = [8, 1], strides = [1, 1]} : vector<8x8xi1> to vector<8x1xi1>
      %cst_140 = arith.constant 0.000000e+00 : f32
      %300 = vector.shape_cast %299 : vector<8x1xi1> to vector<8x1xi1>
      %301 = vector.broadcast %300 : vector<8x1xi1> to vector<8x128xi1>
      %302 = vector.broadcast %cst_140 : f32 to vector<8x128xf32>
      %303 = arith.select %301, %296, %302 : vector<8x128xi1>, vector<8x128xf32>
      %c5_141 = arith.constant 5 : index
      %c0_142 = arith.constant 0 : index
      %c0_143 = arith.constant 0 : index
      %304 = vector.load %arg8[%c5_141, %c0_142, %c0_143] : memref<8x8x128xf32, #tpu.memory_space<vmem>>, vector<1x8x128xf32>
      %305 = vector.shape_cast %304 : vector<1x8x128xf32> to vector<8x128xf32>
      %306 = vector.shape_cast %303 : vector<8x128xf32> to vector<1x8x128xf32>
      tpu.vector_store %arg8[%c5_141, %c0_142, %c0_143], %306 {strides = array<i32>} : memref<8x8x128xf32, #tpu.memory_space<vmem>>, vector<1x8x128xf32>,
      %c6 = arith.constant 6 : index
      %c0_144 = arith.constant 0 : index
      %c0_145 = arith.constant 0 : index
      %307 = vector.load %arg3[%c6, %c0_144, %c0_145] : memref<8x8x16xf32, #tpu.memory_space<vmem>>, vector<1x8x16xf32>
      %308 = vector.shape_cast %307 : vector<1x8x16xf32> to vector<8x16xf32>
      %309 = arith.truncf %308 : vector<8x16xf32> to vector<8x16xbf16>
      %c0_146 = arith.constant 0 : index
      %c0_147 = arith.constant 0 : index
      %310 = vector.load %arg4[%c0_146, %c0_147] : memref<16x512xbf16, #tpu.memory_space<vmem>>, vector<16x512xbf16>
      %cst_148 = arith.constant dense<0.000000e+00> : vector<8x512xf32>
      %311 = tpu.matmul %309, %310, %cst_148 {dimension_numbers = #tpu.dot_dimension_numbers<[1], [0], [0], [1], [0, 0, 1, 1], [], []>} : vector<8x16xbf16>, vector<16x512xbf16>, vector<8x512xf32> -> vector<8x512xf32>
      %c0_149 = arith.constant 0 : index
      %c0_150 = arith.constant 0 : index
      %312 = vector.load %arg9[%c0_149, %c0_150] : memref<8x128xf32, #tpu.memory_space<vmem>>, vector<8x128xf32>
      %313 = arith.truncf %312 : vector<8x128xf32> to vector<8x128xbf16>
      %c0_151 = arith.constant 0 : index
      %c0_152 = arith.constant 0 : index
      %314 = vector.load %arg5[%c0_151, %c0_152] : memref<128x512xbf16, #tpu.memory_space<vmem>>, vector<128x512xbf16>
      %cst_153 = arith.constant dense<0.000000e+00> : vector<8x512xf32>
      %315 = tpu.matmul %313, %314, %cst_153 {dimension_numbers = #tpu.dot_dimension_numbers<[1], [0], [0], [1], [0, 0, 1, 1], [], []>} : vector<8x128xbf16>, vector<128x512xbf16>, vector<8x512xf32> -> vector<8x512xf32>
      %316 = arith.addf %311, %315 : vector<8x512xf32>
      %317 = vector.broadcast %13 : vector<1x512xf32> to vector<8x512xf32>
      %318 = arith.addf %316, %317 : vector<8x512xf32>
      %319 = vector.extract_strided_slice %318 {offsets = [0, 0], sizes = [8, 128], strides = [1, 1]} : vector<8x512xf32> to vector<8x128xf32>
      %320 = arith.negf %319 : vector<8x128xf32>
      %321 = math.exp %320 : vector<8x128xf32>
      %cst_154 = arith.constant 1.000000e+00 : f32
      %322 = vector.broadcast %cst_154 : f32 to vector<8x128xf32>
      %323 = arith.addf %322, %321 : vector<8x128xf32>
      %324 = arith.divf %322, %323 : vector<8x128xf32>
      %325 = vector.extract_strided_slice %318 {offsets = [0, 128], sizes = [8, 128], strides = [1, 1]} : vector<8x512xf32> to vector<8x128xf32>
      %326 = arith.negf %325 : vector<8x128xf32>
      %327 = math.exp %326 : vector<8x128xf32>
      %cst_155 = arith.constant 1.000000e+00 : f32
      %328 = vector.broadcast %cst_155 : f32 to vector<8x128xf32>
      %329 = arith.addf %328, %327 : vector<8x128xf32>
      %330 = arith.divf %328, %329 : vector<8x128xf32>
      %331 = vector.extract_strided_slice %318 {offsets = [0, 256], sizes = [8, 128], strides = [1, 1]} : vector<8x512xf32> to vector<8x128xf32>
      %332 = math.tanh %331 : vector<8x128xf32>
      %333 = vector.extract_strided_slice %318 {offsets = [0, 384], sizes = [8, 128], strides = [1, 1]} : vector<8x512xf32> to vector<8x128xf32>
      %334 = arith.negf %333 : vector<8x128xf32>
      %335 = math.exp %334 : vector<8x128xf32>
      %cst_156 = arith.constant 1.000000e+00 : f32
      %336 = vector.broadcast %cst_156 : f32 to vector<8x128xf32>
      %337 = arith.addf %336, %335 : vector<8x128xf32>
      %338 = arith.divf %336, %337 : vector<8x128xf32>
      %c0_157 = arith.constant 0 : index
      %c0_158 = arith.constant 0 : index
      %339 = vector.load %arg10[%c0_157, %c0_158] : memref<8x128xf32, #tpu.memory_space<vmem>>, vector<8x128xf32>
      %340 = arith.mulf %330, %339 : vector<8x128xf32>
      %341 = arith.mulf %324, %332 : vector<8x128xf32>
      %342 = arith.addf %340, %341 : vector<8x128xf32>
      %343 = math.tanh %342 : vector<8x128xf32>
      %344 = arith.mulf %338, %343 : vector<8x128xf32>
      %c0_159 = arith.constant 0 : index
      %c0_160 = arith.constant 0 : index
      %345 = vector.load %arg10[%c0_159, %c0_160] : memref<8x128xf32, #tpu.memory_space<vmem>>, vector<8x128xf32>
      tpu.vector_store %arg10[%c0_159, %c0_160], %342 {strides = array<i32>} : memref<8x128xf32, #tpu.memory_space<vmem>>, vector<8x128xf32>,
      %c0_161 = arith.constant 0 : index
      %c0_162 = arith.constant 0 : index
      %346 = vector.load %arg9[%c0_161, %c0_162] : memref<8x128xf32, #tpu.memory_space<vmem>>, vector<8x128xf32>
      tpu.vector_store %arg9[%c0_161, %c0_162], %344 {strides = array<i32>} : memref<8x128xf32, #tpu.memory_space<vmem>>, vector<8x128xf32>,
      %347 = vector.extract_strided_slice %18 {offsets = [0, 6], sizes = [8, 1], strides = [1, 1]} : vector<8x8xi1> to vector<8x1xi1>
      %cst_163 = arith.constant 0.000000e+00 : f32
      %348 = vector.shape_cast %347 : vector<8x1xi1> to vector<8x1xi1>
      %349 = vector.broadcast %348 : vector<8x1xi1> to vector<8x128xi1>
      %350 = vector.broadcast %cst_163 : f32 to vector<8x128xf32>
      %351 = arith.select %349, %344, %350 : vector<8x128xi1>, vector<8x128xf32>
      %c6_164 = arith.constant 6 : index
      %c0_165 = arith.constant 0 : index
      %c0_166 = arith.constant 0 : index
      %352 = vector.load %arg8[%c6_164, %c0_165, %c0_166] : memref<8x8x128xf32, #tpu.memory_space<vmem>>, vector<1x8x128xf32>
      %353 = vector.shape_cast %352 : vector<1x8x128xf32> to vector<8x128xf32>
      %354 = vector.shape_cast %351 : vector<8x128xf32> to vector<1x8x128xf32>
      tpu.vector_store %arg8[%c6_164, %c0_165, %c0_166], %354 {strides = array<i32>} : memref<8x8x128xf32, #tpu.memory_space<vmem>>, vector<1x8x128xf32>,
      %c7 = arith.constant 7 : index
      %c0_167 = arith.constant 0 : index
      %c0_168 = arith.constant 0 : index
      %355 = vector.load %arg3[%c7, %c0_167, %c0_168] : memref<8x8x16xf32, #tpu.memory_space<vmem>>, vector<1x8x16xf32>
      %356 = vector.shape_cast %355 : vector<1x8x16xf32> to vector<8x16xf32>
      %357 = arith.truncf %356 : vector<8x16xf32> to vector<8x16xbf16>
      %c0_169 = arith.constant 0 : index
      %c0_170 = arith.constant 0 : index
      %358 = vector.load %arg4[%c0_169, %c0_170] : memref<16x512xbf16, #tpu.memory_space<vmem>>, vector<16x512xbf16>
      %cst_171 = arith.constant dense<0.000000e+00> : vector<8x512xf32>
      %359 = tpu.matmul %357, %358, %cst_171 {dimension_numbers = #tpu.dot_dimension_numbers<[1], [0], [0], [1], [0, 0, 1, 1], [], []>} : vector<8x16xbf16>, vector<16x512xbf16>, vector<8x512xf32> -> vector<8x512xf32>
      %c0_172 = arith.constant 0 : index
      %c0_173 = arith.constant 0 : index
      %360 = vector.load %arg9[%c0_172, %c0_173] : memref<8x128xf32, #tpu.memory_space<vmem>>, vector<8x128xf32>
      %361 = arith.truncf %360 : vector<8x128xf32> to vector<8x128xbf16>
      %c0_174 = arith.constant 0 : index
      %c0_175 = arith.constant 0 : index
      %362 = vector.load %arg5[%c0_174, %c0_175] : memref<128x512xbf16, #tpu.memory_space<vmem>>, vector<128x512xbf16>
      %cst_176 = arith.constant dense<0.000000e+00> : vector<8x512xf32>
      %363 = tpu.matmul %361, %362, %cst_176 {dimension_numbers = #tpu.dot_dimension_numbers<[1], [0], [0], [1], [0, 0, 1, 1], [], []>} : vector<8x128xbf16>, vector<128x512xbf16>, vector<8x512xf32> -> vector<8x512xf32>
      %364 = arith.addf %359, %363 : vector<8x512xf32>
      %365 = vector.broadcast %13 : vector<1x512xf32> to vector<8x512xf32>
      %366 = arith.addf %364, %365 : vector<8x512xf32>
      %367 = vector.extract_strided_slice %366 {offsets = [0, 0], sizes = [8, 128], strides = [1, 1]} : vector<8x512xf32> to vector<8x128xf32>
      %368 = arith.negf %367 : vector<8x128xf32>
      %369 = math.exp %368 : vector<8x128xf32>
      %cst_177 = arith.constant 1.000000e+00 : f32
      %370 = vector.broadcast %cst_177 : f32 to vector<8x128xf32>
      %371 = arith.addf %370, %369 : vector<8x128xf32>
      %372 = arith.divf %370, %371 : vector<8x128xf32>
      %373 = vector.extract_strided_slice %366 {offsets = [0, 128], sizes = [8, 128], strides = [1, 1]} : vector<8x512xf32> to vector<8x128xf32>
      %374 = arith.negf %373 : vector<8x128xf32>
      %375 = math.exp %374 : vector<8x128xf32>
      %cst_178 = arith.constant 1.000000e+00 : f32
      %376 = vector.broadcast %cst_178 : f32 to vector<8x128xf32>
      %377 = arith.addf %376, %375 : vector<8x128xf32>
      %378 = arith.divf %376, %377 : vector<8x128xf32>
      %379 = vector.extract_strided_slice %366 {offsets = [0, 256], sizes = [8, 128], strides = [1, 1]} : vector<8x512xf32> to vector<8x128xf32>
      %380 = math.tanh %379 : vector<8x128xf32>
      %381 = vector.extract_strided_slice %366 {offsets = [0, 384], sizes = [8, 128], strides = [1, 1]} : vector<8x512xf32> to vector<8x128xf32>
      %382 = arith.negf %381 : vector<8x128xf32>
      %383 = math.exp %382 : vector<8x128xf32>
      %cst_179 = arith.constant 1.000000e+00 : f32
      %384 = vector.broadcast %cst_179 : f32 to vector<8x128xf32>
      %385 = arith.addf %384, %383 : vector<8x128xf32>
      %386 = arith.divf %384, %385 : vector<8x128xf32>
      %c0_180 = arith.constant 0 : index
      %c0_181 = arith.constant 0 : index
      %387 = vector.load %arg10[%c0_180, %c0_181] : memref<8x128xf32, #tpu.memory_space<vmem>>, vector<8x128xf32>
      %388 = arith.mulf %378, %387 : vector<8x128xf32>
      %389 = arith.mulf %372, %380 : vector<8x128xf32>
      %390 = arith.addf %388, %389 : vector<8x128xf32>
      %391 = math.tanh %390 : vector<8x128xf32>
      %392 = arith.mulf %386, %391 : vector<8x128xf32>
      %c0_182 = arith.constant 0 : index
      %c0_183 = arith.constant 0 : index
      %393 = vector.load %arg10[%c0_182, %c0_183] : memref<8x128xf32, #tpu.memory_space<vmem>>, vector<8x128xf32>
      tpu.vector_store %arg10[%c0_182, %c0_183], %390 {strides = array<i32>} : memref<8x128xf32, #tpu.memory_space<vmem>>, vector<8x128xf32>,
      %c0_184 = arith.constant 0 : index
      %c0_185 = arith.constant 0 : index
      %394 = vector.load %arg9[%c0_184, %c0_185] : memref<8x128xf32, #tpu.memory_space<vmem>>, vector<8x128xf32>
      tpu.vector_store %arg9[%c0_184, %c0_185], %392 {strides = array<i32>} : memref<8x128xf32, #tpu.memory_space<vmem>>, vector<8x128xf32>,
      %395 = vector.extract_strided_slice %18 {offsets = [0, 7], sizes = [8, 1], strides = [1, 1]} : vector<8x8xi1> to vector<8x1xi1>
      %cst_186 = arith.constant 0.000000e+00 : f32
      %396 = vector.shape_cast %395 : vector<8x1xi1> to vector<8x1xi1>
      %397 = vector.broadcast %396 : vector<8x1xi1> to vector<8x128xi1>
      %398 = vector.broadcast %cst_186 : f32 to vector<8x128xf32>
      %399 = arith.select %397, %392, %398 : vector<8x128xi1>, vector<8x128xf32>
      %c7_187 = arith.constant 7 : index
      %c0_188 = arith.constant 0 : index
      %c0_189 = arith.constant 0 : index
      %400 = vector.load %arg8[%c7_187, %c0_188, %c0_189] : memref<8x8x128xf32, #tpu.memory_space<vmem>>, vector<1x8x128xf32>
      %401 = vector.shape_cast %400 : vector<1x8x128xf32> to vector<8x128xf32>
      %402 = vector.shape_cast %399 : vector<8x128xf32> to vector<1x8x128xf32>
      tpu.vector_store %arg8[%c7_187, %c0_188, %c0_189], %402 {strides = array<i32>} : memref<8x8x128xf32, #tpu.memory_space<vmem>>, vector<1x8x128xf32>,
    } else {
    }
    %6 = arith.cmpi sge, %0, %2 : i32
    %7 = arith.extui %6 : i1 to i32
    %c0_i32_0 = arith.constant 0 : i32
    %8 = arith.cmpi ne, %7, %c0_i32_0 : i32
    scf.if %8 {
      %cst = arith.constant 0.000000e+00 : f32
      %9 = vector.broadcast %cst : f32 to vector<8x8x128xf32>
      %c0 = arith.constant 0 : index
      %c0_1 = arith.constant 0 : index
      %c0_2 = arith.constant 0 : index
      %10 = vector.load %arg8[%c0, %c0_1, %c0_2] : memref<8x8x128xf32, #tpu.memory_space<vmem>>, vector<8x8x128xf32>
      tpu.vector_store %arg8[%c0, %c0_1, %c0_2], %9 {strides = array<i32>} : memref<8x8x128xf32, #tpu.memory_space<vmem>>, vector<8x8x128xf32>,
    } else {
    }
    return
  }
  func.func @transform_0(%arg0: i32, %arg1: i32, %arg2: memref<1xi32, #tpu.memory_space<smem>>) -> (i32, i32, i32) {
    %c0_i32 = arith.constant 0 : i32
    %c0_i32_0 = arith.constant 0 : i32
    return %arg1, %arg0, %c0_i32 : i32, i32, i32
  }
  func.func @transform_1(%arg0: i32, %arg1: i32, %arg2: memref<1xi32, #tpu.memory_space<smem>>) -> (i32, i32) {
    %c0_i32 = arith.constant 0 : i32
    %c0_i32_0 = arith.constant 0 : i32
    %c0_i32_1 = arith.constant 0 : i32
    return %c0_i32, %c0_i32_0 : i32, i32
  }
  func.func @transform_2(%arg0: i32, %arg1: i32, %arg2: memref<1xi32, #tpu.memory_space<smem>>) -> (i32, i32) {
    %c0_i32 = arith.constant 0 : i32
    %c0_i32_0 = arith.constant 0 : i32
    %c0_i32_1 = arith.constant 0 : i32
    return %c0_i32, %c0_i32_0 : i32, i32
  }
  func.func @transform_3(%arg0: i32, %arg1: i32, %arg2: memref<1xi32, #tpu.memory_space<smem>>) -> (i32, i32) {
    %c0_i32 = arith.constant 0 : i32
    %c0_i32_0 = arith.constant 0 : i32
    %c0_i32_1 = arith.constant 0 : i32
    return %c0_i32, %c0_i32_0 : i32, i32
  }
  func.func @transform_4(%arg0: i32, %arg1: i32, %arg2: memref<1xi32, #tpu.memory_space<smem>>) -> (i32, i32) {
    %c0_i32 = arith.constant 0 : i32
    %c0_i32_0 = arith.constant 0 : i32
    return %arg0, %c0_i32 : i32, i32
  }
  func.func @transform_5(%arg0: i32, %arg1: i32, %arg2: memref<1xi32, #tpu.memory_space<smem>>) -> (i32, i32, i32) {
    %c0_i32 = arith.constant 0 : i32
    %c0_i32_0 = arith.constant 0 : i32
    return %arg1, %arg0, %c0_i32 : i32, i32, i32
  }
}

</mosaic_0001>

<llo_original>
// kernel: neg.1
$region0: #{neg.1}
  #allocation0 [shape = 's32[1]{0}', space=sflag, size = 0x4, scoped, tag = 'scoped memory for neg.1']
  %s0 = inlined_call_operand.vmem [shape: s32[2], index: 0, kind: input, shape index: {}]
  %s1 = inlined_call_operand.vmem [shape: s32[2], index: 1, kind: output, shape index: {}]
  %v2 = vld [vmem:[%s0] sm:$0x1]
  %3 = xla_tuple %v2
  %4 = xla_tuple %3
  %v5 = vsub.s32 0, %v2
  %6 = xla_tuple %v5
  %7 = vst [vmem:[%s1] sm:$0x1] %v5

// kernel: packed_lstm_forward.1
$region0: #{packed_lstm_forward.1}
  #allocation0 [shape = 'u32[]', space=smem, size = 0x4, offset = 0x4, fixed_abs, tag = 'smem constant byte address 0x4 - core index']
  #allocation1 [shape = 'u32[144,128]{1,0:T(1,128)}', space=vmem, size = 0x12000, scoped, tag = 'internal scratch']
  #allocation2 [shape = 'f32[8,128]{1,0:T(8,128)}', space=vmem, size = 0x1000, scoped, tag = 'scratch operand']
  #allocation3 [shape = 'f32[8,128]{1,0:T(8,128)}', space=vmem, size = 0x1000, scoped, tag = 'scratch operand']
  #allocation4 [shape = 's32[1]{0}', space=sflag, size = 0x4, scoped, tag = 'scoped memory for packed_lstm_forward.1']
  #allocation5 [shape = 's32[1]{0:T(128)S(6)}', space=smem, size = 0x200, scoped, tag = 'prefetched SMEM operand 0']
  %s0 = inlined_call_operand.<no memory space> [shape: s32[1], index: 0, kind: input, shape index: {}]
  %s1 = inlined_call_operand.vmem [shape: f32[8,8,16], index: 1, kind: input, shape index: {}]
  %s2 = inlined_call_operand.vmem [shape: bf16[16,512], index: 2, kind: input, shape index: {}]
  %s3 = inlined_call_operand.vmem [shape: bf16[128,512], index: 3, kind: input, shape index: {}]
  %s4 = inlined_call_operand.vmem [shape: f32[1,512], index: 4, kind: input, shape index: {}]
  %s5 = inlined_call_operand.vmem [shape: s32[8,1], index: 5, kind: input, shape index: {}]
  %s6 = inlined_call_operand.vmem [shape: f32[8,8,128], index: 6, kind: output, shape index: {}]
  %s7 = sld [smem:[#allocation0]]
  $region42: #{packed_lstm_forward.1} parent=0
    _
  %s9 = ssub.s32 1, %s7
  %s10 = scalar_select 0, %s9, %s7
  %11 = sst [smem:[#allocation5]] %s0
  // Predicated region
  $region2: #{packed_lstm_forward.1} parent=0 // pred_check
    _
  $region3: #{packed_lstm_forward.1} parent=0 // pred_check_branch
    %13 = sbr.rel (0) target = $region5
  $region4: #{packed_lstm_forward.1} parent=0 // pred_region
    _
  $region5: #{packed_lstm_forward.1} parent=0 // pred_fallthru
    _
  // Predicated region
  $region6: #{packed_lstm_forward.1} parent=0 // pred_check
    _
  $region7: #{packed_lstm_forward.1} parent=0 // pred_check_branch
    %15 = sbr.rel (0) target = $region9
  $region8: #{packed_lstm_forward.1} parent=0 // pred_region
    _
  $region9: #{packed_lstm_forward.1} parent=0 // pred_fallthru
    _
  // Predicated region
  $region10: #{packed_lstm_forward.1} parent=0 // pred_check
    _
  $region11: #{packed_lstm_forward.1} parent=0 // pred_check_branch
    %17 = sbr.rel (0) target = $region13
  $region12: #{packed_lstm_forward.1} parent=0 // pred_region
    _
  $region13: #{packed_lstm_forward.1} parent=0 // pred_fallthru
    _
  // Predicated region
  $region14: #{packed_lstm_forward.1} parent=0 // pred_check
    _
  $region15: #{packed_lstm_forward.1} parent=0 // pred_check_branch
    %19 = sbr.rel (0) target = $region17
  $region16: #{packed_lstm_forward.1} parent=0 // pred_region
    _
  $region17: #{packed_lstm_forward.1} parent=0 // pred_fallthru
    _
  // Predicated region
  $region18: #{packed_lstm_forward.1} parent=0 // pred_check
    _
  $region19: #{packed_lstm_forward.1} parent=0 // pred_check_branch
    %21 = sbr.rel (0) target = $region21
  $region20: #{packed_lstm_forward.1} parent=0 // pred_region
    _
  $region21: #{packed_lstm_forward.1} parent=0 // pred_fallthru
    _
  %s23 = smul.u32 0, 8
  %s24 = sld [smem:[#allocation5]]
  %p25 = scmp.lt.s32.totalorder %s23, %s24
  // Predicated region
  $region22: #{packed_lstm_forward.1} parent=0 // pred_check
    %p26 = pneg %p25
  $region23: #{packed_lstm_forward.1} parent=0 // pred_check_branch
    %28 = sbr.rel (%p26) target = $region25
  $region24: #{packed_lstm_forward.1} parent=0 // pred_region
    %p29 = scmp.eq.s32.totalorder 0, 0
    // Predicated region
    $region26: #{packed_lstm_forward.1} parent=24 // pred_check
      %p30 = pneg %p29
    $region27: #{packed_lstm_forward.1} parent=24 // pred_check_branch
      %32 = sbr.rel (%p30) target = $region29
    $region28: #{packed_lstm_forward.1} parent=24 // pred_region
      %33 = vst [vmem:[#allocation2] sm:$0xff] 0.0
      %34 = vst [vmem:[#allocation3] sm:$0xff] 0.0
    $region29: #{packed_lstm_forward.1} parent=24 // pred_fallthru
      _
    %v35 = vld [vmem:[%s5] sm:$0xff]
    %v36 = vld [vmem:[%s4] sm:$0xf]
    %v37 = vlaneseq
    %v38 = vand.u32 %v37, 127
    %v39 = vstv %s23
    %v40 = vadd.s32 %v39, %v38
    %41 = vset.pattern.permute.xlu0 0
    %42 = vperm.xlu0 %41, %v35
    %v43 = vpop.permute.xlu0 %42
    %vm44 = vcmp.lt.s32.totalorder %v40, %v43
    %v45 = vld [vmem:[%s1] sm:$0xff]
    %v46 = vpack.c.bf16 %v45, %v45
    %v47 = vld [vmem:[%s2] sm:$0xff]
    %v48 = vld [vmem:[%s2 + $0x8] sm:$0xff]
    %v49 = vld [vmem:[%s2 + $0x10] sm:$0xff]
    %v50 = vld [vmem:[%s2 + $0x18] sm:$0xff]
    %v51 = vld [vmem:[#allocation2] sm:$0xff]
    %v52 = vpack.c.bf16 %v51, %v51
    %v53 = vld [vmem:[%s3] sm:$0xff]
    %v54 = vld [vmem:[%s3 + $0x8] sm:$0xff]
    %v55 = vld [vmem:[%s3 + $0x10] sm:$0xff]
    %v56 = vld [vmem:[%s3 + $0x18] sm:$0xff]
    %v57 = vld [vmem:[%s3 + $0x20] sm:$0xff]
    %v58 = vld [vmem:[%s3 + $0x28] sm:$0xff]
    %v59 = vld [vmem:[%s3 + $0x30] sm:$0xff]
    %v60 = vld [vmem:[%s3 + $0x38] sm:$0xff]
    %v61 = vld [vmem:[%s3 + $0x40] sm:$0xff]
    %v62 = vld [vmem:[%s3 + $0x48] sm:$0xff]
    %v63 = vld [vmem:[%s3 + $0x50] sm:$0xff]
    %v64 = vld [vmem:[%s3 + $0x58] sm:$0xff]
    %v65 = vld [vmem:[%s3 + $0x60] sm:$0xff]
    %v66 = vld [vmem:[%s3 + $0x68] sm:$0xff]
    %v67 = vld [vmem:[%s3 + $0x70] sm:$0xff]
    %v68 = vld [vmem:[%s3 + $0x78] sm:$0xff]
    %v69 = vld [vmem:[%s3 + $0x80] sm:$0xff]
    %v70 = vld [vmem:[%s3 + $0x88] sm:$0xff]
    %v71 = vld [vmem:[%s3 + $0x90] sm:$0xff]
    %v72 = vld [vmem:[%s3 + $0x98] sm:$0xff]
    %v73 = vld [vmem:[%s3 + $0xa0] sm:$0xff]
    %v74 = vld [vmem:[%s3 + $0xa8] sm:$0xff]
    %v75 = vld [vmem:[%s3 + $0xb0] sm:$0xff]
    %v76 = vld [vmem:[%s3 + $0xb8] sm:$0xff]
    %v77 = vld [vmem:[%s3 + $0xc0] sm:$0xff]
    %v78 = vld [vmem:[%s3 + $0xc8] sm:$0xff]
    %v79 = vld [vmem:[%s3 + $0xd0] sm:$0xff]
    %v80 = vld [vmem:[%s3 + $0xd8] sm:$0xff]
    %v81 = vld [vmem:[%s3 + $0xe0] sm:$0xff]
    %v82 = vld [vmem:[%s3 + $0xe8] sm:$0xff]
    %v83 = vld [vmem:[%s3 + $0xf0] sm:$0xff]
    %v84 = vld [vmem:[%s3 + $0xf8] sm:$0xff]
    %v117 = vunpack.c.l.b16 %v53
    %v118 = vunpack.c.h.b16 %v53
    %v119 = vunpack.c.l.b16 %v54
    %v120 = vunpack.c.h.b16 %v54
    %v121 = vunpack.c.l.b16 %v55
    %v122 = vunpack.c.h.b16 %v55
    %v123 = vunpack.c.l.b16 %v56
    %v124 = vunpack.c.h.b16 %v56
    %v125 = vunpack.c.l.b16 %v57
    %v126 = vunpack.c.h.b16 %v57
    %v127 = vunpack.c.l.b16 %v58
    %v128 = vunpack.c.h.b16 %v58
    %v129 = vunpack.c.l.b16 %v59
    %v130 = vunpack.c.h.b16 %v59
    %v131 = vunpack.c.l.b16 %v60
    %v132 = vunpack.c.h.b16 %v60
    %v133 = vunpack.c.l.b16 %v61
    %v134 = vunpack.c.h.b16 %v61
    %v135 = vunpack.c.l.b16 %v62
    %v136 = vunpack.c.h.b16 %v62
    %v137 = vunpack.c.l.b16 %v63
    %v138 = vunpack.c.h.b16 %v63
    %v139 = vunpack.c.l.b16 %v64
    %v140 = vunpack.c.h.b16 %v64
    %v141 = vunpack.c.l.b16 %v65
    %v142 = vunpack.c.h.b16 %v65
    %v143 = vunpack.c.l.b16 %v66
    %v144 = vunpack.c.h.b16 %v66
    %v145 = vunpack.c.l.b16 %v67
    %v146 = vunpack.c.h.b16 %v67
    %v147 = vunpack.c.l.b16 %v68
    %v148 = vunpack.c.h.b16 %v68
    %v149 = vunpack.c.l.b16 %v69
    %v150 = vunpack.c.h.b16 %v69
    %v151 = vunpack.c.l.b16 %v70
    %v152 = vunpack.c.h.b16 %v70
    %v153 = vunpack.c.l.b16 %v71
    %v154 = vunpack.c.h.b16 %v71
    %v155 = vunpack.c.l.b16 %v72
    %v156 = vunpack.c.h.b16 %v72
    %v157 = vunpack.c.l.b16 %v73
    %v158 = vunpack.c.h.b16 %v73
    %v159 = vunpack.c.l.b16 %v74
    %v160 = vunpack.c.h.b16 %v74
    %v161 = vunpack.c.l.b16 %v75
    %v162 = vunpack.c.h.b16 %v75
    %v163 = vunpack.c.l.b16 %v76
    %v164 = vunpack.c.h.b16 %v76
    %v165 = vunpack.c.l.b16 %v77
    %v166 = vunpack.c.h.b16 %v77
    %v167 = vunpack.c.l.b16 %v78
    %v168 = vunpack.c.h.b16 %v78
    %v169 = vunpack.c.l.b16 %v79
    %v170 = vunpack.c.h.b16 %v79
    %v171 = vunpack.c.l.b16 %v80
    %v172 = vunpack.c.h.b16 %v80
    %v173 = vunpack.c.l.b16 %v81
    %v174 = vunpack.c.h.b16 %v81
    %v175 = vunpack.c.l.b16 %v82
    %v176 = vunpack.c.h.b16 %v82
    %v177 = vunpack.c.l.b16 %v83
    %v178 = vunpack.c.h.b16 %v83
    %v179 = vunpack.c.l.b16 %v84
    %v180 = vunpack.c.h.b16 %v84
    %v181 = vpack.c.b16 %v121, %v117
    %v182 = vpack.c.b16 %v122, %v118
    %v183 = vpack.c.b16 %v123, %v119
    %v184 = vpack.c.b16 %v124, %v120
    %v185 = vpack.c.b16 %v129, %v125
    %v186 = vpack.c.b16 %v130, %v126
    %v187 = vpack.c.b16 %v131, %v127
    %v188 = vpack.c.b16 %v132, %v128
    %v189 = vpack.c.b16 %v137, %v133
    %v190 = vpack.c.b16 %v138, %v134
    %v191 = vpack.c.b16 %v139, %v135
    %v192 = vpack.c.b16 %v140, %v136
    %v193 = vpack.c.b16 %v145, %v141
    %v194 = vpack.c.b16 %v146, %v142
    %v195 = vpack.c.b16 %v147, %v143
    %v196 = vpack.c.b16 %v148, %v144
    %v197 = vpack.c.b16 %v153, %v149
    %v198 = vpack.c.b16 %v154, %v150
    %v199 = vpack.c.b16 %v155, %v151
    %v200 = vpack.c.b16 %v156, %v152
    %v201 = vpack.c.b16 %v161, %v157
    %v202 = vpack.c.b16 %v162, %v158
    %v203 = vpack.c.b16 %v163, %v159
    %v204 = vpack.c.b16 %v164, %v160
    %v205 = vpack.c.b16 %v169, %v165
    %v206 = vpack.c.b16 %v170, %v166
    %v207 = vpack.c.b16 %v171, %v167
    %v208 = vpack.c.b16 %v172, %v168
    %v209 = vpack.c.b16 %v177, %v173
    %v210 = vpack.c.b16 %v178, %v174
    %v211 = vpack.c.b16 %v179, %v175
    %v212 = vpack.c.b16 %v180, %v176
    %245 = vmatprep.subr.bf16.mxu0 %v182
    %246 = vmatpush1.bf16.msra.mxu0 %v181
    %247 = vmatprep.subr.bf16.mxu0 %v186
    %248 = vmatpush1.bf16.msra.mxu0 %v185
    %249 = vmatprep.subr.bf16.mxu0 %v190
    %250 = vmatpush1.bf16.msra.mxu0 %v189
    %251 = vmatprep.subr.bf16.mxu0 %v194
    %252 = vmatpush1.bf16.msra.mxu0 %v193
    %253 = vmatprep.subr.bf16.mxu0 %v198
    %254 = vmatpush1.bf16.msra.mxu0 %v197
    %255 = vmatprep.subr.bf16.mxu0 %v202
    %256 = vmatpush1.bf16.msra.mxu0 %v201
    %257 = vmatprep.subr.bf16.mxu0 %v206
    %258 = vmatpush1.bf16.msra.mxu0 %v205
    %259 = vmatprep.subr.bf16.mxu0 %v210
    %260 = vmatpush1.bf16.msra.mxu0 %v209
    %261 = vmatprep.subr.bf16.mxu0 0
    %262 = vmatpush1.bf16.msra.mxu0 0
    %263 = vmatprep.subr.bf16.mxu0 0
    %264 = vmatpush1.bf16.msra.mxu0 0
    %265 = vmatprep.subr.bf16.mxu0 0
    %266 = vmatpush1.bf16.msra.mxu0 0
    %267 = vmatprep.subr.bf16.mxu0 0
    %268 = vmatpush1.bf16.msra.mxu0 0
    %269 = vmatprep.subr.bf16.mxu0 0
    %270 = vmatpush1.bf16.msra.mxu0 0
    %271 = vmatprep.subr.bf16.mxu0 0
    %272 = vmatpush1.bf16.msra.mxu0 0
    %273 = vmatprep.subr.bf16.mxu0 0
    %274 = vmatpush1.bf16.msra.mxu0 0
    %275 = vmatprep.subr.bf16.mxu0 0
    %276 = vmatpush1.bf16.msra.mxu0 0
    %277 = vmatprep.mubr.bf16.mxu0 0
    %278 = vmatmul.mubr.bf16.gmra.mrb[0].mxu0 %v52
    %v279 = vpop.f32.mrb[0].mxu0
    %v280 = vadd.f32 0.0, %v279
    %v281 = vpop.f32.mrb[0].mxu0
    %v282 = vadd.f32 0.0, %v281
    %v283 = vpop.f32.mrb[0].mxu0
    %v284 = vpop.f32.mrb[0].mxu0
    %285 = vdwg.mxu0
    %286 = vmatprep.subr.bf16.mxu0 %v184
    %287 = vmatpush1.bf16.msra.mxu0 %v183
    %288 = vmatprep.subr.bf16.mxu0 %v188
    %289 = vmatpush1.bf16.msra.mxu0 %v187
    %290 = vmatprep.subr.bf16.mxu0 %v192
    %291 = vmatpush1.bf16.msra.mxu0 %v191
    %292 = vmatprep.subr.bf16.mxu0 %v196
    %293 = vmatpush1.bf16.msra.mxu0 %v195
    %294 = vmatprep.subr.bf16.mxu0 %v200
    %295 = vmatpush1.bf16.msra.mxu0 %v199
    %296 = vmatprep.subr.bf16.mxu0 %v204
    %297 = vmatpush1.bf16.msra.mxu0 %v203
    %298 = vmatprep.subr.bf16.mxu0 %v208
    %299 = vmatpush1.bf16.msra.mxu0 %v207
    %300 = vmatprep.subr.bf16.mxu0 %v212
    %301 = vmatpush1.bf16.msra.mxu0 %v211
    %302 = vmatprep.subr.bf16.mxu0 0
    %303 = vmatpush1.bf16.msra.mxu0 0
    %304 = vmatprep.subr.bf16.mxu0 0
    %305 = vmatpush1.bf16.msra.mxu0 0
    %306 = vmatprep.subr.bf16.mxu0 0
    %307 = vmatpush1.bf16.msra.mxu0 0
    %308 = vmatprep.subr.bf16.mxu0 0
    %309 = vmatpush1.bf16.msra.mxu0 0
    %310 = vmatprep.subr.bf16.mxu0 0
    %311 = vmatpush1.bf16.msra.mxu0 0
    %312 = vmatprep.subr.bf16.mxu0 0
    %313 = vmatpush1.bf16.msra.mxu0 0
    %314 = vmatprep.subr.bf16.mxu0 0
    %315 = vmatpush1.bf16.msra.mxu0 0
    %316 = vmatprep.subr.bf16.mxu0 0
    %317 = vmatpush1.bf16.msra.mxu0 0
    %318 = vmatprep.mubr.bf16.mxu0 0
    %319 = vmatmul.mubr.bf16.gmra.mrb[0].mxu0 %v52
    %v320 = vpop.f32.mrb[0].mxu0
    %v321 = vadd.f32 0.0, %v320
    %v322 = vpop.f32.mrb[0].mxu0
    %v323 = vadd.f32 0.0, %v322
    %v324 = vpop.f32.mrb[0].mxu0
    %v325 = vpop.f32.mrb[0].mxu0
    %326 = vdwg.mxu0
    %v331 = vunpack.c.l.b16 %v47
    %v332 = vunpack.c.h.b16 %v47
    %v333 = vunpack.c.l.b16 %v48
    %v334 = vunpack.c.h.b16 %v48
    %v335 = vunpack.c.l.b16 %v49
    %v336 = vunpack.c.h.b16 %v49
    %v337 = vunpack.c.l.b16 %v50
    %v338 = vunpack.c.h.b16 %v50
    %v339 = vpack.c.b16 %v335, %v331
    %v340 = vpack.c.b16 %v336, %v332
    %v341 = vpack.c.b16 %v337, %v333
    %v342 = vpack.c.b16 %v338, %v334
    %vm347 = vcmask 130048
    %v349 = vsel %vm347, %v46, 0
    %351 = vmatprep.subr.bf16.mxu0 %v340
    %352 = vmatpush1.bf16.msra.mxu0 %v339
    %353 = vmatprep.subr.bf16.mxu0 0
    %354 = vmatpush1.bf16.msra.mxu0 0
    %355 = vmatprep.subr.bf16.mxu0 0
    %356 = vmatpush1.bf16.msra.mxu0 0
    %357 = vmatprep.subr.bf16.mxu0 0
    %358 = vmatpush1.bf16.msra.mxu0 0
    %359 = vmatprep.subr.bf16.mxu0 0
    %360 = vmatpush1.bf16.msra.mxu0 0
    %361 = vmatprep.subr.bf16.mxu0 0
    %362 = vmatpush1.bf16.msra.mxu0 0
    %363 = vmatprep.subr.bf16.mxu0 0
    %364 = vmatpush1.bf16.msra.mxu0 0
    %365 = vmatprep.subr.bf16.mxu0 0
    %366 = vmatpush1.bf16.msra.mxu0 0
    %367 = vmatprep.subr.bf16.mxu0 0
    %368 = vmatpush1.bf16.msra.mxu0 0
    %369 = vmatprep.subr.bf16.mxu0 0
    %370 = vmatpush1.bf16.msra.mxu0 0
    %371 = vmatprep.subr.bf16.mxu0 0
    %372 = vmatpush1.bf16.msra.mxu0 0
    %373 = vmatprep.subr.bf16.mxu0 0
    %374 = vmatpush1.bf16.msra.mxu0 0
    %375 = vmatprep.subr.bf16.mxu0 0
    %376 = vmatpush1.bf16.msra.mxu0 0
    %377 = vmatprep.subr.bf16.mxu0 0
    %378 = vmatpush1.bf16.msra.mxu0 0
    %379 = vmatprep.subr.bf16.mxu0 0
    %380 = vmatpush1.bf16.msra.mxu0 0
    %381 = vmatprep.subr.bf16.mxu0 0
    %382 = vmatpush1.bf16.msra.mxu0 0
    %383 = vmatprep.mubr.bf16.mxu0 0
    %384 = vmatmul.mubr.bf16.gmra.mrb[0].mxu0 %v349
    %v385 = vpop.f32.mrb[0].mxu0
    %v386 = vadd.f32 %v280, %v385
    %v387 = vpop.f32.mrb[0].mxu0
    %v388 = vadd.f32 %v282, %v387
    %v389 = vpop.f32.mrb[0].mxu0
    %v390 = vpop.f32.mrb[0].mxu0
    %391 = vdwg.mxu0
    %392 = vmatprep.subr.bf16.mxu0 %v342
    %393 = vmatpush1.bf16.msra.mxu0 %v341
    %394 = vmatprep.subr.bf16.mxu0 0
    %395 = vmatpush1.bf16.msra.mxu0 0
    %396 = vmatprep.subr.bf16.mxu0 0
    %397 = vmatpush1.bf16.msra.mxu0 0
    %398 = vmatprep.subr.bf16.mxu0 0
    %399 = vmatpush1.bf16.msra.mxu0 0
    %400 = vmatprep.subr.bf16.mxu0 0
    %401 = vmatpush1.bf16.msra.mxu0 0
    %402 = vmatprep.subr.bf16.mxu0 0
    %403 = vmatpush1.bf16.msra.mxu0 0
    %404 = vmatprep.subr.bf16.mxu0 0
    %405 = vmatpush1.bf16.msra.mxu0 0
    %406 = vmatprep.subr.bf16.mxu0 0
    %407 = vmatpush1.bf16.msra.mxu0 0
    %408 = vmatprep.subr.bf16.mxu0 0
    %409 = vmatpush1.bf16.msra.mxu0 0
    %410 = vmatprep.subr.bf16.mxu0 0
    %411 = vmatpush1.bf16.msra.mxu0 0
    %412 = vmatprep.subr.bf16.mxu0 0
    %413 = vmatpush1.bf16.msra.mxu0 0
    %414 = vmatprep.subr.bf16.mxu0 0
    %415 = vmatpush1.bf16.msra.mxu0 0
    %416 = vmatprep.subr.bf16.mxu0 0
    %417 = vmatpush1.bf16.msra.mxu0 0
    %418 = vmatprep.subr.bf16.mxu0 0
    %419 = vmatpush1.bf16.msra.mxu0 0
    %420 = vmatprep.subr.bf16.mxu0 0
    %421 = vmatpush1.bf16.msra.mxu0 0
    %422 = vmatprep.subr.bf16.mxu0 0
    %423 = vmatpush1.bf16.msra.mxu0 0
    %424 = vmatprep.mubr.bf16.mxu0 0
    %425 = vmatmul.mubr.bf16.gmra.mrb[0].mxu0 %v349
    %v426 = vpop.f32.mrb[0].mxu0
    %v427 = vadd.f32 %v321, %v426
    %v428 = vpop.f32.mrb[0].mxu0
    %v429 = vadd.f32 %v323, %v428
    %v430 = vpop.f32.mrb[0].mxu0
    %v431 = vpop.f32.mrb[0].mxu0
    %432 = vdwg.mxu0
    %v434 = vlaneseq
    %v435 = vshrl.u32 %v434, 7
    %v436 = vsub.s32 0, %v435
    %v437 = vrot.slane %v36, %v436
    %v438 = vlaneseq
    %v439 = vshrl.u32 %v438, 7
    %v440 = vsub.s32 1, %v439
    %v441 = vrot.slane %v36, %v440
    %v442 = vlaneseq
    %v443 = vshrl.u32 %v442, 7
    %v444 = vsub.s32 2, %v443
    %v445 = vrot.slane %v36, %v444
    %v446 = vlaneseq
    %v447 = vshrl.u32 %v446, 7
    %v448 = vsub.s32 3, %v447
    %v449 = vrot.slane %v36, %v448
    %v454 = vadd.f32 %v386, %v437
    %v455 = vadd.f32 %v388, %v441
    %v456 = vadd.f32 %v427, %v445
    %v457 = vadd.f32 %v429, %v449
    %v458 = vxor.u32 %v454, 2147483648
    %v459 = vmul.f32 %v458, 1.442695
    %v460 = vpow.pop %v459
    %v461 = vadd.f32 %v460, 1.0
    %v462 = vrcp.pop %v461
    %v463 = vmul.f32 1.0, %v462
    %v464 = vxor.u32 %v455, 2147483648
    %v465 = vmul.f32 %v464, 1.442695
    %v466 = vpow.pop %v465
    %v467 = vadd.f32 %v466, 1.0
    %v468 = vrcp.pop %v467
    %v469 = vmul.f32 1.0, %v468
    %v470 = vtanh.pop %v456
    %v471 = vxor.u32 %v457, 2147483648
    %v472 = vmul.f32 %v471, 1.442695
    %v473 = vpow.pop %v472
    %v474 = vadd.f32 %v473, 1.0
    %v475 = vrcp.pop %v474
    %v476 = vmul.f32 1.0, %v475
    %v477 = vld [vmem:[#allocation3] sm:$0xff]
    %v478 = vmul.f32 %v469, %v477
    %v479 = vmul.f32 %v463, %v470
    %v480 = vadd.f32 %v478, %v479
    %v481 = vtanh.pop %v480
    %v482 = vmul.f32 %v476, %v481
    %483 = vst [vmem:[#allocation3] sm:$0xff] %v480
    %484 = vst [vmem:[#allocation2] sm:$0xff] %v482
    %v485 = vsel %vm44, 1, 0
    %486 = vset.pattern.permute.xlu0 0
    %487 = vperm.xlu0 %486, %v485
    %v488 = vpop.permute.xlu0 %487
    %vm489 = vcmp.eq.s32.totalorder %v488, 1
    %v490 = vsel %vm489, %v482, 0.0
    %491 = vst [vmem:[%s6] sm:$0xff] %v490
    %s492 = scalar_lea.vmem %s1, 8
    %v493 = vld [vmem:[%s492] sm:$0xff]
    %v494 = vpack.c.bf16 %v493, %v493
    %v495 = vld [vmem:[%s2] sm:$0xff]
    %v496 = vld [vmem:[%s2 + $0x8] sm:$0xff]
    %v497 = vld [vmem:[%s2 + $0x10] sm:$0xff]
    %v498 = vld [vmem:[%s2 + $0x18] sm:$0xff]
    %v499 = vld [vmem:[#allocation2] sm:$0xff]
    %v500 = vpack.c.bf16 %v499, %v499
    %v501 = vld [vmem:[%s3] sm:$0xff]
    %v502 = vld [vmem:[%s3 + $0x8] sm:$0xff]
    %v503 = vld [vmem:[%s3 + $0x10] sm:$0xff]
    %v504 = vld [vmem:[%s3 + $0x18] sm:$0xff]
    %v505 = vld [vmem:[%s3 + $0x20] sm:$0xff]
    %v506 = vld [vmem:[%s3 + $0x28] sm:$0xff]
    %v507 = vld [vmem:[%s3 + $0x30] sm:$0xff]
    %v508 = vld [vmem:[%s3 + $0x38] sm:$0xff]
    %v509 = vld [vmem:[%s3 + $0x40] sm:$0xff]
    %v510 = vld [vmem:[%s3 + $0x48] sm:$0xff]
    %v511 = vld [vmem:[%s3 + $0x50] sm:$0xff]
    %v512 = vld [vmem:[%s3 + $0x58] sm:$0xff]
    %v513 = vld [vmem:[%s3 + $0x60] sm:$0xff]
    %v514 = vld [vmem:[%s3 + $0x68] sm:$0xff]
    %v515 = vld [vmem:[%s3 + $0x70] sm:$0xff]
    %v516 = vld [vmem:[%s3 + $0x78] sm:$0xff]
    %v517 = vld [vmem:[%s3 + $0x80] sm:$0xff]
    %v518 = vld [vmem:[%s3 + $0x88] sm:$0xff]
    %v519 = vld [vmem:[%s3 + $0x90] sm:$0xff]
    %v520 = vld [vmem:[%s3 + $0x98] sm:$0xff]
    %v521 = vld [vmem:[%s3 + $0xa0] sm:$0xff]
    %v522 = vld [vmem:[%s3 + $0xa8] sm:$0xff]
    %v523 = vld [vmem:[%s3 + $0xb0] sm:$0xff]
    %v524 = vld [vmem:[%s3 + $0xb8] sm:$0xff]
    %v525 = vld [vmem:[%s3 + $0xc0] sm:$0xff]
    %v526 = vld [vmem:[%s3 + $0xc8] sm:$0xff]
    %v527 = vld [vmem:[%s3 + $0xd0] sm:$0xff]
    %v528 = vld [vmem:[%s3 + $0xd8] sm:$0xff]
    %v529 = vld [vmem:[%s3 + $0xe0] sm:$0xff]
    %v530 = vld [vmem:[%s3 + $0xe8] sm:$0xff]
    %v531 = vld [vmem:[%s3 + $0xf0] sm:$0xff]
    %v532 = vld [vmem:[%s3 + $0xf8] sm:$0xff]
    %v565 = vunpack.c.l.b16 %v501
    %v566 = vunpack.c.h.b16 %v501
    %v567 = vunpack.c.l.b16 %v502
    %v568 = vunpack.c.h.b16 %v502
    %v569 = vunpack.c.l.b16 %v503
    %v570 = vunpack.c.h.b16 %v503
    %v571 = vunpack.c.l.b16 %v504
    %v572 = vunpack.c.h.b16 %v504
    %v573 = vunpack.c.l.b16 %v505
    %v574 = vunpack.c.h.b16 %v505
    %v575 = vunpack.c.l.b16 %v506
    %v576 = vunpack.c.h.b16 %v506
    %v577 = vunpack.c.l.b16 %v507
    %v578 = vunpack.c.h.b16 %v507
    %v579 = vunpack.c.l.b16 %v508
    %v580 = vunpack.c.h.b16 %v508
    %v581 = vunpack.c.l.b16 %v509
    %v582 = vunpack.c.h.b16 %v509
    %v583 = vunpack.c.l.b16 %v510
    %v584 = vunpack.c.h.b16 %v510
    %v585 = vunpack.c.l.b16 %v511
    %v586 = vunpack.c.h.b16 %v511
    %v587 = vunpack.c.l.b16 %v512
    %v588 = vunpack.c.h.b16 %v512
    %v589 = vunpack.c.l.b16 %v513
    %v590 = vunpack.c.h.b16 %v513
    %v591 = vunpack.c.l.b16 %v514
    %v592 = vunpack.c.h.b16 %v514
    %v593 = vunpack.c.l.b16 %v515
    %v594 = vunpack.c.h.b16 %v515
    %v595 = vunpack.c.l.b16 %v516
    %v596 = vunpack.c.h.b16 %v516
    %v597 = vunpack.c.l.b16 %v517
    %v598 = vunpack.c.h.b16 %v517
    %v599 = vunpack.c.l.b16 %v518
    %v600 = vunpack.c.h.b16 %v518
    %v601 = vunpack.c.l.b16 %v519
    %v602 = vunpack.c.h.b16 %v519
    %v603 = vunpack.c.l.b16 %v520
    %v604 = vunpack.c.h.b16 %v520
    %v605 = vunpack.c.l.b16 %v521
    %v606 = vunpack.c.h.b16 %v521
    %v607 = vunpack.c.l.b16 %v522
    %v608 = vunpack.c.h.b16 %v522
    %v609 = vunpack.c.l.b16 %v523
    %v610 = vunpack.c.h.b16 %v523
    %v611 = vunpack.c.l.b16 %v524
    %v612 = vunpack.c.h.b16 %v524
    %v613 = vunpack.c.l.b16 %v525
    %v614 = vunpack.c.h.b16 %v525
    %v615 = vunpack.c.l.b16 %v526
    %v616 = vunpack.c.h.b16 %v526
    %v617 = vunpack.c.l.b16 %v527
    %v618 = vunpack.c.h.b16 %v527
    %v619 = vunpack.c.l.b16 %v528
    %v620 = vunpack.c.h.b16 %v528
    %v621 = vunpack.c.l.b16 %v529
    %v622 = vunpack.c.h.b16 %v529
    %v623 = vunpack.c.l.b16 %v530
    %v624 = vunpack.c.h.b16 %v530
    %v625 = vunpack.c.l.b16 %v531
    %v626 = vunpack.c.h.b16 %v531
    %v627 = vunpack.c.l.b16 %v532
    %v628 = vunpack.c.h.b16 %v532
    %v629 = vpack.c.b16 %v569, %v565
    %v630 = vpack.c.b16 %v570, %v566
    %v631 = vpack.c.b16 %v571, %v567
    %v632 = vpack.c.b16 %v572, %v568
    %v633 = vpack.c.b16 %v577, %v573
    %v634 = vpack.c.b16 %v578, %v574
    %v635 = vpack.c.b16 %v579, %v575
    %v636 = vpack.c.b16 %v580, %v576
    %v637 = vpack.c.b16 %v585, %v581
    %v638 = vpack.c.b16 %v586, %v582
    %v639 = vpack.c.b16 %v587, %v583
    %v640 = vpack.c.b16 %v588, %v584
    %v641 = vpack.c.b16 %v593, %v589
    %v642 = vpack.c.b16 %v594, %v590
    %v643 = vpack.c.b16 %v595, %v591
    %v644 = vpack.c.b16 %v596, %v592
    %v645 = vpack.c.b16 %v601, %v597
    %v646 = vpack.c.b16 %v602, %v598
    %v647 = vpack.c.b16 %v603, %v599
    %v648 = vpack.c.b16 %v604, %v600
    %v649 = vpack.c.b16 %v609, %v605
    %v650 = vpack.c.b16 %v610, %v606
    %v651 = vpack.c.b16 %v611, %v607
    %v652 = vpack.c.b16 %v612, %v608
    %v653 = vpack.c.b16 %v617, %v613
    %v654 = vpack.c.b16 %v618, %v614
    %v655 = vpack.c.b16 %v619, %v615
    %v656 = vpack.c.b16 %v620, %v616
    %v657 = vpack.c.b16 %v625, %v621
    %v658 = vpack.c.b16 %v626, %v622
    %v659 = vpack.c.b16 %v627, %v623
    %v660 = vpack.c.b16 %v628, %v624
    %693 = vmatprep.subr.bf16.mxu0 %v630
    %694 = vmatpush1.bf16.msra.mxu0 %v629
    %695 = vmatprep.subr.bf16.mxu0 %v634
    %696 = vmatpush1.bf16.msra.mxu0 %v633
    %697 = vmatprep.subr.bf16.mxu0 %v638
    %698 = vmatpush1.bf16.msra.mxu0 %v637
    %699 = vmatprep.subr.bf16.mxu0 %v642
    %700 = vmatpush1.bf16.msra.mxu0 %v641
    %701 = vmatprep.subr.bf16.mxu0 %v646
    %702 = vmatpush1.bf16.msra.mxu0 %v645
    %703 = vmatprep.subr.bf16.mxu0 %v650
    %704 = vmatpush1.bf16.msra.mxu0 %v649
    %705 = vmatprep.subr.bf16.mxu0 %v654
    %706 = vmatpush1.bf16.msra.mxu0 %v653
    %707 = vmatprep.subr.bf16.mxu0 %v658
    %708 = vmatpush1.bf16.msra.mxu0 %v657
    %709 = vmatprep.subr.bf16.mxu0 0
    %710 = vmatpush1.bf16.msra.mxu0 0
    %711 = vmatprep.subr.bf16.mxu0 0
    %712 = vmatpush1.bf16.msra.mxu0 0
    %713 = vmatprep.subr.bf16.mxu0 0
    %714 = vmatpush1.bf16.msra.mxu0 0
    %715 = vmatprep.subr.bf16.mxu0 0
    %716 = vmatpush1.bf16.msra.mxu0 0
    %717 = vmatprep.subr.bf16.mxu0 0
    %718 = vmatpush1.bf16.msra.mxu0 0
    %719 = vmatprep.subr.bf16.mxu0 0
    %720 = vmatpush1.bf16.msra.mxu0 0
    %721 = vmatprep.subr.bf16.mxu0 0
    %722 = vmatpush1.bf16.msra.mxu0 0
    %723 = vmatprep.subr.bf16.mxu0 0
    %724 = vmatpush1.bf16.msra.mxu0 0
    %725 = vmatprep.mubr.bf16.mxu0 0
    %726 = vmatmul.mubr.bf16.gmra.mrb[0].mxu0 %v500
    %v727 = vpop.f32.mrb[0].mxu0
    %v728 = vadd.f32 0.0, %v727
    %v729 = vpop.f32.mrb[0].mxu0
    %v730 = vadd.f32 0.0, %v729
    %v731 = vpop.f32.mrb[0].mxu0
    %v732 = vpop.f32.mrb[0].mxu0
    %733 = vdwg.mxu0
    %734 = vmatprep.subr.bf16.mxu0 %v632
    %735 = vmatpush1.bf16.msra.mxu0 %v631
    %736 = vmatprep.subr.bf16.mxu0 %v636
    %737 = vmatpush1.bf16.msra.mxu0 %v635
    %738 = vmatprep.subr.bf16.mxu0 %v640
    %739 = vmatpush1.bf16.msra.mxu0 %v639
    %740 = vmatprep.subr.bf16.mxu0 %v644
    %741 = vmatpush1.bf16.msra.mxu0 %v643
    %742 = vmatprep.subr.bf16.mxu0 %v648
    %743 = vmatpush1.bf16.msra.mxu0 %v647
    %744 = vmatprep.subr.bf16.mxu0 %v652
    %745 = vmatpush1.bf16.msra.mxu0 %v651
    %746 = vmatprep.subr.bf16.mxu0 %v656
    %747 = vmatpush1.bf16.msra.mxu0 %v655
    %748 = vmatprep.subr.bf16.mxu0 %v660
    %749 = vmatpush1.bf16.msra.mxu0 %v659
    %750 = vmatprep.subr.bf16.mxu0 0
    %751 = vmatpush1.bf16.msra.mxu0 0
    %752 = vmatprep.subr.bf16.mxu0 0
    %753 = vmatpush1.bf16.msra.mxu0 0
    %754 = vmatprep.subr.bf16.mxu0 0
    %755 = vmatpush1.bf16.msra.mxu0 0
    %756 = vmatprep.subr.bf16.mxu0 0
    %757 = vmatpush1.bf16.msra.mxu0 0
    %758 = vmatprep.subr.bf16.mxu0 0
    %759 = vmatpush1.bf16.msra.mxu0 0
    %760 = vmatprep.subr.bf16.mxu0 0
    %761 = vmatpush1.bf16.msra.mxu0 0
    %762 = vmatprep.subr.bf16.mxu0 0
    %763 = vmatpush1.bf16.msra.mxu0 0
    %764 = vmatprep.subr.bf16.mxu0 0
    %765 = vmatpush1.bf16.msra.mxu0 0
    %766 = vmatprep.mubr.bf16.mxu0 0
    %767 = vmatmul.mubr.bf16.gmra.mrb[0].mxu0 %v500
    %v768 = vpop.f32.mrb[0].mxu0
    %v769 = vadd.f32 0.0, %v768
    %v770 = vpop.f32.mrb[0].mxu0
    %v771 = vadd.f32 0.0, %v770
    %v772 = vpop.f32.mrb[0].mxu0
    %v773 = vpop.f32.mrb[0].mxu0
    %774 = vdwg.mxu0
    %v779 = vunpack.c.l.b16 %v495
    %v780 = vunpack.c.h.b16 %v495
    %v781 = vunpack.c.l.b16 %v496
    %v782 = vunpack.c.h.b16 %v496
    %v783 = vunpack.c.l.b16 %v497
    %v784 = vunpack.c.h.b16 %v497
    %v785 = vunpack.c.l.b16 %v498
    %v786 = vunpack.c.h.b16 %v498
    %v787 = vpack.c.b16 %v783, %v779
    %v788 = vpack.c.b16 %v784, %v780
    %v789 = vpack.c.b16 %v785, %v781
    %v790 = vpack.c.b16 %v786, %v782
    %v796 = vsel %vm347, %v494, 0
    %798 = vmatprep.subr.bf16.mxu0 %v788
    %799 = vmatpush1.bf16.msra.mxu0 %v787
    %800 = vmatprep.subr.bf16.mxu0 0
    %801 = vmatpush1.bf16.msra.mxu0 0
    %802 = vmatprep.subr.bf16.mxu0 0
    %803 = vmatpush1.bf16.msra.mxu0 0
    %804 = vmatprep.subr.bf16.mxu0 0
    %805 = vmatpush1.bf16.msra.mxu0 0
    %806 = vmatprep.subr.bf16.mxu0 0
    %807 = vmatpush1.bf16.msra.mxu0 0
    %808 = vmatprep.subr.bf16.mxu0 0
    %809 = vmatpush1.bf16.msra.mxu0 0
    %810 = vmatprep.subr.bf16.mxu0 0
    %811 = vmatpush1.bf16.msra.mxu0 0
    %812 = vmatprep.subr.bf16.mxu0 0
    %813 = vmatpush1.bf16.msra.mxu0 0
    %814 = vmatprep.subr.bf16.mxu0 0
    %815 = vmatpush1.bf16.msra.mxu0 0
    %816 = vmatprep.subr.bf16.mxu0 0
    %817 = vmatpush1.bf16.msra.mxu0 0
    %818 = vmatprep.subr.bf16.mxu0 0
    %819 = vmatpush1.bf16.msra.mxu0 0
    %820 = vmatprep.subr.bf16.mxu0 0
    %821 = vmatpush1.bf16.msra.mxu0 0
    %822 = vmatprep.subr.bf16.mxu0 0
    %823 = vmatpush1.bf16.msra.mxu0 0
    %824 = vmatprep.subr.bf16.mxu0 0
    %825 = vmatpush1.bf16.msra.mxu0 0
    %826 = vmatprep.subr.bf16.mxu0 0
    %827 = vmatpush1.bf16.msra.mxu0 0
    %828 = vmatprep.subr.bf16.mxu0 0
    %829 = vmatpush1.bf16.msra.mxu0 0
    %830 = vmatprep.mubr.bf16.mxu0 0
    %831 = vmatmul.mubr.bf16.gmra.mrb[0].mxu0 %v796
    %v832 = vpop.f32.mrb[0].mxu0
    %v833 = vadd.f32 %v728, %v832
    %v834 = vpop.f32.mrb[0].mxu0
    %v835 = vadd.f32 %v730, %v834
    %v836 = vpop.f32.mrb[0].mxu0
    %v837 = vpop.f32.mrb[0].mxu0
    %838 = vdwg.mxu0
    %839 = vmatprep.subr.bf16.mxu0 %v790
    %840 = vmatpush1.bf16.msra.mxu0 %v789
    %841 = vmatprep.subr.bf16.mxu0 0
    %842 = vmatpush1.bf16.msra.mxu0 0
    %843 = vmatprep.subr.bf16.mxu0 0
    %844 = vmatpush1.bf16.msra.mxu0 0
    %845 = vmatprep.subr.bf16.mxu0 0
    %846 = vmatpush1.bf16.msra.mxu0 0
    %847 = vmatprep.subr.bf16.mxu0 0
    %848 = vmatpush1.bf16.msra.mxu0 0
    %849 = vmatprep.subr.bf16.mxu0 0
    %850 = vmatpush1.bf16.msra.mxu0 0
    %851 = vmatprep.subr.bf16.mxu0 0
    %852 = vmatpush1.bf16.msra.mxu0 0
    %853 = vmatprep.subr.bf16.mxu0 0
    %854 = vmatpush1.bf16.msra.mxu0 0
    %855 = vmatprep.subr.bf16.mxu0 0
    %856 = vmatpush1.bf16.msra.mxu0 0
    %857 = vmatprep.subr.bf16.mxu0 0
    %858 = vmatpush1.bf16.msra.mxu0 0
    %859 = vmatprep.subr.bf16.mxu0 0
    %860 = vmatpush1.bf16.msra.mxu0 0
    %861 = vmatprep.subr.bf16.mxu0 0
    %862 = vmatpush1.bf16.msra.mxu0 0
    %863 = vmatprep.subr.bf16.mxu0 0
    %864 = vmatpush1.bf16.msra.mxu0 0
    %865 = vmatprep.subr.bf16.mxu0 0
    %866 = vmatpush1.bf16.msra.mxu0 0
    %867 = vmatprep.subr.bf16.mxu0 0
    %868 = vmatpush1.bf16.msra.mxu0 0
    %869 = vmatprep.subr.bf16.mxu0 0
    %870 = vmatpush1.bf16.msra.mxu0 0
    %871 = vmatprep.mubr.bf16.mxu0 0
    %872 = vmatmul.mubr.bf16.gmra.mrb[0].mxu0 %v796
    %v873 = vpop.f32.mrb[0].mxu0
    %v874 = vadd.f32 %v769, %v873
    %v875 = vpop.f32.mrb[0].mxu0
    %v876 = vadd.f32 %v771, %v875
    %v877 = vpop.f32.mrb[0].mxu0
    %v878 = vpop.f32.mrb[0].mxu0
    %879 = vdwg.mxu0
    %v880 = vadd.f32 %v833, %v437
    %v881 = vadd.f32 %v835, %v441
    %v882 = vadd.f32 %v874, %v445
    %v883 = vadd.f32 %v876, %v449
    %v884 = vxor.u32 %v880, 2147483648
    %v885 = vmul.f32 %v884, 1.442695
    %v886 = vpow.pop %v885
    %v887 = vadd.f32 %v886, 1.0
    %v888 = vrcp.pop %v887
    %v889 = vmul.f32 1.0, %v888
    %v890 = vxor.u32 %v881, 2147483648
    %v891 = vmul.f32 %v890, 1.442695
    %v892 = vpow.pop %v891
    %v893 = vadd.f32 %v892, 1.0
    %v894 = vrcp.pop %v893
    %v895 = vmul.f32 1.0, %v894
    %v896 = vtanh.pop %v882
    %v897 = vxor.u32 %v883, 2147483648
    %v898 = vmul.f32 %v897, 1.442695
    %v899 = vpow.pop %v898
    %v900 = vadd.f32 %v899, 1.0
    %v901 = vrcp.pop %v900
    %v902 = vmul.f32 1.0, %v901
    %v903 = vld [vmem:[#allocation3] sm:$0xff]
    %v904 = vmul.f32 %v895, %v903
    %v905 = vmul.f32 %v889, %v896
    %v906 = vadd.f32 %v904, %v905
    %v907 = vtanh.pop %v906
    %v908 = vmul.f32 %v902, %v907
    %909 = vst [vmem:[#allocation3] sm:$0xff] %v906
    %910 = vst [vmem:[#allocation2] sm:$0xff] %v908
    %911 = vset.pattern.permute.xlu0 1
    %912 = vperm.xlu0 %911, %v485
    %v913 = vpop.permute.xlu0 %912
    %vm914 = vcmp.eq.s32.totalorder %v913, 1
    %v915 = vsel %vm914, %v908, 0.0
    %s916 = scalar_lea.vmem %s6, 8
    %917 = vst [vmem:[%s916] sm:$0xff] %v915
    %s918 = scalar_lea.vmem %s1, 16
    %v919 = vld [vmem:[%s918] sm:$0xff]
    %v920 = vpack.c.bf16 %v919, %v919
    %v921 = vld [vmem:[%s2] sm:$0xff]
    %v922 = vld [vmem:[%s2 + $0x8] sm:$0xff]
    %v923 = vld [vmem:[%s2 + $0x10] sm:$0xff]
    %v924 = vld [vmem:[%s2 + $0x18] sm:$0xff]
    %v925 = vld [vmem:[#allocation2] sm:$0xff]
    %v926 = vpack.c.bf16 %v925, %v925
    %v927 = vld [vmem:[%s3] sm:$0xff]
    %v928 = vld [vmem:[%s3 + $0x8] sm:$0xff]
    %v929 = vld [vmem:[%s3 + $0x10] sm:$0xff]
    %v930 = vld [vmem:[%s3 + $0x18] sm:$0xff]
    %v931 = vld [vmem:[%s3 + $0x20] sm:$0xff]
    %v932 = vld [vmem:[%s3 + $0x28] sm:$0xff]
    %v933 = vld [vmem:[%s3 + $0x30] sm:$0xff]
    %v934 = vld [vmem:[%s3 + $0x38] sm:$0xff]
    %v935 = vld [vmem:[%s3 + $0x40] sm:$0xff]
    %v936 = vld [vmem:[%s3 + $0x48] sm:$0xff]
    %v937 = vld [vmem:[%s3 + $0x50] sm:$0xff]
    %v938 = vld [vmem:[%s3 + $0x58] sm:$0xff]
    %v939 = vld [vmem:[%s3 + $0x60] sm:$0xff]
    %v940 = vld [vmem:[%s3 + $0x68] sm:$0xff]
    %v941 = vld [vmem:[%s3 + $0x70] sm:$0xff]
    %v942 = vld [vmem:[%s3 + $0x78] sm:$0xff]
    %v943 = vld [vmem:[%s3 + $0x80] sm:$0xff]
    %v944 = vld [vmem:[%s3 + $0x88] sm:$0xff]
    %v945 = vld [vmem:[%s3 + $0x90] sm:$0xff]
    %v946 = vld [vmem:[%s3 + $0x98] sm:$0xff]
    %v947 = vld [vmem:[%s3 + $0xa0] sm:$0xff]
    %v948 = vld [vmem:[%s3 + $0xa8] sm:$0xff]
    %v949 = vld [vmem:[%s3 + $0xb0] sm:$0xff]
    %v950 = vld [vmem:[%s3 + $0xb8] sm:$0xff]
    %v951 = vld [vmem:[%s3 + $0xc0] sm:$0xff]
    %v952 = vld [vmem:[%s3 + $0xc8] sm:$0xff]
    %v953 = vld [vmem:[%s3 + $0xd0] sm:$0xff]
    %v954 = vld [vmem:[%s3 + $0xd8] sm:$0xff]
    %v955 = vld [vmem:[%s3 + $0xe0] sm:$0xff]
    %v956 = vld [vmem:[%s3 + $0xe8] sm:$0xff]
    %v957 = vld [vmem:[%s3 + $0xf0] sm:$0xff]
    %v958 = vld [vmem:[%s3 + $0xf8] sm:$0xff]
    %v991 = vunpack.c.l.b16 %v927
    %v992 = vunpack.c.h.b16 %v927
    %v993 = vunpack.c.l.b16 %v928
    %v994 = vunpack.c.h.b16 %v928
    %v995 = vunpack.c.l.b16 %v929
    %v996 = vunpack.c.h.b16 %v929
    %v997 = vunpack.c.l.b16 %v930
    %v998 = vunpack.c.h.b16 %v930
    %v999 = vunpack.c.l.b16 %v931
    %v1000 = vunpack.c.h.b16 %v931
    %v1001 = vunpack.c.l.b16 %v932
    %v1002 = vunpack.c.h.b16 %v932
    %v1003 = vunpack.c.l.b16 %v933
    %v1004 = vunpack.c.h.b16 %v933
    %v1005 = vunpack.c.l.b16 %v934
    %v1006 = vunpack.c.h.b16 %v934
    %v1007 = vunpack.c.l.b16 %v935
    %v1008 = vunpack.c.h.b16 %v935
    %v1009 = vunpack.c.l.b16 %v936
    %v1010 = vunpack.c.h.b16 %v936
    %v1011 = vunpack.c.l.b16 %v937
    %v1012 = vunpack.c.h.b16 %v937
    %v1013 = vunpack.c.l.b16 %v938
    %v1014 = vunpack.c.h.b16 %v938
    %v1015 = vunpack.c.l.b16 %v939
    %v1016 = vunpack.c.h.b16 %v939
    %v1017 = vunpack.c.l.b16 %v940
    %v1018 = vunpack.c.h.b16 %v940
    %v1019 = vunpack.c.l.b16 %v941
    %v1020 = vunpack.c.h.b16 %v941
    %v1021 = vunpack.c.l.b16 %v942
    %v1022 = vunpack.c.h.b16 %v942
    %v1023 = vunpack.c.l.b16 %v943
    %v1024 = vunpack.c.h.b16 %v943
    %v1025 = vunpack.c.l.b16 %v944
    %v1026 = vunpack.c.h.b16 %v944
    %v1027 = vunpack.c.l.b16 %v945
    %v1028 = vunpack.c.h.b16 %v945
    %v1029 = vunpack.c.l.b16 %v946
    %v1030 = vunpack.c.h.b16 %v946
    %v1031 = vunpack.c.l.b16 %v947
    %v1032 = vunpack.c.h.b16 %v947
    %v1033 = vunpack.c.l.b16 %v948
    %v1034 = vunpack.c.h.b16 %v948
    %v1035 = vunpack.c.l.b16 %v949
    %v1036 = vunpack.c.h.b16 %v949
    %v1037 = vunpack.c.l.b16 %v950
    %v1038 = vunpack.c.h.b16 %v950
    %v1039 = vunpack.c.l.b16 %v951
    %v1040 = vunpack.c.h.b16 %v951
    %v1041 = vunpack.c.l.b16 %v952
    %v1042 = vunpack.c.h.b16 %v952
    %v1043 = vunpack.c.l.b16 %v953
    %v1044 = vunpack.c.h.b16 %v953
    %v1045 = vunpack.c.l.b16 %v954
    %v1046 = vunpack.c.h.b16 %v954
    %v1047 = vunpack.c.l.b16 %v955
    %v1048 = vunpack.c.h.b16 %v955
    %v1049 = vunpack.c.l.b16 %v956
    %v1050 = vunpack.c.h.b16 %v956
    %v1051 = vunpack.c.l.b16 %v957
    %v1052 = vunpack.c.h.b16 %v957
    %v1053 = vunpack.c.l.b16 %v958
    %v1054 = vunpack.c.h.b16 %v958
    %v1055 = vpack.c.b16 %v995, %v991
    %v1056 = vpack.c.b16 %v996, %v992
    %v1057 = vpack.c.b16 %v997, %v993
    %v1058 = vpack.c.b16 %v998, %v994
    %v1059 = vpack.c.b16 %v1003, %v999
    %v1060 = vpack.c.b16 %v1004, %v1000
    %v1061 = vpack.c.b16 %v1005, %v1001
    %v1062 = vpack.c.b16 %v1006, %v1002
    %v1063 = vpack.c.b16 %v1011, %v1007
    %v1064 = vpack.c.b16 %v1012, %v1008
    %v1065 = vpack.c.b16 %v1013, %v1009
    %v1066 = vpack.c.b16 %v1014, %v1010
    %v1067 = vpack.c.b16 %v1019, %v1015
    %v1068 = vpack.c.b16 %v1020, %v1016
    %v1069 = vpack.c.b16 %v1021, %v1017
    %v1070 = vpack.c.b16 %v1022, %v1018
    %v1071 = vpack.c.b16 %v1027, %v1023
    %v1072 = vpack.c.b16 %v1028, %v1024
    %v1073 = vpack.c.b16 %v1029, %v1025
    %v1074 = vpack.c.b16 %v1030, %v1026
    %v1075 = vpack.c.b16 %v1035, %v1031
    %v1076 = vpack.c.b16 %v1036, %v1032
    %v1077 = vpack.c.b16 %v1037, %v1033
    %v1078 = vpack.c.b16 %v1038, %v1034
    %v1079 = vpack.c.b16 %v1043, %v1039
    %v1080 = vpack.c.b16 %v1044, %v1040
    %v1081 = vpack.c.b16 %v1045, %v1041
    %v1082 = vpack.c.b16 %v1046, %v1042
    %v1083 = vpack.c.b16 %v1051, %v1047
    %v1084 = vpack.c.b16 %v1052, %v1048
    %v1085 = vpack.c.b16 %v1053, %v1049
    %v1086 = vpack.c.b16 %v1054, %v1050
    %1119 = vmatprep.subr.bf16.mxu0 %v1056
    %1120 = vmatpush1.bf16.msra.mxu0 %v1055
    %1121 = vmatprep.subr.bf16.mxu0 %v1060
    %1122 = vmatpush1.bf16.msra.mxu0 %v1059
    %1123 = vmatprep.subr.bf16.mxu0 %v1064
    %1124 = vmatpush1.bf16.msra.mxu0 %v1063
    %1125 = vmatprep.subr.bf16.mxu0 %v1068
    %1126 = vmatpush1.bf16.msra.mxu0 %v1067
    %1127 = vmatprep.subr.bf16.mxu0 %v1072
    %1128 = vmatpush1.bf16.msra.mxu0 %v1071
    %1129 = vmatprep.subr.bf16.mxu0 %v1076
    %1130 = vmatpush1.bf16.msra.mxu0 %v1075
    %1131 = vmatprep.subr.bf16.mxu0 %v1080
    %1132 = vmatpush1.bf16.msra.mxu0 %v1079
    %1133 = vmatprep.subr.bf16.mxu0 %v1084
    %1134 = vmatpush1.bf16.msra.mxu0 %v1083
    %1135 = vmatprep.subr.bf16.mxu0 0
    %1136 = vmatpush1.bf16.msra.mxu0 0
    %1137 = vmatprep.subr.bf16.mxu0 0
    %1138 = vmatpush1.bf16.msra.mxu0 0
    %1139 = vmatprep.subr.bf16.mxu0 0
    %1140 = vmatpush1.bf16.msra.mxu0 0
    %1141 = vmatprep.subr.bf16.mxu0 0
    %1142 = vmatpush1.bf16.msra.mxu0 0
    %1143 = vmatprep.subr.bf16.mxu0 0
    %1144 = vmatpush1.bf16.msra.mxu0 0
    %1145 = vmatprep.subr.bf16.mxu0 0
    %1146 = vmatpush1.bf16.msra.mxu0 0
    %1147 = vmatprep.subr.bf16.mxu0 0
    %1148 = vmatpush1.bf16.msra.mxu0 0
    %1149 = vmatprep.subr.bf16.mxu0 0
    %1150 = vmatpush1.bf16.msra.mxu0 0
    %1151 = vmatprep.mubr.bf16.mxu0 0
    %1152 = vmatmul.mubr.bf16.gmra.mrb[0].mxu0 %v926
    %v1153 = vpop.f32.mrb[0].mxu0
    %v1154 = vadd.f32 0.0, %v1153
    %v1155 = vpop.f32.mrb[0].mxu0
    %v1156 = vadd.f32 0.0, %v1155
    %v1157 = vpop.f32.mrb[0].mxu0
    %v1158 = vpop.f32.mrb[0].mxu0
    %1159 = vdwg.mxu0
    %1160 = vmatprep.subr.bf16.mxu0 %v1058
    %1161 = vmatpush1.bf16.msra.mxu0 %v1057
    %1162 = vmatprep.subr.bf16.mxu0 %v1062
    %1163 = vmatpush1.bf16.msra.mxu0 %v1061
    %1164 = vmatprep.subr.bf16.mxu0 %v1066
    %1165 = vmatpush1.bf16.msra.mxu0 %v1065
    %1166 = vmatprep.subr.bf16.mxu0 %v1070
    %1167 = vmatpush1.bf16.msra.mxu0 %v1069
    %1168 = vmatprep.subr.bf16.mxu0 %v1074
    %1169 = vmatpush1.bf16.msra.mxu0 %v1073
    %1170 = vmatprep.subr.bf16.mxu0 %v1078
    %1171 = vmatpush1.bf16.msra.mxu0 %v1077
    %1172 = vmatprep.subr.bf16.mxu0 %v1082
    %1173 = vmatpush1.bf16.msra.mxu0 %v1081
    %1174 = vmatprep.subr.bf16.mxu0 %v1086
    %1175 = vmatpush1.bf16.msra.mxu0 %v1085
    %1176 = vmatprep.subr.bf16.mxu0 0
    %1177 = vmatpush1.bf16.msra.mxu0 0
    %1178 = vmatprep.subr.bf16.mxu0 0
    %1179 = vmatpush1.bf16.msra.mxu0 0
    %1180 = vmatprep.subr.bf16.mxu0 0
    %1181 = vmatpush1.bf16.msra.mxu0 0
    %1182 = vmatprep.subr.bf16.mxu0 0
    %1183 = vmatpush1.bf16.msra.mxu0 0
    %1184 = vmatprep.subr.bf16.mxu0 0
    %1185 = vmatpush1.bf16.msra.mxu0 0
    %1186 = vmatprep.subr.bf16.mxu0 0
    %1187 = vmatpush1.bf16.msra.mxu0 0
    %1188 = vmatprep.subr.bf16.mxu0 0
    %1189 = vmatpush1.bf16.msra.mxu0 0
    %1190 = vmatprep.subr.bf16.mxu0 0
    %1191 = vmatpush1.bf16.msra.mxu0 0
    %1192 = vmatprep.mubr.bf16.mxu0 0
    %1193 = vmatmul.mubr.bf16.gmra.mrb[0].mxu0 %v926
    %v1194 = vpop.f32.mrb[0].mxu0
    %v1195 = vadd.f32 0.0, %v1194
    %v1196 = vpop.f32.mrb[0].mxu0
    %v1197 = vadd.f32 0.0, %v1196
    %v1198 = vpop.f32.mrb[0].mxu0
    %v1199 = vpop.f32.mrb[0].mxu0
    %1200 = vdwg.mxu0
    %v1205 = vunpack.c.l.b16 %v921
    %v1206 = vunpack.c.h.b16 %v921
    %v1207 = vunpack.c.l.b16 %v922
    %v1208 = vunpack.c.h.b16 %v922
    %v1209 = vunpack.c.l.b16 %v923
    %v1210 = vunpack.c.h.b16 %v923
    %v1211 = vunpack.c.l.b16 %v924
    %v1212 = vunpack.c.h.b16 %v924
    %v1213 = vpack.c.b16 %v1209, %v1205
    %v1214 = vpack.c.b16 %v1210, %v1206
    %v1215 = vpack.c.b16 %v1211, %v1207
    %v1216 = vpack.c.b16 %v1212, %v1208
    %v1222 = vsel %vm347, %v920, 0
    %1224 = vmatprep.subr.bf16.mxu0 %v1214
    %1225 = vmatpush1.bf16.msra.mxu0 %v1213
    %1226 = vmatprep.subr.bf16.mxu0 0
    %1227 = vmatpush1.bf16.msra.mxu0 0
    %1228 = vmatprep.subr.bf16.mxu0 0
    %1229 = vmatpush1.bf16.msra.mxu0 0
    %1230 = vmatprep.subr.bf16.mxu0 0
    %1231 = vmatpush1.bf16.msra.mxu0 0
    %1232 = vmatprep.subr.bf16.mxu0 0
    %1233 = vmatpush1.bf16.msra.mxu0 0
    %1234 = vmatprep.subr.bf16.mxu0 0
    %1235 = vmatpush1.bf16.msra.mxu0 0
    %1236 = vmatprep.subr.bf16.mxu0 0
    %1237 = vmatpush1.bf16.msra.mxu0 0
    %1238 = vmatprep.subr.bf16.mxu0 0
    %1239 = vmatpush1.bf16.msra.mxu0 0
    %1240 = vmatprep.subr.bf16.mxu0 0
    %1241 = vmatpush1.bf16.msra.mxu0 0
    %1242 = vmatprep.subr.bf16.mxu0 0
    %1243 = vmatpush1.bf16.msra.mxu0 0
    %1244 = vmatprep.subr.bf16.mxu0 0
    %1245 = vmatpush1.bf16.msra.mxu0 0
    %1246 = vmatprep.subr.bf16.mxu0 0
    %1247 = vmatpush1.bf16.msra.mxu0 0
    %1248 = vmatprep.subr.bf16.mxu0 0
    %1249 = vmatpush1.bf16.msra.mxu0 0
    %1250 = vmatprep.subr.bf16.mxu0 0
    %1251 = vmatpush1.bf16.msra.mxu0 0
    %1252 = vmatprep.subr.bf16.mxu0 0
    %1253 = vmatpush1.bf16.msra.mxu0 0
    %1254 = vmatprep.subr.bf16.mxu0 0
    %1255 = vmatpush1.bf16.msra.mxu0 0
    %1256 = vmatprep.mubr.bf16.mxu0 0
    %1257 = vmatmul.mubr.bf16.gmra.mrb[0].mxu0 %v1222
    %v1258 = vpop.f32.mrb[0].mxu0
    %v1259 = vadd.f32 %v1154, %v1258
    %v1260 = vpop.f32.mrb[0].mxu0
    %v1261 = vadd.f32 %v1156, %v1260
    %v1262 = vpop.f32.mrb[0].mxu0
    %v1263 = vpop.f32.mrb[0].mxu0
    %1264 = vdwg.mxu0
    %1265 = vmatprep.subr.bf16.mxu0 %v1216
    %1266 = vmatpush1.bf16.msra.mxu0 %v1215
    %1267 = vmatprep.subr.bf16.mxu0 0
    %1268 = vmatpush1.bf16.msra.mxu0 0
    %1269 = vmatprep.subr.bf16.mxu0 0
    %1270 = vmatpush1.bf16.msra.mxu0 0
    %1271 = vmatprep.subr.bf16.mxu0 0
    %1272 = vmatpush1.bf16.msra.mxu0 0
    %1273 = vmatprep.subr.bf16.mxu0 0
    %1274 = vmatpush1.bf16.msra.mxu0 0
    %1275 = vmatprep.subr.bf16.mxu0 0
    %1276 = vmatpush1.bf16.msra.mxu0 0
    %1277 = vmatprep.subr.bf16.mxu0 0
    %1278 = vmatpush1.bf16.msra.mxu0 0
    %1279 = vmatprep.subr.bf16.mxu0 0
    %1280 = vmatpush1.bf16.msra.mxu0 0
    %1281 = vmatprep.subr.bf16.mxu0 0
    %1282 = vmatpush1.bf16.msra.mxu0 0
    %1283 = vmatprep.subr.bf16.mxu0 0
    %1284 = vmatpush1.bf16.msra.mxu0 0
    %1285 = vmatprep.subr.bf16.mxu0 0
    %1286 = vmatpush1.bf16.msra.mxu0 0
    %1287 = vmatprep.subr.bf16.mxu0 0
    %1288 = vmatpush1.bf16.msra.mxu0 0
    %1289 = vmatprep.subr.bf16.mxu0 0
    %1290 = vmatpush1.bf16.msra.mxu0 0
    %1291 = vmatprep.subr.bf16.mxu0 0
    %1292 = vmatpush1.bf16.msra.mxu0 0
    %1293 = vmatprep.subr.bf16.mxu0 0
    %1294 = vmatpush1.bf16.msra.mxu0 0
    %1295 = vmatprep.subr.bf16.mxu0 0
    %1296 = vmatpush1.bf16.msra.mxu0 0
    %1297 = vmatprep.mubr.bf16.mxu0 0
    %1298 = vmatmul.mubr.bf16.gmra.mrb[0].mxu0 %v1222
    %v1299 = vpop.f32.mrb[0].mxu0
    %v1300 = vadd.f32 %v1195, %v1299
    %v1301 = vpop.f32.mrb[0].mxu0
    %v1302 = vadd.f32 %v1197, %v1301
    %v1303 = vpop.f32.mrb[0].mxu0
    %v1304 = vpop.f32.mrb[0].mxu0
    %1305 = vdwg.mxu0
    %v1306 = vadd.f32 %v1259, %v437
    %v1307 = vadd.f32 %v1261, %v441
    %v1308 = vadd.f32 %v1300, %v445
    %v1309 = vadd.f32 %v1302, %v449
    %v1310 = vxor.u32 %v1306, 2147483648
    %v1311 = vmul.f32 %v1310, 1.442695
    %v1312 = vpow.pop %v1311
    %v1313 = vadd.f32 %v1312, 1.0
    %v1314 = vrcp.pop %v1313
    %v1315 = vmul.f32 1.0, %v1314
    %v1316 = vxor.u32 %v1307, 2147483648
    %v1317 = vmul.f32 %v1316, 1.442695
    %v1318 = vpow.pop %v1317
    %v1319 = vadd.f32 %v1318, 1.0
    %v1320 = vrcp.pop %v1319
    %v1321 = vmul.f32 1.0, %v1320
    %v1322 = vtanh.pop %v1308
    %v1323 = vxor.u32 %v1309, 2147483648
    %v1324 = vmul.f32 %v1323, 1.442695
    %v1325 = vpow.pop %v1324
    %v1326 = vadd.f32 %v1325, 1.0
    %v1327 = vrcp.pop %v1326
    %v1328 = vmul.f32 1.0, %v1327
    %v1329 = vld [vmem:[#allocation3] sm:$0xff]
    %v1330 = vmul.f32 %v1321, %v1329
    %v1331 = vmul.f32 %v1315, %v1322
    %v1332 = vadd.f32 %v1330, %v1331
    %v1333 = vtanh.pop %v1332
    %v1334 = vmul.f32 %v1328, %v1333
    %1335 = vst [vmem:[#allocation3] sm:$0xff] %v1332
    %1336 = vst [vmem:[#allocation2] sm:$0xff] %v1334
    %1337 = vset.pattern.permute.xlu0 2
    %1338 = vperm.xlu0 %1337, %v485
    %v1339 = vpop.permute.xlu0 %1338
    %vm1340 = vcmp.eq.s32.totalorder %v1339, 1
    %v1341 = vsel %vm1340, %v1334, 0.0
    %s1342 = scalar_lea.vmem %s6, 16
    %1343 = vst [vmem:[%s1342] sm:$0xff] %v1341
    %s1344 = scalar_lea.vmem %s1, 24
    %v1345 = vld [vmem:[%s1344] sm:$0xff]
    %v1346 = vpack.c.bf16 %v1345, %v1345
    %v1347 = vld [vmem:[%s2] sm:$0xff]
    %v1348 = vld [vmem:[%s2 + $0x8] sm:$0xff]
    %v1349 = vld [vmem:[%s2 + $0x10] sm:$0xff]
    %v1350 = vld [vmem:[%s2 + $0x18] sm:$0xff]
    %v1351 = vld [vmem:[#allocation2] sm:$0xff]
    %v1352 = vpack.c.bf16 %v1351, %v1351
    %v1353 = vld [vmem:[%s3] sm:$0xff]
    %v1354 = vld [vmem:[%s3 + $0x8] sm:$0xff]
    %v1355 = vld [vmem:[%s3 + $0x10] sm:$0xff]
    %v1356 = vld [vmem:[%s3 + $0x18] sm:$0xff]
    %v1357 = vld [vmem:[%s3 + $0x20] sm:$0xff]
    %v1358 = vld [vmem:[%s3 + $0x28] sm:$0xff]
    %v1359 = vld [vmem:[%s3 + $0x30] sm:$0xff]
    %v1360 = vld [vmem:[%s3 + $0x38] sm:$0xff]
    %v1361 = vld [vmem:[%s3 + $0x40] sm:$0xff]
    %v1362 = vld [vmem:[%s3 + $0x48] sm:$0xff]
    %v1363 = vld [vmem:[%s3 + $0x50] sm:$0xff]
    %v1364 = vld [vmem:[%s3 + $0x58] sm:$0xff]
    %v1365 = vld [vmem:[%s3 + $0x60] sm:$0xff]
    %v1366 = vld [vmem:[%s3 + $0x68] sm:$0xff]
    %v1367 = vld [vmem:[%s3 + $0x70] sm:$0xff]
    %v1368 = vld [vmem:[%s3 + $0x78] sm:$0xff]
    %v1369 = vld [vmem:[%s3 + $0x80] sm:$0xff]
    %v1370 = vld [vmem:[%s3 + $0x88] sm:$0xff]
    %v1371 = vld [vmem:[%s3 + $0x90] sm:$0xff]
    %v1372 = vld [vmem:[%s3 + $0x98] sm:$0xff]
    %v1373 = vld [vmem:[%s3 + $0xa0] sm:$0xff]
    %v1374 = vld [vmem:[%s3 + $0xa8] sm:$0xff]
    %v1375 = vld [vmem:[%s3 + $0xb0] sm:$0xff]
    %v1376 = vld [vmem:[%s3 + $0xb8] sm:$0xff]
    %v1377 = vld [vmem:[%s3 + $0xc0] sm:$0xff]
    %v1378 = vld [vmem:[%s3 + $0xc8] sm:$0xff]
    %v1379 = vld [vmem:[%s3 + $0xd0] sm:$0xff]
    %v1380 = vld [vmem:[%s3 + $0xd8] sm:$0xff]
    %v1381 = vld [vmem:[%s3 + $0xe0] sm:$0xff]
    %v1382 = vld [vmem:[%s3 + $0xe8] sm:$0xff]
    %v1383 = vld [vmem:[%s3 + $0xf0] sm:$0xff]
    %v1384 = vld [vmem:[%s3 + $0xf8] sm:$0xff]
    %v1417 = vunpack.c.l.b16 %v1353
    %v1418 = vunpack.c.h.b16 %v1353
    %v1419 = vunpack.c.l.b16 %v1354
    %v1420 = vunpack.c.h.b16 %v1354
    %v1421 = vunpack.c.l.b16 %v1355
    %v1422 = vunpack.c.h.b16 %v1355
    %v1423 = vunpack.c.l.b16 %v1356
    %v1424 = vunpack.c.h.b16 %v1356
    %v1425 = vunpack.c.l.b16 %v1357
    %v1426 = vunpack.c.h.b16 %v1357
    %v1427 = vunpack.c.l.b16 %v1358
    %v1428 = vunpack.c.h.b16 %v1358
    %v1429 = vunpack.c.l.b16 %v1359
    %v1430 = vunpack.c.h.b16 %v1359
    %v1431 = vunpack.c.l.b16 %v1360
    %v1432 = vunpack.c.h.b16 %v1360
    %v1433 = vunpack.c.l.b16 %v1361
    %v1434 = vunpack.c.h.b16 %v1361
    %v1435 = vunpack.c.l.b16 %v1362
    %v1436 = vunpack.c.h.b16 %v1362
    %v1437 = vunpack.c.l.b16 %v1363
    %v1438 = vunpack.c.h.b16 %v1363
    %v1439 = vunpack.c.l.b16 %v1364
    %v1440 = vunpack.c.h.b16 %v1364
    %v1441 = vunpack.c.l.b16 %v1365
    %v1442 = vunpack.c.h.b16 %v1365
    %v1443 = vunpack.c.l.b16 %v1366
    %v1444 = vunpack.c.h.b16 %v1366
    %v1445 = vunpack.c.l.b16 %v1367
    %v1446 = vunpack.c.h.b16 %v1367
    %v1447 = vunpack.c.l.b16 %v1368
    %v1448 = vunpack.c.h.b16 %v1368
    %v1449 = vunpack.c.l.b16 %v1369
    %v1450 = vunpack.c.h.b16 %v1369
    %v1451 = vunpack.c.l.b16 %v1370
    %v1452 = vunpack.c.h.b16 %v1370
    %v1453 = vunpack.c.l.b16 %v1371
    %v1454 = vunpack.c.h.b16 %v1371
    %v1455 = vunpack.c.l.b16 %v1372
    %v1456 = vunpack.c.h.b16 %v1372
    %v1457 = vunpack.c.l.b16 %v1373
    %v1458 = vunpack.c.h.b16 %v1373
    %v1459 = vunpack.c.l.b16 %v1374
    %v1460 = vunpack.c.h.b16 %v1374
    %v1461 = vunpack.c.l.b16 %v1375
    %v1462 = vunpack.c.h.b16 %v1375
    %v1463 = vunpack.c.l.b16 %v1376
    %v1464 = vunpack.c.h.b16 %v1376
    %v1465 = vunpack.c.l.b16 %v1377
    %v1466 = vunpack.c.h.b16 %v1377
    %v1467 = vunpack.c.l.b16 %v1378
    %v1468 = vunpack.c.h.b16 %v1378
    %v1469 = vunpack.c.l.b16 %v1379
    %v1470 = vunpack.c.h.b16 %v1379
    %v1471 = vunpack.c.l.b16 %v1380
    %v1472 = vunpack.c.h.b16 %v1380
    %v1473 = vunpack.c.l.b16 %v1381
    %v1474 = vunpack.c.h.b16 %v1381
    %v1475 = vunpack.c.l.b16 %v1382
    %v1476 = vunpack.c.h.b16 %v1382
    %v1477 = vunpack.c.l.b16 %v1383
    %v1478 = vunpack.c.h.b16 %v1383
    %v1479 = vunpack.c.l.b16 %v1384
    %v1480 = vunpack.c.h.b16 %v1384
    %v1481 = vpack.c.b16 %v1421, %v1417
    %v1482 = vpack.c.b16 %v1422, %v1418
    %v1483 = vpack.c.b16 %v1423, %v1419
    %v1484 = vpack.c.b16 %v1424, %v1420
    %v1485 = vpack.c.b16 %v1429, %v1425
    %v1486 = vpack.c.b16 %v1430, %v1426
    %v1487 = vpack.c.b16 %v1431, %v1427
    %v1488 = vpack.c.b16 %v1432, %v1428
    %v1489 = vpack.c.b16 %v1437, %v1433
    %v1490 = vpack.c.b16 %v1438, %v1434
    %v1491 = vpack.c.b16 %v1439, %v1435
    %v1492 = vpack.c.b16 %v1440, %v1436
    %v1493 = vpack.c.b16 %v1445, %v1441
    %v1494 = vpack.c.b16 %v1446, %v1442
    %v1495 = vpack.c.b16 %v1447, %v1443
    %v1496 = vpack.c.b16 %v1448, %v1444
    %v1497 = vpack.c.b16 %v1453, %v1449
    %v1498 = vpack.c.b16 %v1454, %v1450
    %v1499 = vpack.c.b16 %v1455, %v1451
    %v1500 = vpack.c.b16 %v1456, %v1452
    %v1501 = vpack.c.b16 %v1461, %v1457
    %v1502 = vpack.c.b16 %v1462, %v1458
    %v1503 = vpack.c.b16 %v1463, %v1459
    %v1504 = vpack.c.b16 %v1464, %v1460
    %v1505 = vpack.c.b16 %v1469, %v1465
    %v1506 = vpack.c.b16 %v1470, %v1466
    %v1507 = vpack.c.b16 %v1471, %v1467
    %v1508 = vpack.c.b16 %v1472, %v1468
    %v1509 = vpack.c.b16 %v1477, %v1473
    %v1510 = vpack.c.b16 %v1478, %v1474
    %v1511 = vpack.c.b16 %v1479, %v1475
    %v1512 = vpack.c.b16 %v1480, %v1476
    %1545 = vmatprep.subr.bf16.mxu0 %v1482
    %1546 = vmatpush1.bf16.msra.mxu0 %v1481
    %1547 = vmatprep.subr.bf16.mxu0 %v1486
    %1548 = vmatpush1.bf16.msra.mxu0 %v1485
    %1549 = vmatprep.subr.bf16.mxu0 %v1490
    %1550 = vmatpush1.bf16.msra.mxu0 %v1489
    %1551 = vmatprep.subr.bf16.mxu0 %v1494
    %1552 = vmatpush1.bf16.msra.mxu0 %v1493
    %1553 = vmatprep.subr.bf16.mxu0 %v1498
    %1554 = vmatpush1.bf16.msra.mxu0 %v1497
    %1555 = vmatprep.subr.bf16.mxu0 %v1502
    %1556 = vmatpush1.bf16.msra.mxu0 %v1501
    %1557 = vmatprep.subr.bf16.mxu0 %v1506
    %1558 = vmatpush1.bf16.msra.mxu0 %v1505
    %1559 = vmatprep.subr.bf16.mxu0 %v1510
    %1560 = vmatpush1.bf16.msra.mxu0 %v1509
    %1561 = vmatprep.subr.bf16.mxu0 0
    %1562 = vmatpush1.bf16.msra.mxu0 0
    %1563 = vmatprep.subr.bf16.mxu0 0
    %1564 = vmatpush1.bf16.msra.mxu0 0
    %1565 = vmatprep.subr.bf16.mxu0 0
    %1566 = vmatpush1.bf16.msra.mxu0 0
    %1567 = vmatprep.subr.bf16.mxu0 0
    %1568 = vmatpush1.bf16.msra.mxu0 0
    %1569 = vmatprep.subr.bf16.mxu0 0
    %1570 = vmatpush1.bf16.msra.mxu0 0
    %1571 = vmatprep.subr.bf16.mxu0 0
    %1572 = vmatpush1.bf16.msra.mxu0 0
    %1573 = vmatprep.subr.bf16.mxu0 0
    %1574 = vmatpush1.bf16.msra.mxu0 0
    %1575 = vmatprep.subr.bf16.mxu0 0
    %1576 = vmatpush1.bf16.msra.mxu0 0
    %1577 = vmatprep.mubr.bf16.mxu0 0
    %1578 = vmatmul.mubr.bf16.gmra.mrb[0].mxu0 %v1352
    %v1579 = vpop.f32.mrb[0].mxu0
    %v1580 = vadd.f32 0.0, %v1579
    %v1581 = vpop.f32.mrb[0].mxu0
    %v1582 = vadd.f32 0.0, %v1581
    %v1583 = vpop.f32.mrb[0].mxu0
    %v1584 = vpop.f32.mrb[0].mxu0
    %1585 = vdwg.mxu0
    %1586 = vmatprep.subr.bf16.mxu0 %v1484
    %1587 = vmatpush1.bf16.msra.mxu0 %v1483
    %1588 = vmatprep.subr.bf16.mxu0 %v1488
    %1589 = vmatpush1.bf16.msra.mxu0 %v1487
    %1590 = vmatprep.subr.bf16.mxu0 %v1492
    %1591 = vmatpush1.bf16.msra.mxu0 %v1491
    %1592 = vmatprep.subr.bf16.mxu0 %v1496
    %1593 = vmatpush1.bf16.msra.mxu0 %v1495
    %1594 = vmatprep.subr.bf16.mxu0 %v1500
    %1595 = vmatpush1.bf16.msra.mxu0 %v1499
    %1596 = vmatprep.subr.bf16.mxu0 %v1504
    %1597 = vmatpush1.bf16.msra.mxu0 %v1503
    %1598 = vmatprep.subr.bf16.mxu0 %v1508
    %1599 = vmatpush1.bf16.msra.mxu0 %v1507
    %1600 = vmatprep.subr.bf16.mxu0 %v1512
    %1601 = vmatpush1.bf16.msra.mxu0 %v1511
    %1602 = vmatprep.subr.bf16.mxu0 0
    %1603 = vmatpush1.bf16.msra.mxu0 0
    %1604 = vmatprep.subr.bf16.mxu0 0
    %1605 = vmatpush1.bf16.msra.mxu0 0
    %1606 = vmatprep.subr.bf16.mxu0 0
    %1607 = vmatpush1.bf16.msra.mxu0 0
    %1608 = vmatprep.subr.bf16.mxu0 0
    %1609 = vmatpush1.bf16.msra.mxu0 0
    %1610 = vmatprep.subr.bf16.mxu0 0
    %1611 = vmatpush1.bf16.msra.mxu0 0
    %1612 = vmatprep.subr.bf16.mxu0 0
    %1613 = vmatpush1.bf16.msra.mxu0 0
    %1614 = vmatprep.subr.bf16.mxu0 0
    %1615 = vmatpush1.bf16.msra.mxu0 0
    %1616 = vmatprep.subr.bf16.mxu0 0
    %1617 = vmatpush1.bf16.msra.mxu0 0
    %1618 = vmatprep.mubr.bf16.mxu0 0
    %1619 = vmatmul.mubr.bf16.gmra.mrb[0].mxu0 %v1352
    %v1620 = vpop.f32.mrb[0].mxu0
    %v1621 = vadd.f32 0.0, %v1620
    %v1622 = vpop.f32.mrb[0].mxu0
    %v1623 = vadd.f32 0.0, %v1622
    %v1624 = vpop.f32.mrb[0].mxu0
    %v1625 = vpop.f32.mrb[0].mxu0
    %1626 = vdwg.mxu0
    %v1631 = vunpack.c.l.b16 %v1347
    %v1632 = vunpack.c.h.b16 %v1347
    %v1633 = vunpack.c.l.b16 %v1348
    %v1634 = vunpack.c.h.b16 %v1348
    %v1635 = vunpack.c.l.b16 %v1349
    %v1636 = vunpack.c.h.b16 %v1349
    %v1637 = vunpack.c.l.b16 %v1350
    %v1638 = vunpack.c.h.b16 %v1350
    %v1639 = vpack.c.b16 %v1635, %v1631
    %v1640 = vpack.c.b16 %v1636, %v1632
    %v1641 = vpack.c.b16 %v1637, %v1633
    %v1642 = vpack.c.b16 %v1638, %v1634
    %v1648 = vsel %vm347, %v1346, 0
    %1650 = vmatprep.subr.bf16.mxu0 %v1640
    %1651 = vmatpush1.bf16.msra.mxu0 %v1639
    %1652 = vmatprep.subr.bf16.mxu0 0
    %1653 = vmatpush1.bf16.msra.mxu0 0
    %1654 = vmatprep.subr.bf16.mxu0 0
    %1655 = vmatpush1.bf16.msra.mxu0 0
    %1656 = vmatprep.subr.bf16.mxu0 0
    %1657 = vmatpush1.bf16.msra.mxu0 0
    %1658 = vmatprep.subr.bf16.mxu0 0
    %1659 = vmatpush1.bf16.msra.mxu0 0
    %1660 = vmatprep.subr.bf16.mxu0 0
    %1661 = vmatpush1.bf16.msra.mxu0 0
    %1662 = vmatprep.subr.bf16.mxu0 0
    %1663 = vmatpush1.bf16.msra.mxu0 0
    %1664 = vmatprep.subr.bf16.mxu0 0
    %1665 = vmatpush1.bf16.msra.mxu0 0
    %1666 = vmatprep.subr.bf16.mxu0 0
    %1667 = vmatpush1.bf16.msra.mxu0 0
    %1668 = vmatprep.subr.bf16.mxu0 0
    %1669 = vmatpush1.bf16.msra.mxu0 0
    %1670 = vmatprep.subr.bf16.mxu0 0
    %1671 = vmatpush1.bf16.msra.mxu0 0
    %1672 = vmatprep.subr.bf16.mxu0 0
    %1673 = vmatpush1.bf16.msra.mxu0 0
    %1674 = vmatprep.subr.bf16.mxu0 0
    %1675 = vmatpush1.bf16.msra.mxu0 0
    %1676 = vmatprep.subr.bf16.mxu0 0
    %1677 = vmatpush1.bf16.msra.mxu0 0
    %1678 = vmatprep.subr.bf16.mxu0 0
    %1679 = vmatpush1.bf16.msra.mxu0 0
    %1680 = vmatprep.subr.bf16.mxu0 0
    %1681 = vmatpush1.bf16.msra.mxu0 0
    %1682 = vmatprep.mubr.bf16.mxu0 0
    %1683 = vmatmul.mubr.bf16.gmra.mrb[0].mxu0 %v1648
    %v1684 = vpop.f32.mrb[0].mxu0
    %v1685 = vadd.f32 %v1580, %v1684
    %v1686 = vpop.f32.mrb[0].mxu0
    %v1687 = vadd.f32 %v1582, %v1686
    %v1688 = vpop.f32.mrb[0].mxu0
    %v1689 = vpop.f32.mrb[0].mxu0
    %1690 = vdwg.mxu0
    %1691 = vmatprep.subr.bf16.mxu0 %v1642
    %1692 = vmatpush1.bf16.msra.mxu0 %v1641
    %1693 = vmatprep.subr.bf16.mxu0 0
    %1694 = vmatpush1.bf16.msra.mxu0 0
    %1695 = vmatprep.subr.bf16.mxu0 0
    %1696 = vmatpush1.bf16.msra.mxu0 0
    %1697 = vmatprep.subr.bf16.mxu0 0
    %1698 = vmatpush1.bf16.msra.mxu0 0
    %1699 = vmatprep.subr.bf16.mxu0 0
    %1700 = vmatpush1.bf16.msra.mxu0 0
    %1701 = vmatprep.subr.bf16.mxu0 0
    %1702 = vmatpush1.bf16.msra.mxu0 0
    %1703 = vmatprep.subr.bf16.mxu0 0
    %1704 = vmatpush1.bf16.msra.mxu0 0
    %1705 = vmatprep.subr.bf16.mxu0 0
    %1706 = vmatpush1.bf16.msra.mxu0 0
    %1707 = vmatprep.subr.bf16.mxu0 0
    %1708 = vmatpush1.bf16.msra.mxu0 0
    %1709 = vmatprep.subr.bf16.mxu0 0
    %1710 = vmatpush1.bf16.msra.mxu0 0
    %1711 = vmatprep.subr.bf16.mxu0 0
    %1712 = vmatpush1.bf16.msra.mxu0 0
    %1713 = vmatprep.subr.bf16.mxu0 0
    %1714 = vmatpush1.bf16.msra.mxu0 0
    %1715 = vmatprep.subr.bf16.mxu0 0
    %1716 = vmatpush1.bf16.msra.mxu0 0
    %1717 = vmatprep.subr.bf16.mxu0 0
    %1718 = vmatpush1.bf16.msra.mxu0 0
    %1719 = vmatprep.subr.bf16.mxu0 0
    %1720 = vmatpush1.bf16.msra.mxu0 0
    %1721 = vmatprep.subr.bf16.mxu0 0
    %1722 = vmatpush1.bf16.msra.mxu0 0
    %1723 = vmatprep.mubr.bf16.mxu0 0
    %1724 = vmatmul.mubr.bf16.gmra.mrb[0].mxu0 %v1648
    %v1725 = vpop.f32.mrb[0].mxu0
    %v1726 = vadd.f32 %v1621, %v1725
    %v1727 = vpop.f32.mrb[0].mxu0
    %v1728 = vadd.f32 %v1623, %v1727
    %v1729 = vpop.f32.mrb[0].mxu0
    %v1730 = vpop.f32.mrb[0].mxu0
    %1731 = vdwg.mxu0
    %v1732 = vadd.f32 %v1685, %v437
    %v1733 = vadd.f32 %v1687, %v441
    %v1734 = vadd.f32 %v1726, %v445
    %v1735 = vadd.f32 %v1728, %v449
    %v1736 = vxor.u32 %v1732, 2147483648
    %v1737 = vmul.f32 %v1736, 1.442695
    %v1738 = vpow.pop %v1737
    %v1739 = vadd.f32 %v1738, 1.0
    %v1740 = vrcp.pop %v1739
    %v1741 = vmul.f32 1.0, %v1740
    %v1742 = vxor.u32 %v1733, 2147483648
    %v1743 = vmul.f32 %v1742, 1.442695
    %v1744 = vpow.pop %v1743
    %v1745 = vadd.f32 %v1744, 1.0
    %v1746 = vrcp.pop %v1745
    %v1747 = vmul.f32 1.0, %v1746
    %v1748 = vtanh.pop %v1734
    %v1749 = vxor.u32 %v1735, 2147483648
    %v1750 = vmul.f32 %v1749, 1.442695
    %v1751 = vpow.pop %v1750
    %v1752 = vadd.f32 %v1751, 1.0
    %v1753 = vrcp.pop %v1752
    %v1754 = vmul.f32 1.0, %v1753
    %v1755 = vld [vmem:[#allocation3] sm:$0xff]
    %v1756 = vmul.f32 %v1747, %v1755
    %v1757 = vmul.f32 %v1741, %v1748
    %v1758 = vadd.f32 %v1756, %v1757
    %v1759 = vtanh.pop %v1758
    %v1760 = vmul.f32 %v1754, %v1759
    %1761 = vst [vmem:[#allocation3] sm:$0xff] %v1758
    %1762 = vst [vmem:[#allocation2] sm:$0xff] %v1760
    %1763 = vset.pattern.permute.xlu0 3
    %1764 = vperm.xlu0 %1763, %v485
    %v1765 = vpop.permute.xlu0 %1764
    %vm1766 = vcmp.eq.s32.totalorder %v1765, 1
    %v1767 = vsel %vm1766, %v1760, 0.0
    %s1768 = scalar_lea.vmem %s6, 24
    %1769 = vst [vmem:[%s1768] sm:$0xff] %v1767
    %s1770 = scalar_lea.vmem %s1, 32
    %v1771 = vld [vmem:[%s1770] sm:$0xff]
    %v1772 = vpack.c.bf16 %v1771, %v1771
    %v1773 = vld [vmem:[%s2] sm:$0xff]
    %v1774 = vld [vmem:[%s2 + $0x8] sm:$0xff]
    %v1775 = vld [vmem:[%s2 + $0x10] sm:$0xff]
    %v1776 = vld [vmem:[%s2 + $0x18] sm:$0xff]
    %v1777 = vld [vmem:[#allocation2] sm:$0xff]
    %v1778 = vpack.c.bf16 %v1777, %v1777
    %v1779 = vld [vmem:[%s3] sm:$0xff]
    %v1780 = vld [vmem:[%s3 + $0x8] sm:$0xff]
    %v1781 = vld [vmem:[%s3 + $0x10] sm:$0xff]
    %v1782 = vld [vmem:[%s3 + $0x18] sm:$0xff]
    %v1783 = vld [vmem:[%s3 + $0x20] sm:$0xff]
    %v1784 = vld [vmem:[%s3 + $0x28] sm:$0xff]
    %v1785 = vld [vmem:[%s3 + $0x30] sm:$0xff]
    %v1786 = vld [vmem:[%s3 + $0x38] sm:$0xff]
    %v1787 = vld [vmem:[%s3 + $0x40] sm:$0xff]
    %v1788 = vld [vmem:[%s3 + $0x48] sm:$0xff]
    %v1789 = vld [vmem:[%s3 + $0x50] sm:$0xff]
    %v1790 = vld [vmem:[%s3 + $0x58] sm:$0xff]
    %v1791 = vld [vmem:[%s3 + $0x60] sm:$0xff]
    %v1792 = vld [vmem:[%s3 + $0x68] sm:$0xff]
    %v1793 = vld [vmem:[%s3 + $0x70] sm:$0xff]
    %v1794 = vld [vmem:[%s3 + $0x78] sm:$0xff]
    %v1795 = vld [vmem:[%s3 + $0x80] sm:$0xff]
    %v1796 = vld [vmem:[%s3 + $0x88] sm:$0xff]
    %v1797 = vld [vmem:[%s3 + $0x90] sm:$0xff]
    %v1798 = vld [vmem:[%s3 + $0x98] sm:$0xff]
    %v1799 = vld [vmem:[%s3 + $0xa0] sm:$0xff]
    %v1800 = vld [vmem:[%s3 + $0xa8] sm:$0xff]
    %v1801 = vld [vmem:[%s3 + $0xb0] sm:$0xff]
    %v1802 = vld [vmem:[%s3 + $0xb8] sm:$0xff]
    %v1803 = vld [vmem:[%s3 + $0xc0] sm:$0xff]
    %v1804 = vld [vmem:[%s3 + $0xc8] sm:$0xff]
    %v1805 = vld [vmem:[%s3 + $0xd0] sm:$0xff]
    %v1806 = vld [vmem:[%s3 + $0xd8] sm:$0xff]
    %v1807 = vld [vmem:[%s3 + $0xe0] sm:$0xff]
    %v1808 = vld [vmem:[%s3 + $0xe8] sm:$0xff]
    %v1809 = vld [vmem:[%s3 + $0xf0] sm:$0xff]
    %v1810 = vld [vmem:[%s3 + $0xf8] sm:$0xff]
    %v1843 = vunpack.c.l.b16 %v1779
    %v1844 = vunpack.c.h.b16 %v1779
    %v1845 = vunpack.c.l.b16 %v1780
    %v1846 = vunpack.c.h.b16 %v1780
    %v1847 = vunpack.c.l.b16 %v1781
    %v1848 = vunpack.c.h.b16 %v1781
    %v1849 = vunpack.c.l.b16 %v1782
    %v1850 = vunpack.c.h.b16 %v1782
    %v1851 = vunpack.c.l.b16 %v1783
    %v1852 = vunpack.c.h.b16 %v1783
    %v1853 = vunpack.c.l.b16 %v1784
    %v1854 = vunpack.c.h.b16 %v1784
    %v1855 = vunpack.c.l.b16 %v1785
    %v1856 = vunpack.c.h.b16 %v1785
    %v1857 = vunpack.c.l.b16 %v1786
    %v1858 = vunpack.c.h.b16 %v1786
    %v1859 = vunpack.c.l.b16 %v1787
    %v1860 = vunpack.c.h.b16 %v1787
    %v1861 = vunpack.c.l.b16 %v1788
    %v1862 = vunpack.c.h.b16 %v1788
    %v1863 = vunpack.c.l.b16 %v1789
    %v1864 = vunpack.c.h.b16 %v1789
    %v1865 = vunpack.c.l.b16 %v1790
    %v1866 = vunpack.c.h.b16 %v1790
    %v1867 = vunpack.c.l.b16 %v1791
    %v1868 = vunpack.c.h.b16 %v1791
    %v1869 = vunpack.c.l.b16 %v1792
    %v1870 = vunpack.c.h.b16 %v1792
    %v1871 = vunpack.c.l.b16 %v1793
    %v1872 = vunpack.c.h.b16 %v1793
    %v1873 = vunpack.c.l.b16 %v1794
    %v1874 = vunpack.c.h.b16 %v1794
    %v1875 = vunpack.c.l.b16 %v1795
    %v1876 = vunpack.c.h.b16 %v1795
    %v1877 = vunpack.c.l.b16 %v1796
    %v1878 = vunpack.c.h.b16 %v1796
    %v1879 = vunpack.c.l.b16 %v1797
    %v1880 = vunpack.c.h.b16 %v1797
    %v1881 = vunpack.c.l.b16 %v1798
    %v1882 = vunpack.c.h.b16 %v1798
    %v1883 = vunpack.c.l.b16 %v1799
    %v1884 = vunpack.c.h.b16 %v1799
    %v1885 = vunpack.c.l.b16 %v1800
    %v1886 = vunpack.c.h.b16 %v1800
    %v1887 = vunpack.c.l.b16 %v1801
    %v1888 = vunpack.c.h.b16 %v1801
    %v1889 = vunpack.c.l.b16 %v1802
    %v1890 = vunpack.c.h.b16 %v1802
    %v1891 = vunpack.c.l.b16 %v1803
    %v1892 = vunpack.c.h.b16 %v1803
    %v1893 = vunpack.c.l.b16 %v1804
    %v1894 = vunpack.c.h.b16 %v1804
    %v1895 = vunpack.c.l.b16 %v1805
    %v1896 = vunpack.c.h.b16 %v1805
    %v1897 = vunpack.c.l.b16 %v1806
    %v1898 = vunpack.c.h.b16 %v1806
    %v1899 = vunpack.c.l.b16 %v1807
    %v1900 = vunpack.c.h.b16 %v1807
    %v1901 = vunpack.c.l.b16 %v1808
    %v1902 = vunpack.c.h.b16 %v1808
    %v1903 = vunpack.c.l.b16 %v1809
    %v1904 = vunpack.c.h.b16 %v1809
    %v1905 = vunpack.c.l.b16 %v1810
    %v1906 = vunpack.c.h.b16 %v1810
    %v1907 = vpack.c.b16 %v1847, %v1843
    %v1908 = vpack.c.b16 %v1848, %v1844
    %v1909 = vpack.c.b16 %v1849, %v1845
    %v1910 = vpack.c.b16 %v1850, %v1846
    %v1911 = vpack.c.b16 %v1855, %v1851
    %v1912 = vpack.c.b16 %v1856, %v1852
    %v1913 = vpack.c.b16 %v1857, %v1853
    %v1914 = vpack.c.b16 %v1858, %v1854
    %v1915 = vpack.c.b16 %v1863, %v1859
    %v1916 = vpack.c.b16 %v1864, %v1860
    %v1917 = vpack.c.b16 %v1865, %v1861
    %v1918 = vpack.c.b16 %v1866, %v1862
    %v1919 = vpack.c.b16 %v1871, %v1867
    %v1920 = vpack.c.b16 %v1872, %v1868
    %v1921 = vpack.c.b16 %v1873, %v1869
    %v1922 = vpack.c.b16 %v1874, %v1870
    %v1923 = vpack.c.b16 %v1879, %v1875
    %v1924 = vpack.c.b16 %v1880, %v1876
    %v1925 = vpack.c.b16 %v1881, %v1877
    %v1926 = vpack.c.b16 %v1882, %v1878
    %v1927 = vpack.c.b16 %v1887, %v1883
    %v1928 = vpack.c.b16 %v1888, %v1884
    %v1929 = vpack.c.b16 %v1889, %v1885
    %v1930 = vpack.c.b16 %v1890, %v1886
    %v1931 = vpack.c.b16 %v1895, %v1891
    %v1932 = vpack.c.b16 %v1896, %v1892
    %v1933 = vpack.c.b16 %v1897, %v1893
    %v1934 = vpack.c.b16 %v1898, %v1894
    %v1935 = vpack.c.b16 %v1903, %v1899
    %v1936 = vpack.c.b16 %v1904, %v1900
    %v1937 = vpack.c.b16 %v1905, %v1901
    %v1938 = vpack.c.b16 %v1906, %v1902
    %1971 = vmatprep.subr.bf16.mxu0 %v1908
    %1972 = vmatpush1.bf16.msra.mxu0 %v1907
    %1973 = vmatprep.subr.bf16.mxu0 %v1912
    %1974 = vmatpush1.bf16.msra.mxu0 %v1911
    %1975 = vmatprep.subr.bf16.mxu0 %v1916
    %1976 = vmatpush1.bf16.msra.mxu0 %v1915
    %1977 = vmatprep.subr.bf16.mxu0 %v1920
    %1978 = vmatpush1.bf16.msra.mxu0 %v1919
    %1979 = vmatprep.subr.bf16.mxu0 %v1924
    %1980 = vmatpush1.bf16.msra.mxu0 %v1923
    %1981 = vmatprep.subr.bf16.mxu0 %v1928
    %1982 = vmatpush1.bf16.msra.mxu0 %v1927
    %1983 = vmatprep.subr.bf16.mxu0 %v1932
    %1984 = vmatpush1.bf16.msra.mxu0 %v1931
    %1985 = vmatprep.subr.bf16.mxu0 %v1936
    %1986 = vmatpush1.bf16.msra.mxu0 %v1935
    %1987 = vmatprep.subr.bf16.mxu0 0
    %1988 = vmatpush1.bf16.msra.mxu0 0
    %1989 = vmatprep.subr.bf16.mxu0 0
    %1990 = vmatpush1.bf16.msra.mxu0 0
    %1991 = vmatprep.subr.bf16.mxu0 0
    %1992 = vmatpush1.bf16.msra.mxu0 0
    %1993 = vmatprep.subr.bf16.mxu0 0
    %1994 = vmatpush1.bf16.msra.mxu0 0
    %1995 = vmatprep.subr.bf16.mxu0 0
    %1996 = vmatpush1.bf16.msra.mxu0 0
    %1997 = vmatprep.subr.bf16.mxu0 0
    %1998 = vmatpush1.bf16.msra.mxu0 0
    %1999 = vmatprep.subr.bf16.mxu0 0
    %2000 = vmatpush1.bf16.msra.mxu0 0
    %2001 = vmatprep.subr.bf16.mxu0 0
    %2002 = vmatpush1.bf16.msra.mxu0 0
    %2003 = vmatprep.mubr.bf16.mxu0 0
    %2004 = vmatmul.mubr.bf16.gmra.mrb[0].mxu0 %v1778
    %v2005 = vpop.f32.mrb[0].mxu0
    %v2006 = vadd.f32 0.0, %v2005
    %v2007 = vpop.f32.mrb[0].mxu0
    %v2008 = vadd.f32 0.0, %v2007
    %v2009 = vpop.f32.mrb[0].mxu0
    %v2010 = vpop.f32.mrb[0].mxu0
    %2011 = vdwg.mxu0
    %2012 = vmatprep.subr.bf16.mxu0 %v1910
    %2013 = vmatpush1.bf16.msra.mxu0 %v1909
    %2014 = vmatprep.subr.bf16.mxu0 %v1914
    %2015 = vmatpush1.bf16.msra.mxu0 %v1913
    %2016 = vmatprep.subr.bf16.mxu0 %v1918
    %2017 = vmatpush1.bf16.msra.mxu0 %v1917
    %2018 = vmatprep.subr.bf16.mxu0 %v1922
    %2019 = vmatpush1.bf16.msra.mxu0 %v1921
    %2020 = vmatprep.subr.bf16.mxu0 %v1926
    %2021 = vmatpush1.bf16.msra.mxu0 %v1925
    %2022 = vmatprep.subr.bf16.mxu0 %v1930
    %2023 = vmatpush1.bf16.msra.mxu0 %v1929
    %2024 = vmatprep.subr.bf16.mxu0 %v1934
    %2025 = vmatpush1.bf16.msra.mxu0 %v1933
    %2026 = vmatprep.subr.bf16.mxu0 %v1938
    %2027 = vmatpush1.bf16.msra.mxu0 %v1937
    %2028 = vmatprep.subr.bf16.mxu0 0
    %2029 = vmatpush1.bf16.msra.mxu0 0
    %2030 = vmatprep.subr.bf16.mxu0 0
    %2031 = vmatpush1.bf16.msra.mxu0 0
    %2032 = vmatprep.subr.bf16.mxu0 0
    %2033 = vmatpush1.bf16.msra.mxu0 0
    %2034 = vmatprep.subr.bf16.mxu0 0
    %2035 = vmatpush1.bf16.msra.mxu0 0
    %2036 = vmatprep.subr.bf16.mxu0 0
    %2037 = vmatpush1.bf16.msra.mxu0 0
    %2038 = vmatprep.subr.bf16.mxu0 0
    %2039 = vmatpush1.bf16.msra.mxu0 0
    %2040 = vmatprep.subr.bf16.mxu0 0
    %2041 = vmatpush1.bf16.msra.mxu0 0
    %2042 = vmatprep.subr.bf16.mxu0 0
    %2043 = vmatpush1.bf16.msra.mxu0 0
    %2044 = vmatprep.mubr.bf16.mxu0 0
    %2045 = vmatmul.mubr.bf16.gmra.mrb[0].mxu0 %v1778
    %v2046 = vpop.f32.mrb[0].mxu0
    %v2047 = vadd.f32 0.0, %v2046
    %v2048 = vpop.f32.mrb[0].mxu0
    %v2049 = vadd.f32 0.0, %v2048
    %v2050 = vpop.f32.mrb[0].mxu0
    %v2051 = vpop.f32.mrb[0].mxu0
    %2052 = vdwg.mxu0
    %v2057 = vunpack.c.l.b16 %v1773
    %v2058 = vunpack.c.h.b16 %v1773
    %v2059 = vunpack.c.l.b16 %v1774
    %v2060 = vunpack.c.h.b16 %v1774
    %v2061 = vunpack.c.l.b16 %v1775
    %v2062 = vunpack.c.h.b16 %v1775
    %v2063 = vunpack.c.l.b16 %v1776
    %v2064 = vunpack.c.h.b16 %v1776
    %v2065 = vpack.c.b16 %v2061, %v2057
    %v2066 = vpack.c.b16 %v2062, %v2058
    %v2067 = vpack.c.b16 %v2063, %v2059
    %v2068 = vpack.c.b16 %v2064, %v2060
    %v2074 = vsel %vm347, %v1772, 0
    %2076 = vmatprep.subr.bf16.mxu0 %v2066
    %2077 = vmatpush1.bf16.msra.mxu0 %v2065
    %2078 = vmatprep.subr.bf16.mxu0 0
    %2079 = vmatpush1.bf16.msra.mxu0 0
    %2080 = vmatprep.subr.bf16.mxu0 0
    %2081 = vmatpush1.bf16.msra.mxu0 0
    %2082 = vmatprep.subr.bf16.mxu0 0
    %2083 = vmatpush1.bf16.msra.mxu0 0
    %2084 = vmatprep.subr.bf16.mxu0 0
    %2085 = vmatpush1.bf16.msra.mxu0 0
    %2086 = vmatprep.subr.bf16.mxu0 0
    %2087 = vmatpush1.bf16.msra.mxu0 0
    %2088 = vmatprep.subr.bf16.mxu0 0
    %2089 = vmatpush1.bf16.msra.mxu0 0
    %2090 = vmatprep.subr.bf16.mxu0 0
    %2091 = vmatpush1.bf16.msra.mxu0 0
    %2092 = vmatprep.subr.bf16.mxu0 0
    %2093 = vmatpush1.bf16.msra.mxu0 0
    %2094 = vmatprep.subr.bf16.mxu0 0
    %2095 = vmatpush1.bf16.msra.mxu0 0
    %2096 = vmatprep.subr.bf16.mxu0 0
    %2097 = vmatpush1.bf16.msra.mxu0 0
    %2098 = vmatprep.subr.bf16.mxu0 0
    %2099 = vmatpush1.bf16.msra.mxu0 0
    %2100 = vmatprep.subr.bf16.mxu0 0
    %2101 = vmatpush1.bf16.msra.mxu0 0
    %2102 = vmatprep.subr.bf16.mxu0 0
    %2103 = vmatpush1.bf16.msra.mxu0 0
    %2104 = vmatprep.subr.bf16.mxu0 0
    %2105 = vmatpush1.bf16.msra.mxu0 0
    %2106 = vmatprep.subr.bf16.mxu0 0
    %2107 = vmatpush1.bf16.msra.mxu0 0
    %2108 = vmatprep.mubr.bf16.mxu0 0
    %2109 = vmatmul.mubr.bf16.gmra.mrb[0].mxu0 %v2074
    %v2110 = vpop.f32.mrb[0].mxu0
    %v2111 = vadd.f32 %v2006, %v2110
    %v2112 = vpop.f32.mrb[0].mxu0
    %v2113 = vadd.f32 %v2008, %v2112
    %v2114 = vpop.f32.mrb[0].mxu0
    %v2115 = vpop.f32.mrb[0].mxu0
    %2116 = vdwg.mxu0
    %2117 = vmatprep.subr.bf16.mxu0 %v2068
    %2118 = vmatpush1.bf16.msra.mxu0 %v2067
    %2119 = vmatprep.subr.bf16.mxu0 0
    %2120 = vmatpush1.bf16.msra.mxu0 0
    %2121 = vmatprep.subr.bf16.mxu0 0
    %2122 = vmatpush1.bf16.msra.mxu0 0
    %2123 = vmatprep.subr.bf16.mxu0 0
    %2124 = vmatpush1.bf16.msra.mxu0 0
    %2125 = vmatprep.subr.bf16.mxu0 0
    %2126 = vmatpush1.bf16.msra.mxu0 0
    %2127 = vmatprep.subr.bf16.mxu0 0
    %2128 = vmatpush1.bf16.msra.mxu0 0
    %2129 = vmatprep.subr.bf16.mxu0 0
    %2130 = vmatpush1.bf16.msra.mxu0 0
    %2131 = vmatprep.subr.bf16.mxu0 0
    %2132 = vmatpush1.bf16.msra.mxu0 0
    %2133 = vmatprep.subr.bf16.mxu0 0
    %2134 = vmatpush1.bf16.msra.mxu0 0
    %2135 = vmatprep.subr.bf16.mxu0 0
    %2136 = vmatpush1.bf16.msra.mxu0 0
    %2137 = vmatprep.subr.bf16.mxu0 0
    %2138 = vmatpush1.bf16.msra.mxu0 0
    %2139 = vmatprep.subr.bf16.mxu0 0
    %2140 = vmatpush1.bf16.msra.mxu0 0
    %2141 = vmatprep.subr.bf16.mxu0 0
    %2142 = vmatpush1.bf16.msra.mxu0 0
    %2143 = vmatprep.subr.bf16.mxu0 0
    %2144 = vmatpush1.bf16.msra.mxu0 0
    %2145 = vmatprep.subr.bf16.mxu0 0
    %2146 = vmatpush1.bf16.msra.mxu0 0
    %2147 = vmatprep.subr.bf16.mxu0 0
    %2148 = vmatpush1.bf16.msra.mxu0 0
    %2149 = vmatprep.mubr.bf16.mxu0 0
    %2150 = vmatmul.mubr.bf16.gmra.mrb[0].mxu0 %v2074
    %v2151 = vpop.f32.mrb[0].mxu0
    %v2152 = vadd.f32 %v2047, %v2151
    %v2153 = vpop.f32.mrb[0].mxu0
    %v2154 = vadd.f32 %v2049, %v2153
    %v2155 = vpop.f32.mrb[0].mxu0
    %v2156 = vpop.f32.mrb[0].mxu0
    %2157 = vdwg.mxu0
    %v2158 = vadd.f32 %v2111, %v437
    %v2159 = vadd.f32 %v2113, %v441
    %v2160 = vadd.f32 %v2152, %v445
    %v2161 = vadd.f32 %v2154, %v449
    %v2162 = vxor.u32 %v2158, 2147483648
    %v2163 = vmul.f32 %v2162, 1.442695
    %v2164 = vpow.pop %v2163
    %v2165 = vadd.f32 %v2164, 1.0
    %v2166 = vrcp.pop %v2165
    %v2167 = vmul.f32 1.0, %v2166
    %v2168 = vxor.u32 %v2159, 2147483648
    %v2169 = vmul.f32 %v2168, 1.442695
    %v2170 = vpow.pop %v2169
    %v2171 = vadd.f32 %v2170, 1.0
    %v2172 = vrcp.pop %v2171
    %v2173 = vmul.f32 1.0, %v2172
    %v2174 = vtanh.pop %v2160
    %v2175 = vxor.u32 %v2161, 2147483648
    %v2176 = vmul.f32 %v2175, 1.442695
    %v2177 = vpow.pop %v2176
    %v2178 = vadd.f32 %v2177, 1.0
    %v2179 = vrcp.pop %v2178
    %v2180 = vmul.f32 1.0, %v2179
    %v2181 = vld [vmem:[#allocation3] sm:$0xff]
    %v2182 = vmul.f32 %v2173, %v2181
    %v2183 = vmul.f32 %v2167, %v2174
    %v2184 = vadd.f32 %v2182, %v2183
    %v2185 = vtanh.pop %v2184
    %v2186 = vmul.f32 %v2180, %v2185
    %2187 = vst [vmem:[#allocation3] sm:$0xff] %v2184
    %2188 = vst [vmem:[#allocation2] sm:$0xff] %v2186
    %2189 = vset.pattern.permute.xlu0 4
    %2190 = vperm.xlu0 %2189, %v485
    %v2191 = vpop.permute.xlu0 %2190
    %vm2192 = vcmp.eq.s32.totalorder %v2191, 1
    %v2193 = vsel %vm2192, %v2186, 0.0
    %s2194 = scalar_lea.vmem %s6, 32
    %2195 = vst [vmem:[%s2194] sm:$0xff] %v2193
    %s2196 = scalar_lea.vmem %s1, 40
    %v2197 = vld [vmem:[%s2196] sm:$0xff]
    %v2198 = vpack.c.bf16 %v2197, %v2197
    %v2199 = vld [vmem:[%s2] sm:$0xff]
    %v2200 = vld [vmem:[%s2 + $0x8] sm:$0xff]
    %v2201 = vld [vmem:[%s2 + $0x10] sm:$0xff]
    %v2202 = vld [vmem:[%s2 + $0x18] sm:$0xff]
    %v2203 = vld [vmem:[#allocation2] sm:$0xff]
    %v2204 = vpack.c.bf16 %v2203, %v2203
    %v2205 = vld [vmem:[%s3] sm:$0xff]
    %v2206 = vld [vmem:[%s3 + $0x8] sm:$0xff]
    %v2207 = vld [vmem:[%s3 + $0x10] sm:$0xff]
    %v2208 = vld [vmem:[%s3 + $0x18] sm:$0xff]
    %v2209 = vld [vmem:[%s3 + $0x20] sm:$0xff]
    %v2210 = vld [vmem:[%s3 + $0x28] sm:$0xff]
    %v2211 = vld [vmem:[%s3 + $0x30] sm:$0xff]
    %v2212 = vld [vmem:[%s3 + $0x38] sm:$0xff]
    %v2213 = vld [vmem:[%s3 + $0x40] sm:$0xff]
    %v2214 = vld [vmem:[%s3 + $0x48] sm:$0xff]
    %v2215 = vld [vmem:[%s3 + $0x50] sm:$0xff]
    %v2216 = vld [vmem:[%s3 + $0x58] sm:$0xff]
    %v2217 = vld [vmem:[%s3 + $0x60] sm:$0xff]
    %v2218 = vld [vmem:[%s3 + $0x68] sm:$0xff]
    %v2219 = vld [vmem:[%s3 + $0x70] sm:$0xff]
    %v2220 = vld [vmem:[%s3 + $0x78] sm:$0xff]
    %v2221 = vld [vmem:[%s3 + $0x80] sm:$0xff]
    %v2222 = vld [vmem:[%s3 + $0x88] sm:$0xff]
    %v2223 = vld [vmem:[%s3 + $0x90] sm:$0xff]
    %v2224 = vld [vmem:[%s3 + $0x98] sm:$0xff]
    %v2225 = vld [vmem:[%s3 + $0xa0] sm:$0xff]
    %v2226 = vld [vmem:[%s3 + $0xa8] sm:$0xff]
    %v2227 = vld [vmem:[%s3 + $0xb0] sm:$0xff]
    %v2228 = vld [vmem:[%s3 + $0xb8] sm:$0xff]
    %v2229 = vld [vmem:[%s3 + $0xc0] sm:$0xff]
    %v2230 = vld [vmem:[%s3 + $0xc8] sm:$0xff]
    %v2231 = vld [vmem:[%s3 + $0xd0] sm:$0xff]
    %v2232 = vld [vmem:[%s3 + $0xd8] sm:$0xff]
    %v2233 = vld [vmem:[%s3 + $0xe0] sm:$0xff]
    %v2234 = vld [vmem:[%s3 + $0xe8] sm:$0xff]
    %v2235 = vld [vmem:[%s3 + $0xf0] sm:$0xff]
    %v2236 = vld [vmem:[%s3 + $0xf8] sm:$0xff]
    %v2269 = vunpack.c.l.b16 %v2205
    %v2270 = vunpack.c.h.b16 %v2205
    %v2271 = vunpack.c.l.b16 %v2206
    %v2272 = vunpack.c.h.b16 %v2206
    %v2273 = vunpack.c.l.b16 %v2207
    %v2274 = vunpack.c.h.b16 %v2207
    %v2275 = vunpack.c.l.b16 %v2208
    %v2276 = vunpack.c.h.b16 %v2208
    %v2277 = vunpack.c.l.b16 %v2209
    %v2278 = vunpack.c.h.b16 %v2209
    %v2279 = vunpack.c.l.b16 %v2210
    %v2280 = vunpack.c.h.b16 %v2210
    %v2281 = vunpack.c.l.b16 %v2211
    %v2282 = vunpack.c.h.b16 %v2211
    %v2283 = vunpack.c.l.b16 %v2212
    %v2284 = vunpack.c.h.b16 %v2212
    %v2285 = vunpack.c.l.b16 %v2213
    %v2286 = vunpack.c.h.b16 %v2213
    %v2287 = vunpack.c.l.b16 %v2214
    %v2288 = vunpack.c.h.b16 %v2214
    %v2289 = vunpack.c.l.b16 %v2215
    %v2290 = vunpack.c.h.b16 %v2215
    %v2291 = vunpack.c.l.b16 %v2216
    %v2292 = vunpack.c.h.b16 %v2216
    %v2293 = vunpack.c.l.b16 %v2217
    %v2294 = vunpack.c.h.b16 %v2217
    %v2295 = vunpack.c.l.b16 %v2218
    %v2296 = vunpack.c.h.b16 %v2218
    %v2297 = vunpack.c.l.b16 %v2219
    %v2298 = vunpack.c.h.b16 %v2219
    %v2299 = vunpack.c.l.b16 %v2220
    %v2300 = vunpack.c.h.b16 %v2220
    %v2301 = vunpack.c.l.b16 %v2221
    %v2302 = vunpack.c.h.b16 %v2221
    %v2303 = vunpack.c.l.b16 %v2222
    %v2304 = vunpack.c.h.b16 %v2222
    %v2305 = vunpack.c.l.b16 %v2223
    %v2306 = vunpack.c.h.b16 %v2223
    %v2307 = vunpack.c.l.b16 %v2224
    %v2308 = vunpack.c.h.b16 %v2224
    %v2309 = vunpack.c.l.b16 %v2225
    %v2310 = vunpack.c.h.b16 %v2225
    %v2311 = vunpack.c.l.b16 %v2226
    %v2312 = vunpack.c.h.b16 %v2226
    %v2313 = vunpack.c.l.b16 %v2227
    %v2314 = vunpack.c.h.b16 %v2227
    %v2315 = vunpack.c.l.b16 %v2228
    %v2316 = vunpack.c.h.b16 %v2228
    %v2317 = vunpack.c.l.b16 %v2229
    %v2318 = vunpack.c.h.b16 %v2229
    %v2319 = vunpack.c.l.b16 %v2230
    %v2320 = vunpack.c.h.b16 %v2230
    %v2321 = vunpack.c.l.b16 %v2231
    %v2322 = vunpack.c.h.b16 %v2231
    %v2323 = vunpack.c.l.b16 %v2232
    %v2324 = vunpack.c.h.b16 %v2232
    %v2325 = vunpack.c.l.b16 %v2233
    %v2326 = vunpack.c.h.b16 %v2233
    %v2327 = vunpack.c.l.b16 %v2234
    %v2328 = vunpack.c.h.b16 %v2234
    %v2329 = vunpack.c.l.b16 %v2235
    %v2330 = vunpack.c.h.b16 %v2235
    %v2331 = vunpack.c.l.b16 %v2236
    %v2332 = vunpack.c.h.b16 %v2236
    %v2333 = vpack.c.b16 %v2273, %v2269
    %v2334 = vpack.c.b16 %v2274, %v2270
    %v2335 = vpack.c.b16 %v2275, %v2271
    %v2336 = vpack.c.b16 %v2276, %v2272
    %v2337 = vpack.c.b16 %v2281, %v2277
    %v2338 = vpack.c.b16 %v2282, %v2278
    %v2339 = vpack.c.b16 %v2283, %v2279
    %v2340 = vpack.c.b16 %v2284, %v2280
    %v2341 = vpack.c.b16 %v2289, %v2285
    %v2342 = vpack.c.b16 %v2290, %v2286
    %v2343 = vpack.c.b16 %v2291, %v2287
    %v2344 = vpack.c.b16 %v2292, %v2288
    %v2345 = vpack.c.b16 %v2297, %v2293
    %v2346 = vpack.c.b16 %v2298, %v2294
    %v2347 = vpack.c.b16 %v2299, %v2295
    %v2348 = vpack.c.b16 %v2300, %v2296
    %v2349 = vpack.c.b16 %v2305, %v2301
    %v2350 = vpack.c.b16 %v2306, %v2302
    %v2351 = vpack.c.b16 %v2307, %v2303
    %v2352 = vpack.c.b16 %v2308, %v2304
    %v2353 = vpack.c.b16 %v2313, %v2309
    %v2354 = vpack.c.b16 %v2314, %v2310
    %v2355 = vpack.c.b16 %v2315, %v2311
    %v2356 = vpack.c.b16 %v2316, %v2312
    %v2357 = vpack.c.b16 %v2321, %v2317
    %v2358 = vpack.c.b16 %v2322, %v2318
    %v2359 = vpack.c.b16 %v2323, %v2319
    %v2360 = vpack.c.b16 %v2324, %v2320
    %v2361 = vpack.c.b16 %v2329, %v2325
    %v2362 = vpack.c.b16 %v2330, %v2326
    %v2363 = vpack.c.b16 %v2331, %v2327
    %v2364 = vpack.c.b16 %v2332, %v2328
    %2397 = vmatprep.subr.bf16.mxu0 %v2334
    %2398 = vmatpush1.bf16.msra.mxu0 %v2333
    %2399 = vmatprep.subr.bf16.mxu0 %v2338
    %2400 = vmatpush1.bf16.msra.mxu0 %v2337
    %2401 = vmatprep.subr.bf16.mxu0 %v2342
    %2402 = vmatpush1.bf16.msra.mxu0 %v2341
    %2403 = vmatprep.subr.bf16.mxu0 %v2346
    %2404 = vmatpush1.bf16.msra.mxu0 %v2345
    %2405 = vmatprep.subr.bf16.mxu0 %v2350
    %2406 = vmatpush1.bf16.msra.mxu0 %v2349
    %2407 = vmatprep.subr.bf16.mxu0 %v2354
    %2408 = vmatpush1.bf16.msra.mxu0 %v2353
    %2409 = vmatprep.subr.bf16.mxu0 %v2358
    %2410 = vmatpush1.bf16.msra.mxu0 %v2357
    %2411 = vmatprep.subr.bf16.mxu0 %v2362
    %2412 = vmatpush1.bf16.msra.mxu0 %v2361
    %2413 = vmatprep.subr.bf16.mxu0 0
    %2414 = vmatpush1.bf16.msra.mxu0 0
    %2415 = vmatprep.subr.bf16.mxu0 0
    %2416 = vmatpush1.bf16.msra.mxu0 0
    %2417 = vmatprep.subr.bf16.mxu0 0
    %2418 = vmatpush1.bf16.msra.mxu0 0
    %2419 = vmatprep.subr.bf16.mxu0 0
    %2420 = vmatpush1.bf16.msra.mxu0 0
    %2421 = vmatprep.subr.bf16.mxu0 0
    %2422 = vmatpush1.bf16.msra.mxu0 0
    %2423 = vmatprep.subr.bf16.mxu0 0
    %2424 = vmatpush1.bf16.msra.mxu0 0
    %2425 = vmatprep.subr.bf16.mxu0 0
    %2426 = vmatpush1.bf16.msra.mxu0 0
    %2427 = vmatprep.subr.bf16.mxu0 0
    %2428 = vmatpush1.bf16.msra.mxu0 0
    %2429 = vmatprep.mubr.bf16.mxu0 0
    %2430 = vmatmul.mubr.bf16.gmra.mrb[0].mxu0 %v2204
    %v2431 = vpop.f32.mrb[0].mxu0
    %v2432 = vadd.f32 0.0, %v2431
    %v2433 = vpop.f32.mrb[0].mxu0
    %v2434 = vadd.f32 0.0, %v2433
    %v2435 = vpop.f32.mrb[0].mxu0
    %v2436 = vpop.f32.mrb[0].mxu0
    %2437 = vdwg.mxu0
    %2438 = vmatprep.subr.bf16.mxu0 %v2336
    %2439 = vmatpush1.bf16.msra.mxu0 %v2335
    %2440 = vmatprep.subr.bf16.mxu0 %v2340
    %2441 = vmatpush1.bf16.msra.mxu0 %v2339
    %2442 = vmatprep.subr.bf16.mxu0 %v2344
    %2443 = vmatpush1.bf16.msra.mxu0 %v2343
    %2444 = vmatprep.subr.bf16.mxu0 %v2348
    %2445 = vmatpush1.bf16.msra.mxu0 %v2347
    %2446 = vmatprep.subr.bf16.mxu0 %v2352
    %2447 = vmatpush1.bf16.msra.mxu0 %v2351
    %2448 = vmatprep.subr.bf16.mxu0 %v2356
    %2449 = vmatpush1.bf16.msra.mxu0 %v2355
    %2450 = vmatprep.subr.bf16.mxu0 %v2360
    %2451 = vmatpush1.bf16.msra.mxu0 %v2359
    %2452 = vmatprep.subr.bf16.mxu0 %v2364
    %2453 = vmatpush1.bf16.msra.mxu0 %v2363
    %2454 = vmatprep.subr.bf16.mxu0 0
    %2455 = vmatpush1.bf16.msra.mxu0 0
    %2456 = vmatprep.subr.bf16.mxu0 0
    %2457 = vmatpush1.bf16.msra.mxu0 0
    %2458 = vmatprep.subr.bf16.mxu0 0
    %2459 = vmatpush1.bf16.msra.mxu0 0
    %2460 = vmatprep.subr.bf16.mxu0 0
    %2461 = vmatpush1.bf16.msra.mxu0 0
    %2462 = vmatprep.subr.bf16.mxu0 0
    %2463 = vmatpush1.bf16.msra.mxu0 0
    %2464 = vmatprep.subr.bf16.mxu0 0
    %2465 = vmatpush1.bf16.msra.mxu0 0
    %2466 = vmatprep.subr.bf16.mxu0 0
    %2467 = vmatpush1.bf16.msra.mxu0 0
    %2468 = vmatprep.subr.bf16.mxu0 0
    %2469 = vmatpush1.bf16.msra.mxu0 0
    %2470 = vmatprep.mubr.bf16.mxu0 0
    %2471 = vmatmul.mubr.bf16.gmra.mrb[0].mxu0 %v2204
    %v2472 = vpop.f32.mrb[0].mxu0
    %v2473 = vadd.f32 0.0, %v2472
    %v2474 = vpop.f32.mrb[0].mxu0
    %v2475 = vadd.f32 0.0, %v2474
    %v2476 = vpop.f32.mrb[0].mxu0
    %v2477 = vpop.f32.mrb[0].mxu0
    %2478 = vdwg.mxu0
    %v2483 = vunpack.c.l.b16 %v2199
    %v2484 = vunpack.c.h.b16 %v2199
    %v2485 = vunpack.c.l.b16 %v2200
    %v2486 = vunpack.c.h.b16 %v2200
    %v2487 = vunpack.c.l.b16 %v2201
    %v2488 = vunpack.c.h.b16 %v2201
    %v2489 = vunpack.c.l.b16 %v2202
    %v2490 = vunpack.c.h.b16 %v2202
    %v2491 = vpack.c.b16 %v2487, %v2483
    %v2492 = vpack.c.b16 %v2488, %v2484
    %v2493 = vpack.c.b16 %v2489, %v2485
    %v2494 = vpack.c.b16 %v2490, %v2486
    %v2500 = vsel %vm347, %v2198, 0
    %2502 = vmatprep.subr.bf16.mxu0 %v2492
    %2503 = vmatpush1.bf16.msra.mxu0 %v2491
    %2504 = vmatprep.subr.bf16.mxu0 0
    %2505 = vmatpush1.bf16.msra.mxu0 0
    %2506 = vmatprep.subr.bf16.mxu0 0
    %2507 = vmatpush1.bf16.msra.mxu0 0
    %2508 = vmatprep.subr.bf16.mxu0 0
    %2509 = vmatpush1.bf16.msra.mxu0 0
    %2510 = vmatprep.subr.bf16.mxu0 0
    %2511 = vmatpush1.bf16.msra.mxu0 0
    %2512 = vmatprep.subr.bf16.mxu0 0
    %2513 = vmatpush1.bf16.msra.mxu0 0
    %2514 = vmatprep.subr.bf16.mxu0 0
    %2515 = vmatpush1.bf16.msra.mxu0 0
    %2516 = vmatprep.subr.bf16.mxu0 0
    %2517 = vmatpush1.bf16.msra.mxu0 0
    %2518 = vmatprep.subr.bf16.mxu0 0
    %2519 = vmatpush1.bf16.msra.mxu0 0
    %2520 = vmatprep.subr.bf16.mxu0 0
    %2521 = vmatpush1.bf16.msra.mxu0 0
    %2522 = vmatprep.subr.bf16.mxu0 0
    %2523 = vmatpush1.bf16.msra.mxu0 0
    %2524 = vmatprep.subr.bf16.mxu0 0
    %2525 = vmatpush1.bf16.msra.mxu0 0
    %2526 = vmatprep.subr.bf16.mxu0 0
    %2527 = vmatpush1.bf16.msra.mxu0 0
    %2528 = vmatprep.subr.bf16.mxu0 0
    %2529 = vmatpush1.bf16.msra.mxu0 0
    %2530 = vmatprep.subr.bf16.mxu0 0
    %2531 = vmatpush1.bf16.msra.mxu0 0
    %2532 = vmatprep.subr.bf16.mxu0 0
    %2533 = vmatpush1.bf16.msra.mxu0 0
    %2534 = vmatprep.mubr.bf16.mxu0 0
    %2535 = vmatmul.mubr.bf16.gmra.mrb[0].mxu0 %v2500
    %v2536 = vpop.f32.mrb[0].mxu0
    %v2537 = vadd.f32 %v2432, %v2536
    %v2538 = vpop.f32.mrb[0].mxu0
    %v2539 = vadd.f32 %v2434, %v2538
    %v2540 = vpop.f32.mrb[0].mxu0
    %v2541 = vpop.f32.mrb[0].mxu0
    %2542 = vdwg.mxu0
    %2543 = vmatprep.subr.bf16.mxu0 %v2494
    %2544 = vmatpush1.bf16.msra.mxu0 %v2493
    %2545 = vmatprep.subr.bf16.mxu0 0
    %2546 = vmatpush1.bf16.msra.mxu0 0
    %2547 = vmatprep.subr.bf16.mxu0 0
    %2548 = vmatpush1.bf16.msra.mxu0 0
    %2549 = vmatprep.subr.bf16.mxu0 0
    %2550 = vmatpush1.bf16.msra.mxu0 0
    %2551 = vmatprep.subr.bf16.mxu0 0
    %2552 = vmatpush1.bf16.msra.mxu0 0
    %2553 = vmatprep.subr.bf16.mxu0 0
    %2554 = vmatpush1.bf16.msra.mxu0 0
    %2555 = vmatprep.subr.bf16.mxu0 0
    %2556 = vmatpush1.bf16.msra.mxu0 0
    %2557 = vmatprep.subr.bf16.mxu0 0
    %2558 = vmatpush1.bf16.msra.mxu0 0
    %2559 = vmatprep.subr.bf16.mxu0 0
    %2560 = vmatpush1.bf16.msra.mxu0 0
    %2561 = vmatprep.subr.bf16.mxu0 0
    %2562 = vmatpush1.bf16.msra.mxu0 0
    %2563 = vmatprep.subr.bf16.mxu0 0
    %2564 = vmatpush1.bf16.msra.mxu0 0
    %2565 = vmatprep.subr.bf16.mxu0 0
    %2566 = vmatpush1.bf16.msra.mxu0 0
    %2567 = vmatprep.subr.bf16.mxu0 0
    %2568 = vmatpush1.bf16.msra.mxu0 0
    %2569 = vmatprep.subr.bf16.mxu0 0
    %2570 = vmatpush1.bf16.msra.mxu0 0
    %2571 = vmatprep.subr.bf16.mxu0 0
    %2572 = vmatpush1.bf16.msra.mxu0 0
    %2573 = vmatprep.subr.bf16.mxu0 0
    %2574 = vmatpush1.bf16.msra.mxu0 0
    %2575 = vmatprep.mubr.bf16.mxu0 0
    %2576 = vmatmul.mubr.bf16.gmra.mrb[0].mxu0 %v2500
    %v2577 = vpop.f32.mrb[0].mxu0
    %v2578 = vadd.f32 %v2473, %v2577
    %v2579 = vpop.f32.mrb[0].mxu0
    %v2580 = vadd.f32 %v2475, %v2579
    %v2581 = vpop.f32.mrb[0].mxu0
    %v2582 = vpop.f32.mrb[0].mxu0
    %2583 = vdwg.mxu0
    %v2584 = vadd.f32 %v2537, %v437
    %v2585 = vadd.f32 %v2539, %v441
    %v2586 = vadd.f32 %v2578, %v445
    %v2587 = vadd.f32 %v2580, %v449
    %v2588 = vxor.u32 %v2584, 2147483648
    %v2589 = vmul.f32 %v2588, 1.442695
    %v2590 = vpow.pop %v2589
    %v2591 = vadd.f32 %v2590, 1.0
    %v2592 = vrcp.pop %v2591
    %v2593 = vmul.f32 1.0, %v2592
    %v2594 = vxor.u32 %v2585, 2147483648
    %v2595 = vmul.f32 %v2594, 1.442695
    %v2596 = vpow.pop %v2595
    %v2597 = vadd.f32 %v2596, 1.0
    %v2598 = vrcp.pop %v2597
    %v2599 = vmul.f32 1.0, %v2598
    %v2600 = vtanh.pop %v2586
    %v2601 = vxor.u32 %v2587, 2147483648
    %v2602 = vmul.f32 %v2601, 1.442695
    %v2603 = vpow.pop %v2602
    %v2604 = vadd.f32 %v2603, 1.0
    %v2605 = vrcp.pop %v2604
    %v2606 = vmul.f32 1.0, %v2605
    %v2607 = vld [vmem:[#allocation3] sm:$0xff]
    %v2608 = vmul.f32 %v2599, %v2607
    %v2609 = vmul.f32 %v2593, %v2600
    %v2610 = vadd.f32 %v2608, %v2609
    %v2611 = vtanh.pop %v2610
    %v2612 = vmul.f32 %v2606, %v2611
    %2613 = vst [vmem:[#allocation3] sm:$0xff] %v2610
    %2614 = vst [vmem:[#allocation2] sm:$0xff] %v2612
    %2615 = vset.pattern.permute.xlu0 5
    %2616 = vperm.xlu0 %2615, %v485
    %v2617 = vpop.permute.xlu0 %2616
    %vm2618 = vcmp.eq.s32.totalorder %v2617, 1
    %v2619 = vsel %vm2618, %v2612, 0.0
    %s2620 = scalar_lea.vmem %s6, 40
    %2621 = vst [vmem:[%s2620] sm:$0xff] %v2619
    %s2622 = scalar_lea.vmem %s1, 48
    %v2623 = vld [vmem:[%s2622] sm:$0xff]
    %v2624 = vpack.c.bf16 %v2623, %v2623
    %v2625 = vld [vmem:[%s2] sm:$0xff]
    %v2626 = vld [vmem:[%s2 + $0x8] sm:$0xff]
    %v2627 = vld [vmem:[%s2 + $0x10] sm:$0xff]
    %v2628 = vld [vmem:[%s2 + $0x18] sm:$0xff]
    %v2629 = vld [vmem:[#allocation2] sm:$0xff]
    %v2630 = vpack.c.bf16 %v2629, %v2629
    %v2631 = vld [vmem:[%s3] sm:$0xff]
    %v2632 = vld [vmem:[%s3 + $0x8] sm:$0xff]
    %v2633 = vld [vmem:[%s3 + $0x10] sm:$0xff]
    %v2634 = vld [vmem:[%s3 + $0x18] sm:$0xff]
    %v2635 = vld [vmem:[%s3 + $0x20] sm:$0xff]
    %v2636 = vld [vmem:[%s3 + $0x28] sm:$0xff]
    %v2637 = vld [vmem:[%s3 + $0x30] sm:$0xff]
    %v2638 = vld [vmem:[%s3 + $0x38] sm:$0xff]
    %v2639 = vld [vmem:[%s3 + $0x40] sm:$0xff]
    %v2640 = vld [vmem:[%s3 + $0x48] sm:$0xff]
    %v2641 = vld [vmem:[%s3 + $0x50] sm:$0xff]
    %v2642 = vld [vmem:[%s3 + $0x58] sm:$0xff]
    %v2643 = vld [vmem:[%s3 + $0x60] sm:$0xff]
    %v2644 = vld [vmem:[%s3 + $0x68] sm:$0xff]
    %v2645 = vld [vmem:[%s3 + $0x70] sm:$0xff]
    %v2646 = vld [vmem:[%s3 + $0x78] sm:$0xff]
    %v2647 = vld [vmem:[%s3 + $0x80] sm:$0xff]
    %v2648 = vld [vmem:[%s3 + $0x88] sm:$0xff]
    %v2649 = vld [vmem:[%s3 + $0x90] sm:$0xff]
    %v2650 = vld [vmem:[%s3 + $0x98] sm:$0xff]
    %v2651 = vld [vmem:[%s3 + $0xa0] sm:$0xff]
    %v2652 = vld [vmem:[%s3 + $0xa8] sm:$0xff]
    %v2653 = vld [vmem:[%s3 + $0xb0] sm:$0xff]
    %v2654 = vld [vmem:[%s3 + $0xb8] sm:$0xff]
    %v2655 = vld [vmem:[%s3 + $0xc0] sm:$0xff]
    %v2656 = vld [vmem:[%s3 + $0xc8] sm:$0xff]
    %v2657 = vld [vmem:[%s3 + $0xd0] sm:$0xff]
    %v2658 = vld [vmem:[%s3 + $0xd8] sm:$0xff]
    %v2659 = vld [vmem:[%s3 + $0xe0] sm:$0xff]
    %v2660 = vld [vmem:[%s3 + $0xe8] sm:$0xff]
    %v2661 = vld [vmem:[%s3 + $0xf0] sm:$0xff]
    %v2662 = vld [vmem:[%s3 + $0xf8] sm:$0xff]
    %v2695 = vunpack.c.l.b16 %v2631
    %v2696 = vunpack.c.h.b16 %v2631
    %v2697 = vunpack.c.l.b16 %v2632
    %v2698 = vunpack.c.h.b16 %v2632
    %v2699 = vunpack.c.l.b16 %v2633
    %v2700 = vunpack.c.h.b16 %v2633
    %v2701 = vunpack.c.l.b16 %v2634
    %v2702 = vunpack.c.h.b16 %v2634
    %v2703 = vunpack.c.l.b16 %v2635
    %v2704 = vunpack.c.h.b16 %v2635
    %v2705 = vunpack.c.l.b16 %v2636
    %v2706 = vunpack.c.h.b16 %v2636
    %v2707 = vunpack.c.l.b16 %v2637
    %v2708 = vunpack.c.h.b16 %v2637
    %v2709 = vunpack.c.l.b16 %v2638
    %v2710 = vunpack.c.h.b16 %v2638
    %v2711 = vunpack.c.l.b16 %v2639
    %v2712 = vunpack.c.h.b16 %v2639
    %v2713 = vunpack.c.l.b16 %v2640
    %v2714 = vunpack.c.h.b16 %v2640
    %v2715 = vunpack.c.l.b16 %v2641
    %v2716 = vunpack.c.h.b16 %v2641
    %v2717 = vunpack.c.l.b16 %v2642
    %v2718 = vunpack.c.h.b16 %v2642
    %v2719 = vunpack.c.l.b16 %v2643
    %v2720 = vunpack.c.h.b16 %v2643
    %v2721 = vunpack.c.l.b16 %v2644
    %v2722 = vunpack.c.h.b16 %v2644
    %v2723 = vunpack.c.l.b16 %v2645
    %v2724 = vunpack.c.h.b16 %v2645
    %v2725 = vunpack.c.l.b16 %v2646
    %v2726 = vunpack.c.h.b16 %v2646
    %v2727 = vunpack.c.l.b16 %v2647
    %v2728 = vunpack.c.h.b16 %v2647
    %v2729 = vunpack.c.l.b16 %v2648
    %v2730 = vunpack.c.h.b16 %v2648
    %v2731 = vunpack.c.l.b16 %v2649
    %v2732 = vunpack.c.h.b16 %v2649
    %v2733 = vunpack.c.l.b16 %v2650
    %v2734 = vunpack.c.h.b16 %v2650
    %v2735 = vunpack.c.l.b16 %v2651
    %v2736 = vunpack.c.h.b16 %v2651
    %v2737 = vunpack.c.l.b16 %v2652
    %v2738 = vunpack.c.h.b16 %v2652
    %v2739 = vunpack.c.l.b16 %v2653
    %v2740 = vunpack.c.h.b16 %v2653
    %v2741 = vunpack.c.l.b16 %v2654
    %v2742 = vunpack.c.h.b16 %v2654
    %v2743 = vunpack.c.l.b16 %v2655
    %v2744 = vunpack.c.h.b16 %v2655
    %v2745 = vunpack.c.l.b16 %v2656
    %v2746 = vunpack.c.h.b16 %v2656
    %v2747 = vunpack.c.l.b16 %v2657
    %v2748 = vunpack.c.h.b16 %v2657
    %v2749 = vunpack.c.l.b16 %v2658
    %v2750 = vunpack.c.h.b16 %v2658
    %v2751 = vunpack.c.l.b16 %v2659
    %v2752 = vunpack.c.h.b16 %v2659
    %v2753 = vunpack.c.l.b16 %v2660
    %v2754 = vunpack.c.h.b16 %v2660
    %v2755 = vunpack.c.l.b16 %v2661
    %v2756 = vunpack.c.h.b16 %v2661
    %v2757 = vunpack.c.l.b16 %v2662
    %v2758 = vunpack.c.h.b16 %v2662
    %v2759 = vpack.c.b16 %v2699, %v2695
    %v2760 = vpack.c.b16 %v2700, %v2696
    %v2761 = vpack.c.b16 %v2701, %v2697
    %v2762 = vpack.c.b16 %v2702, %v2698
    %v2763 = vpack.c.b16 %v2707, %v2703
    %v2764 = vpack.c.b16 %v2708, %v2704
    %v2765 = vpack.c.b16 %v2709, %v2705
    %v2766 = vpack.c.b16 %v2710, %v2706
    %v2767 = vpack.c.b16 %v2715, %v2711
    %v2768 = vpack.c.b16 %v2716, %v2712
    %v2769 = vpack.c.b16 %v2717, %v2713
    %v2770 = vpack.c.b16 %v2718, %v2714
    %v2771 = vpack.c.b16 %v2723, %v2719
    %v2772 = vpack.c.b16 %v2724, %v2720
    %v2773 = vpack.c.b16 %v2725, %v2721
    %v2774 = vpack.c.b16 %v2726, %v2722
    %v2775 = vpack.c.b16 %v2731, %v2727
    %v2776 = vpack.c.b16 %v2732, %v2728
    %v2777 = vpack.c.b16 %v2733, %v2729
    %v2778 = vpack.c.b16 %v2734, %v2730
    %v2779 = vpack.c.b16 %v2739, %v2735
    %v2780 = vpack.c.b16 %v2740, %v2736
    %v2781 = vpack.c.b16 %v2741, %v2737
    %v2782 = vpack.c.b16 %v2742, %v2738
    %v2783 = vpack.c.b16 %v2747, %v2743
    %v2784 = vpack.c.b16 %v2748, %v2744
    %v2785 = vpack.c.b16 %v2749, %v2745
    %v2786 = vpack.c.b16 %v2750, %v2746
    %v2787 = vpack.c.b16 %v2755, %v2751
    %v2788 = vpack.c.b16 %v2756, %v2752
    %v2789 = vpack.c.b16 %v2757, %v2753
    %v2790 = vpack.c.b16 %v2758, %v2754
    %2823 = vmatprep.subr.bf16.mxu0 %v2760
    %2824 = vmatpush1.bf16.msra.mxu0 %v2759
    %2825 = vmatprep.subr.bf16.mxu0 %v2764
    %2826 = vmatpush1.bf16.msra.mxu0 %v2763
    %2827 = vmatprep.subr.bf16.mxu0 %v2768
    %2828 = vmatpush1.bf16.msra.mxu0 %v2767
    %2829 = vmatprep.subr.bf16.mxu0 %v2772
    %2830 = vmatpush1.bf16.msra.mxu0 %v2771
    %2831 = vmatprep.subr.bf16.mxu0 %v2776
    %2832 = vmatpush1.bf16.msra.mxu0 %v2775
    %2833 = vmatprep.subr.bf16.mxu0 %v2780
    %2834 = vmatpush1.bf16.msra.mxu0 %v2779
    %2835 = vmatprep.subr.bf16.mxu0 %v2784
    %2836 = vmatpush1.bf16.msra.mxu0 %v2783
    %2837 = vmatprep.subr.bf16.mxu0 %v2788
    %2838 = vmatpush1.bf16.msra.mxu0 %v2787
    %2839 = vmatprep.subr.bf16.mxu0 0
    %2840 = vmatpush1.bf16.msra.mxu0 0
    %2841 = vmatprep.subr.bf16.mxu0 0
    %2842 = vmatpush1.bf16.msra.mxu0 0
    %2843 = vmatprep.subr.bf16.mxu0 0
    %2844 = vmatpush1.bf16.msra.mxu0 0
    %2845 = vmatprep.subr.bf16.mxu0 0
    %2846 = vmatpush1.bf16.msra.mxu0 0
    %2847 = vmatprep.subr.bf16.mxu0 0
    %2848 = vmatpush1.bf16.msra.mxu0 0
    %2849 = vmatprep.subr.bf16.mxu0 0
    %2850 = vmatpush1.bf16.msra.mxu0 0
    %2851 = vmatprep.subr.bf16.mxu0 0
    %2852 = vmatpush1.bf16.msra.mxu0 0
    %2853 = vmatprep.subr.bf16.mxu0 0
    %2854 = vmatpush1.bf16.msra.mxu0 0
    %2855 = vmatprep.mubr.bf16.mxu0 0
    %2856 = vmatmul.mubr.bf16.gmra.mrb[0].mxu0 %v2630
    %v2857 = vpop.f32.mrb[0].mxu0
    %v2858 = vadd.f32 0.0, %v2857
    %v2859 = vpop.f32.mrb[0].mxu0
    %v2860 = vadd.f32 0.0, %v2859
    %v2861 = vpop.f32.mrb[0].mxu0
    %v2862 = vpop.f32.mrb[0].mxu0
    %2863 = vdwg.mxu0
    %2864 = vmatprep.subr.bf16.mxu0 %v2762
    %2865 = vmatpush1.bf16.msra.mxu0 %v2761
    %2866 = vmatprep.subr.bf16.mxu0 %v2766
    %2867 = vmatpush1.bf16.msra.mxu0 %v2765
    %2868 = vmatprep.subr.bf16.mxu0 %v2770
    %2869 = vmatpush1.bf16.msra.mxu0 %v2769
    %2870 = vmatprep.subr.bf16.mxu0 %v2774
    %2871 = vmatpush1.bf16.msra.mxu0 %v2773
    %2872 = vmatprep.subr.bf16.mxu0 %v2778
    %2873 = vmatpush1.bf16.msra.mxu0 %v2777
    %2874 = vmatprep.subr.bf16.mxu0 %v2782
    %2875 = vmatpush1.bf16.msra.mxu0 %v2781
    %2876 = vmatprep.subr.bf16.mxu0 %v2786
    %2877 = vmatpush1.bf16.msra.mxu0 %v2785
    %2878 = vmatprep.subr.bf16.mxu0 %v2790
    %2879 = vmatpush1.bf16.msra.mxu0 %v2789
    %2880 = vmatprep.subr.bf16.mxu0 0
    %2881 = vmatpush1.bf16.msra.mxu0 0
    %2882 = vmatprep.subr.bf16.mxu0 0
    %2883 = vmatpush1.bf16.msra.mxu0 0
    %2884 = vmatprep.subr.bf16.mxu0 0
    %2885 = vmatpush1.bf16.msra.mxu0 0
    %2886 = vmatprep.subr.bf16.mxu0 0
    %2887 = vmatpush1.bf16.msra.mxu0 0
    %2888 = vmatprep.subr.bf16.mxu0 0
    %2889 = vmatpush1.bf16.msra.mxu0 0
    %2890 = vmatprep.subr.bf16.mxu0 0
    %2891 = vmatpush1.bf16.msra.mxu0 0
    %2892 = vmatprep.subr.bf16.mxu0 0
    %2893 = vmatpush1.bf16.msra.mxu0 0
    %2894 = vmatprep.subr.bf16.mxu0 0
    %2895 = vmatpush1.bf16.msra.mxu0 0
    %2896 = vmatprep.mubr.bf16.mxu0 0
    %2897 = vmatmul.mubr.bf16.gmra.mrb[0].mxu0 %v2630
    %v2898 = vpop.f32.mrb[0].mxu0
    %v2899 = vadd.f32 0.0, %v2898
    %v2900 = vpop.f32.mrb[0].mxu0
    %v2901 = vadd.f32 0.0, %v2900
    %v2902 = vpop.f32.mrb[0].mxu0
    %v2903 = vpop.f32.mrb[0].mxu0
    %2904 = vdwg.mxu0
    %v2909 = vunpack.c.l.b16 %v2625
    %v2910 = vunpack.c.h.b16 %v2625
    %v2911 = vunpack.c.l.b16 %v2626
    %v2912 = vunpack.c.h.b16 %v2626
    %v2913 = vunpack.c.l.b16 %v2627
    %v2914 = vunpack.c.h.b16 %v2627
    %v2915 = vunpack.c.l.b16 %v2628
    %v2916 = vunpack.c.h.b16 %v2628
    %v2917 = vpack.c.b16 %v2913, %v2909
    %v2918 = vpack.c.b16 %v2914, %v2910
    %v2919 = vpack.c.b16 %v2915, %v2911
    %v2920 = vpack.c.b16 %v2916, %v2912
    %v2926 = vsel %vm347, %v2624, 0
    %2928 = vmatprep.subr.bf16.mxu0 %v2918
    %2929 = vmatpush1.bf16.msra.mxu0 %v2917
    %2930 = vmatprep.subr.bf16.mxu0 0
    %2931 = vmatpush1.bf16.msra.mxu0 0
    %2932 = vmatprep.subr.bf16.mxu0 0
    %2933 = vmatpush1.bf16.msra.mxu0 0
    %2934 = vmatprep.subr.bf16.mxu0 0
    %2935 = vmatpush1.bf16.msra.mxu0 0
    %2936 = vmatprep.subr.bf16.mxu0 0
    %2937 = vmatpush1.bf16.msra.mxu0 0
    %2938 = vmatprep.subr.bf16.mxu0 0
    %2939 = vmatpush1.bf16.msra.mxu0 0
    %2940 = vmatprep.subr.bf16.mxu0 0
    %2941 = vmatpush1.bf16.msra.mxu0 0
    %2942 = vmatprep.subr.bf16.mxu0 0
    %2943 = vmatpush1.bf16.msra.mxu0 0
    %2944 = vmatprep.subr.bf16.mxu0 0
    %2945 = vmatpush1.bf16.msra.mxu0 0
    %2946 = vmatprep.subr.bf16.mxu0 0
    %2947 = vmatpush1.bf16.msra.mxu0 0
    %2948 = vmatprep.subr.bf16.mxu0 0
    %2949 = vmatpush1.bf16.msra.mxu0 0
    %2950 = vmatprep.subr.bf16.mxu0 0
    %2951 = vmatpush1.bf16.msra.mxu0 0
    %2952 = vmatprep.subr.bf16.mxu0 0
    %2953 = vmatpush1.bf16.msra.mxu0 0
    %2954 = vmatprep.subr.bf16.mxu0 0
    %2955 = vmatpush1.bf16.msra.mxu0 0
    %2956 = vmatprep.subr.bf16.mxu0 0
    %2957 = vmatpush1.bf16.msra.mxu0 0
    %2958 = vmatprep.subr.bf16.mxu0 0
    %2959 = vmatpush1.bf16.msra.mxu0 0
    %2960 = vmatprep.mubr.bf16.mxu0 0
    %2961 = vmatmul.mubr.bf16.gmra.mrb[0].mxu0 %v2926
    %v2962 = vpop.f32.mrb[0].mxu0
    %v2963 = vadd.f32 %v2858, %v2962
    %v2964 = vpop.f32.mrb[0].mxu0
    %v2965 = vadd.f32 %v2860, %v2964
    %v2966 = vpop.f32.mrb[0].mxu0
    %v2967 = vpop.f32.mrb[0].mxu0
    %2968 = vdwg.mxu0
    %2969 = vmatprep.subr.bf16.mxu0 %v2920
    %2970 = vmatpush1.bf16.msra.mxu0 %v2919
    %2971 = vmatprep.subr.bf16.mxu0 0
    %2972 = vmatpush1.bf16.msra.mxu0 0
    %2973 = vmatprep.subr.bf16.mxu0 0
    %2974 = vmatpush1.bf16.msra.mxu0 0
    %2975 = vmatprep.subr.bf16.mxu0 0
    %2976 = vmatpush1.bf16.msra.mxu0 0
    %2977 = vmatprep.subr.bf16.mxu0 0
    %2978 = vmatpush1.bf16.msra.mxu0 0
    %2979 = vmatprep.subr.bf16.mxu0 0
    %2980 = vmatpush1.bf16.msra.mxu0 0
    %2981 = vmatprep.subr.bf16.mxu0 0
    %2982 = vmatpush1.bf16.msra.mxu0 0
    %2983 = vmatprep.subr.bf16.mxu0 0
    %2984 = vmatpush1.bf16.msra.mxu0 0
    %2985 = vmatprep.subr.bf16.mxu0 0
    %2986 = vmatpush1.bf16.msra.mxu0 0
    %2987 = vmatprep.subr.bf16.mxu0 0
    %2988 = vmatpush1.bf16.msra.mxu0 0
    %2989 = vmatprep.subr.bf16.mxu0 0
    %2990 = vmatpush1.bf16.msra.mxu0 0
    %2991 = vmatprep.subr.bf16.mxu0 0
    %2992 = vmatpush1.bf16.msra.mxu0 0
    %2993 = vmatprep.subr.bf16.mxu0 0
    %2994 = vmatpush1.bf16.msra.mxu0 0
    %2995 = vmatprep.subr.bf16.mxu0 0
    %2996 = vmatpush1.bf16.msra.mxu0 0
    %2997 = vmatprep.subr.bf16.mxu0 0
    %2998 = vmatpush1.bf16.msra.mxu0 0
    %2999 = vmatprep.subr.bf16.mxu0 0
    %3000 = vmatpush1.bf16.msra.mxu0 0
    %3001 = vmatprep.mubr.bf16.mxu0 0
    %3002 = vmatmul.mubr.bf16.gmra.mrb[0].mxu0 %v2926
    %v3003 = vpop.f32.mrb[0].mxu0
    %v3004 = vadd.f32 %v2899, %v3003
    %v3005 = vpop.f32.mrb[0].mxu0
    %v3006 = vadd.f32 %v2901, %v3005
    %v3007 = vpop.f32.mrb[0].mxu0
    %v3008 = vpop.f32.mrb[0].mxu0
    %3009 = vdwg.mxu0
    %v3010 = vadd.f32 %v2963, %v437
    %v3011 = vadd.f32 %v2965, %v441
    %v3012 = vadd.f32 %v3004, %v445
    %v3013 = vadd.f32 %v3006, %v449
    %v3014 = vxor.u32 %v3010, 2147483648
    %v3015 = vmul.f32 %v3014, 1.442695
    %v3016 = vpow.pop %v3015
    %v3017 = vadd.f32 %v3016, 1.0
    %v3018 = vrcp.pop %v3017
    %v3019 = vmul.f32 1.0, %v3018
    %v3020 = vxor.u32 %v3011, 2147483648
    %v3021 = vmul.f32 %v3020, 1.442695
    %v3022 = vpow.pop %v3021
    %v3023 = vadd.f32 %v3022, 1.0
    %v3024 = vrcp.pop %v3023
    %v3025 = vmul.f32 1.0, %v3024
    %v3026 = vtanh.pop %v3012
    %v3027 = vxor.u32 %v3013, 2147483648
    %v3028 = vmul.f32 %v3027, 1.442695
    %v3029 = vpow.pop %v3028
    %v3030 = vadd.f32 %v3029, 1.0
    %v3031 = vrcp.pop %v3030
    %v3032 = vmul.f32 1.0, %v3031
    %v3033 = vld [vmem:[#allocation3] sm:$0xff]
    %v3034 = vmul.f32 %v3025, %v3033
    %v3035 = vmul.f32 %v3019, %v3026
    %v3036 = vadd.f32 %v3034, %v3035
    %v3037 = vtanh.pop %v3036
    %v3038 = vmul.f32 %v3032, %v3037
    %3039 = vst [vmem:[#allocation3] sm:$0xff] %v3036
    %3040 = vst [vmem:[#allocation2] sm:$0xff] %v3038
    %3041 = vset.pattern.permute.xlu0 6
    %3042 = vperm.xlu0 %3041, %v485
    %v3043 = vpop.permute.xlu0 %3042
    %vm3044 = vcmp.eq.s32.totalorder %v3043, 1
    %v3045 = vsel %vm3044, %v3038, 0.0
    %s3046 = scalar_lea.vmem %s6, 48
    %3047 = vst [vmem:[%s3046] sm:$0xff] %v3045
    %s3048 = scalar_lea.vmem %s1, 56
    %v3049 = vld [vmem:[%s3048] sm:$0xff]
    %v3050 = vpack.c.bf16 %v3049, %v3049
    %v3051 = vld [vmem:[%s2] sm:$0xff]
    %v3052 = vld [vmem:[%s2 + $0x8] sm:$0xff]
    %v3053 = vld [vmem:[%s2 + $0x10] sm:$0xff]
    %v3054 = vld [vmem:[%s2 + $0x18] sm:$0xff]
    %v3055 = vld [vmem:[#allocation2] sm:$0xff]
    %v3056 = vpack.c.bf16 %v3055, %v3055
    %v3057 = vld [vmem:[%s3] sm:$0xff]
    %v3058 = vld [vmem:[%s3 + $0x8] sm:$0xff]
    %v3059 = vld [vmem:[%s3 + $0x10] sm:$0xff]
    %v3060 = vld [vmem:[%s3 + $0x18] sm:$0xff]
    %v3061 = vld [vmem:[%s3 + $0x20] sm:$0xff]
    %v3062 = vld [vmem:[%s3 + $0x28] sm:$0xff]
    %v3063 = vld [vmem:[%s3 + $0x30] sm:$0xff]
    %v3064 = vld [vmem:[%s3 + $0x38] sm:$0xff]
    %v3065 = vld [vmem:[%s3 + $0x40] sm:$0xff]
    %v3066 = vld [vmem:[%s3 + $0x48] sm:$0xff]
    %v3067 = vld [vmem:[%s3 + $0x50] sm:$0xff]
    %v3068 = vld [vmem:[%s3 + $0x58] sm:$0xff]
    %v3069 = vld [vmem:[%s3 + $0x60] sm:$0xff]
    %v3070 = vld [vmem:[%s3 + $0x68] sm:$0xff]
    %v3071 = vld [vmem:[%s3 + $0x70] sm:$0xff]
    %v3072 = vld [vmem:[%s3 + $0x78] sm:$0xff]
    %v3073 = vld [vmem:[%s3 + $0x80] sm:$0xff]
    %v3074 = vld [vmem:[%s3 + $0x88] sm:$0xff]
    %v3075 = vld [vmem:[%s3 + $0x90] sm:$0xff]
    %v3076 = vld [vmem:[%s3 + $0x98] sm:$0xff]
    %v3077 = vld [vmem:[%s3 + $0xa0] sm:$0xff]
    %v3078 = vld [vmem:[%s3 + $0xa8] sm:$0xff]
    %v3079 = vld [vmem:[%s3 + $0xb0] sm:$0xff]
    %v3080 = vld [vmem:[%s3 + $0xb8] sm:$0xff]
    %v3081 = vld [vmem:[%s3 + $0xc0] sm:$0xff]
    %v3082 = vld [vmem:[%s3 + $0xc8] sm:$0xff]
    %v3083 = vld [vmem:[%s3 + $0xd0] sm:$0xff]
    %v3084 = vld [vmem:[%s3 + $0xd8] sm:$0xff]
    %v3085 = vld [vmem:[%s3 + $0xe0] sm:$0xff]
    %v3086 = vld [vmem:[%s3 + $0xe8] sm:$0xff]
    %v3087 = vld [vmem:[%s3 + $0xf0] sm:$0xff]
    %v3088 = vld [vmem:[%s3 + $0xf8] sm:$0xff]
    %v3121 = vunpack.c.l.b16 %v3057
    %v3122 = vunpack.c.h.b16 %v3057
    %v3123 = vunpack.c.l.b16 %v3058
    %v3124 = vunpack.c.h.b16 %v3058
    %v3125 = vunpack.c.l.b16 %v3059
    %v3126 = vunpack.c.h.b16 %v3059
    %v3127 = vunpack.c.l.b16 %v3060
    %v3128 = vunpack.c.h.b16 %v3060
    %v3129 = vunpack.c.l.b16 %v3061
    %v3130 = vunpack.c.h.b16 %v3061
    %v3131 = vunpack.c.l.b16 %v3062
    %v3132 = vunpack.c.h.b16 %v3062
    %v3133 = vunpack.c.l.b16 %v3063
    %v3134 = vunpack.c.h.b16 %v3063
    %v3135 = vunpack.c.l.b16 %v3064
    %v3136 = vunpack.c.h.b16 %v3064
    %v3137 = vunpack.c.l.b16 %v3065
    %v3138 = vunpack.c.h.b16 %v3065
    %v3139 = vunpack.c.l.b16 %v3066
    %v3140 = vunpack.c.h.b16 %v3066
    %v3141 = vunpack.c.l.b16 %v3067
    %v3142 = vunpack.c.h.b16 %v3067
    %v3143 = vunpack.c.l.b16 %v3068
    %v3144 = vunpack.c.h.b16 %v3068
    %v3145 = vunpack.c.l.b16 %v3069
    %v3146 = vunpack.c.h.b16 %v3069
    %v3147 = vunpack.c.l.b16 %v3070
    %v3148 = vunpack.c.h.b16 %v3070
    %v3149 = vunpack.c.l.b16 %v3071
    %v3150 = vunpack.c.h.b16 %v3071
    %v3151 = vunpack.c.l.b16 %v3072
    %v3152 = vunpack.c.h.b16 %v3072
    %v3153 = vunpack.c.l.b16 %v3073
    %v3154 = vunpack.c.h.b16 %v3073
    %v3155 = vunpack.c.l.b16 %v3074
    %v3156 = vunpack.c.h.b16 %v3074
    %v3157 = vunpack.c.l.b16 %v3075
    %v3158 = vunpack.c.h.b16 %v3075
    %v3159 = vunpack.c.l.b16 %v3076
    %v3160 = vunpack.c.h.b16 %v3076
    %v3161 = vunpack.c.l.b16 %v3077
    %v3162 = vunpack.c.h.b16 %v3077
    %v3163 = vunpack.c.l.b16 %v3078
    %v3164 = vunpack.c.h.b16 %v3078
    %v3165 = vunpack.c.l.b16 %v3079
    %v3166 = vunpack.c.h.b16 %v3079
    %v3167 = vunpack.c.l.b16 %v3080
    %v3168 = vunpack.c.h.b16 %v3080
    %v3169 = vunpack.c.l.b16 %v3081
    %v3170 = vunpack.c.h.b16 %v3081
    %v3171 = vunpack.c.l.b16 %v3082
    %v3172 = vunpack.c.h.b16 %v3082
    %v3173 = vunpack.c.l.b16 %v3083
    %v3174 = vunpack.c.h.b16 %v3083
    %v3175 = vunpack.c.l.b16 %v3084
    %v3176 = vunpack.c.h.b16 %v3084
    %v3177 = vunpack.c.l.b16 %v3085
    %v3178 = vunpack.c.h.b16 %v3085
    %v3179 = vunpack.c.l.b16 %v3086
    %v3180 = vunpack.c.h.b16 %v3086
    %v3181 = vunpack.c.l.b16 %v3087
    %v3182 = vunpack.c.h.b16 %v3087
    %v3183 = vunpack.c.l.b16 %v3088
    %v3184 = vunpack.c.h.b16 %v3088
    %v3185 = vpack.c.b16 %v3125, %v3121
    %v3186 = vpack.c.b16 %v3126, %v3122
    %v3187 = vpack.c.b16 %v3127, %v3123
    %v3188 = vpack.c.b16 %v3128, %v3124
    %v3189 = vpack.c.b16 %v3133, %v3129
    %v3190 = vpack.c.b16 %v3134, %v3130
    %v3191 = vpack.c.b16 %v3135, %v3131
    %v3192 = vpack.c.b16 %v3136, %v3132
    %v3193 = vpack.c.b16 %v3141, %v3137
    %v3194 = vpack.c.b16 %v3142, %v3138
    %v3195 = vpack.c.b16 %v3143, %v3139
    %v3196 = vpack.c.b16 %v3144, %v3140
    %v3197 = vpack.c.b16 %v3149, %v3145
    %v3198 = vpack.c.b16 %v3150, %v3146
    %v3199 = vpack.c.b16 %v3151, %v3147
    %v3200 = vpack.c.b16 %v3152, %v3148
    %v3201 = vpack.c.b16 %v3157, %v3153
    %v3202 = vpack.c.b16 %v3158, %v3154
    %v3203 = vpack.c.b16 %v3159, %v3155
    %v3204 = vpack.c.b16 %v3160, %v3156
    %v3205 = vpack.c.b16 %v3165, %v3161
    %v3206 = vpack.c.b16 %v3166, %v3162
    %v3207 = vpack.c.b16 %v3167, %v3163
    %v3208 = vpack.c.b16 %v3168, %v3164
    %v3209 = vpack.c.b16 %v3173, %v3169
    %v3210 = vpack.c.b16 %v3174, %v3170
    %v3211 = vpack.c.b16 %v3175, %v3171
    %v3212 = vpack.c.b16 %v3176, %v3172
    %v3213 = vpack.c.b16 %v3181, %v3177
    %v3214 = vpack.c.b16 %v3182, %v3178
    %v3215 = vpack.c.b16 %v3183, %v3179
    %v3216 = vpack.c.b16 %v3184, %v3180
    %3249 = vmatprep.subr.bf16.mxu0 %v3186
    %3250 = vmatpush1.bf16.msra.mxu0 %v3185
    %3251 = vmatprep.subr.bf16.mxu0 %v3190
    %3252 = vmatpush1.bf16.msra.mxu0 %v3189
    %3253 = vmatprep.subr.bf16.mxu0 %v3194
    %3254 = vmatpush1.bf16.msra.mxu0 %v3193
    %3255 = vmatprep.subr.bf16.mxu0 %v3198
    %3256 = vmatpush1.bf16.msra.mxu0 %v3197
    %3257 = vmatprep.subr.bf16.mxu0 %v3202
    %3258 = vmatpush1.bf16.msra.mxu0 %v3201
    %3259 = vmatprep.subr.bf16.mxu0 %v3206
    %3260 = vmatpush1.bf16.msra.mxu0 %v3205
    %3261 = vmatprep.subr.bf16.mxu0 %v3210
    %3262 = vmatpush1.bf16.msra.mxu0 %v3209
    %3263 = vmatprep.subr.bf16.mxu0 %v3214
    %3264 = vmatpush1.bf16.msra.mxu0 %v3213
    %3265 = vmatprep.subr.bf16.mxu0 0
    %3266 = vmatpush1.bf16.msra.mxu0 0
    %3267 = vmatprep.subr.bf16.mxu0 0
    %3268 = vmatpush1.bf16.msra.mxu0 0
    %3269 = vmatprep.subr.bf16.mxu0 0
    %3270 = vmatpush1.bf16.msra.mxu0 0
    %3271 = vmatprep.subr.bf16.mxu0 0
    %3272 = vmatpush1.bf16.msra.mxu0 0
    %3273 = vmatprep.subr.bf16.mxu0 0
    %3274 = vmatpush1.bf16.msra.mxu0 0
    %3275 = vmatprep.subr.bf16.mxu0 0
    %3276 = vmatpush1.bf16.msra.mxu0 0
    %3277 = vmatprep.subr.bf16.mxu0 0
    %3278 = vmatpush1.bf16.msra.mxu0 0
    %3279 = vmatprep.subr.bf16.mxu0 0
    %3280 = vmatpush1.bf16.msra.mxu0 0
    %3281 = vmatprep.mubr.bf16.mxu0 0
    %3282 = vmatmul.mubr.bf16.gmra.mrb[0].mxu0 %v3056
    %v3283 = vpop.f32.mrb[0].mxu0
    %v3284 = vadd.f32 0.0, %v3283
    %v3285 = vpop.f32.mrb[0].mxu0
    %v3286 = vadd.f32 0.0, %v3285
    %v3287 = vpop.f32.mrb[0].mxu0
    %v3288 = vpop.f32.mrb[0].mxu0
    %3289 = vdwg.mxu0
    %3290 = vmatprep.subr.bf16.mxu0 %v3188
    %3291 = vmatpush1.bf16.msra.mxu0 %v3187
    %3292 = vmatprep.subr.bf16.mxu0 %v3192
    %3293 = vmatpush1.bf16.msra.mxu0 %v3191
    %3294 = vmatprep.subr.bf16.mxu0 %v3196
    %3295 = vmatpush1.bf16.msra.mxu0 %v3195
    %3296 = vmatprep.subr.bf16.mxu0 %v3200
    %3297 = vmatpush1.bf16.msra.mxu0 %v3199
    %3298 = vmatprep.subr.bf16.mxu0 %v3204
    %3299 = vmatpush1.bf16.msra.mxu0 %v3203
    %3300 = vmatprep.subr.bf16.mxu0 %v3208
    %3301 = vmatpush1.bf16.msra.mxu0 %v3207
    %3302 = vmatprep.subr.bf16.mxu0 %v3212
    %3303 = vmatpush1.bf16.msra.mxu0 %v3211
    %3304 = vmatprep.subr.bf16.mxu0 %v3216
    %3305 = vmatpush1.bf16.msra.mxu0 %v3215
    %3306 = vmatprep.subr.bf16.mxu0 0
    %3307 = vmatpush1.bf16.msra.mxu0 0
    %3308 = vmatprep.subr.bf16.mxu0 0
    %3309 = vmatpush1.bf16.msra.mxu0 0
    %3310 = vmatprep.subr.bf16.mxu0 0
    %3311 = vmatpush1.bf16.msra.mxu0 0
    %3312 = vmatprep.subr.bf16.mxu0 0
    %3313 = vmatpush1.bf16.msra.mxu0 0
    %3314 = vmatprep.subr.bf16.mxu0 0
    %3315 = vmatpush1.bf16.msra.mxu0 0
    %3316 = vmatprep.subr.bf16.mxu0 0
    %3317 = vmatpush1.bf16.msra.mxu0 0
    %3318 = vmatprep.subr.bf16.mxu0 0
    %3319 = vmatpush1.bf16.msra.mxu0 0
    %3320 = vmatprep.subr.bf16.mxu0 0
    %3321 = vmatpush1.bf16.msra.mxu0 0
    %3322 = vmatprep.mubr.bf16.mxu0 0
    %3323 = vmatmul.mubr.bf16.gmra.mrb[0].mxu0 %v3056
    %v3324 = vpop.f32.mrb[0].mxu0
    %v3325 = vadd.f32 0.0, %v3324
    %v3326 = vpop.f32.mrb[0].mxu0
    %v3327 = vadd.f32 0.0, %v3326
    %v3328 = vpop.f32.mrb[0].mxu0
    %v3329 = vpop.f32.mrb[0].mxu0
    %3330 = vdwg.mxu0
    %v3335 = vunpack.c.l.b16 %v3051
    %v3336 = vunpack.c.h.b16 %v3051
    %v3337 = vunpack.c.l.b16 %v3052
    %v3338 = vunpack.c.h.b16 %v3052
    %v3339 = vunpack.c.l.b16 %v3053
    %v3340 = vunpack.c.h.b16 %v3053
    %v3341 = vunpack.c.l.b16 %v3054
    %v3342 = vunpack.c.h.b16 %v3054
    %v3343 = vpack.c.b16 %v3339, %v3335
    %v3344 = vpack.c.b16 %v3340, %v3336
    %v3345 = vpack.c.b16 %v3341, %v3337
    %v3346 = vpack.c.b16 %v3342, %v3338
    %v3352 = vsel %vm347, %v3050, 0
    %3354 = vmatprep.subr.bf16.mxu0 %v3344
    %3355 = vmatpush1.bf16.msra.mxu0 %v3343
    %3356 = vmatprep.subr.bf16.mxu0 0
    %3357 = vmatpush1.bf16.msra.mxu0 0
    %3358 = vmatprep.subr.bf16.mxu0 0
    %3359 = vmatpush1.bf16.msra.mxu0 0
    %3360 = vmatprep.subr.bf16.mxu0 0
    %3361 = vmatpush1.bf16.msra.mxu0 0
    %3362 = vmatprep.subr.bf16.mxu0 0
    %3363 = vmatpush1.bf16.msra.mxu0 0
    %3364 = vmatprep.subr.bf16.mxu0 0
    %3365 = vmatpush1.bf16.msra.mxu0 0
    %3366 = vmatprep.subr.bf16.mxu0 0
    %3367 = vmatpush1.bf16.msra.mxu0 0
    %3368 = vmatprep.subr.bf16.mxu0 0
    %3369 = vmatpush1.bf16.msra.mxu0 0
    %3370 = vmatprep.subr.bf16.mxu0 0
    %3371 = vmatpush1.bf16.msra.mxu0 0
    %3372 = vmatprep.subr.bf16.mxu0 0
    %3373 = vmatpush1.bf16.msra.mxu0 0
    %3374 = vmatprep.subr.bf16.mxu0 0
    %3375 = vmatpush1.bf16.msra.mxu0 0
    %3376 = vmatprep.subr.bf16.mxu0 0
    %3377 = vmatpush1.bf16.msra.mxu0 0
    %3378 = vmatprep.subr.bf16.mxu0 0
    %3379 = vmatpush1.bf16.msra.mxu0 0
    %3380 = vmatprep.subr.bf16.mxu0 0
    %3381 = vmatpush1.bf16.msra.mxu0 0
    %3382 = vmatprep.subr.bf16.mxu0 0
    %3383 = vmatpush1.bf16.msra.mxu0 0
    %3384 = vmatprep.subr.bf16.mxu0 0
    %3385 = vmatpush1.bf16.msra.mxu0 0
    %3386 = vmatprep.mubr.bf16.mxu0 0
    %3387 = vmatmul.mubr.bf16.gmra.mrb[0].mxu0 %v3352
    %v3388 = vpop.f32.mrb[0].mxu0
    %v3389 = vadd.f32 %v3284, %v3388
    %v3390 = vpop.f32.mrb[0].mxu0
    %v3391 = vadd.f32 %v3286, %v3390
    %v3392 = vpop.f32.mrb[0].mxu0
    %v3393 = vpop.f32.mrb[0].mxu0
    %3394 = vdwg.mxu0
    %3395 = vmatprep.subr.bf16.mxu0 %v3346
    %3396 = vmatpush1.bf16.msra.mxu0 %v3345
    %3397 = vmatprep.subr.bf16.mxu0 0
    %3398 = vmatpush1.bf16.msra.mxu0 0
    %3399 = vmatprep.subr.bf16.mxu0 0
    %3400 = vmatpush1.bf16.msra.mxu0 0
    %3401 = vmatprep.subr.bf16.mxu0 0
    %3402 = vmatpush1.bf16.msra.mxu0 0
    %3403 = vmatprep.subr.bf16.mxu0 0
    %3404 = vmatpush1.bf16.msra.mxu0 0
    %3405 = vmatprep.subr.bf16.mxu0 0
    %3406 = vmatpush1.bf16.msra.mxu0 0
    %3407 = vmatprep.subr.bf16.mxu0 0
    %3408 = vmatpush1.bf16.msra.mxu0 0
    %3409 = vmatprep.subr.bf16.mxu0 0
    %3410 = vmatpush1.bf16.msra.mxu0 0
    %3411 = vmatprep.subr.bf16.mxu0 0
    %3412 = vmatpush1.bf16.msra.mxu0 0
    %3413 = vmatprep.subr.bf16.mxu0 0
    %3414 = vmatpush1.bf16.msra.mxu0 0
    %3415 = vmatprep.subr.bf16.mxu0 0
    %3416 = vmatpush1.bf16.msra.mxu0 0
    %3417 = vmatprep.subr.bf16.mxu0 0
    %3418 = vmatpush1.bf16.msra.mxu0 0
    %3419 = vmatprep.subr.bf16.mxu0 0
    %3420 = vmatpush1.bf16.msra.mxu0 0
    %3421 = vmatprep.subr.bf16.mxu0 0
    %3422 = vmatpush1.bf16.msra.mxu0 0
    %3423 = vmatprep.subr.bf16.mxu0 0
    %3424 = vmatpush1.bf16.msra.mxu0 0
    %3425 = vmatprep.subr.bf16.mxu0 0
    %3426 = vmatpush1.bf16.msra.mxu0 0
    %3427 = vmatprep.mubr.bf16.mxu0 0
    %3428 = vmatmul.mubr.bf16.gmra.mrb[0].mxu0 %v3352
    %v3429 = vpop.f32.mrb[0].mxu0
    %v3430 = vadd.f32 %v3325, %v3429
    %v3431 = vpop.f32.mrb[0].mxu0
    %v3432 = vadd.f32 %v3327, %v3431
    %v3433 = vpop.f32.mrb[0].mxu0
    %v3434 = vpop.f32.mrb[0].mxu0
    %3435 = vdwg.mxu0
    %v3436 = vadd.f32 %v3389, %v437
    %v3437 = vadd.f32 %v3391, %v441
    %v3438 = vadd.f32 %v3430, %v445
    %v3439 = vadd.f32 %v3432, %v449
    %v3440 = vxor.u32 %v3436, 2147483648
    %v3441 = vmul.f32 %v3440, 1.442695
    %v3442 = vpow.pop %v3441
    %v3443 = vadd.f32 %v3442, 1.0
    %v3444 = vrcp.pop %v3443
    %v3445 = vmul.f32 1.0, %v3444
    %v3446 = vxor.u32 %v3437, 2147483648
    %v3447 = vmul.f32 %v3446, 1.442695
    %v3448 = vpow.pop %v3447
    %v3449 = vadd.f32 %v3448, 1.0
    %v3450 = vrcp.pop %v3449
    %v3451 = vmul.f32 1.0, %v3450
    %v3452 = vtanh.pop %v3438
    %v3453 = vxor.u32 %v3439, 2147483648
    %v3454 = vmul.f32 %v3453, 1.442695
    %v3455 = vpow.pop %v3454
    %v3456 = vadd.f32 %v3455, 1.0
    %v3457 = vrcp.pop %v3456
    %v3458 = vmul.f32 1.0, %v3457
    %v3459 = vld [vmem:[#allocation3] sm:$0xff]
    %v3460 = vmul.f32 %v3451, %v3459
    %v3461 = vmul.f32 %v3445, %v3452
    %v3462 = vadd.f32 %v3460, %v3461
    %v3463 = vtanh.pop %v3462
    %v3464 = vmul.f32 %v3458, %v3463
    %3465 = vst [vmem:[#allocation3] sm:$0xff] %v3462
    %3466 = vst [vmem:[#allocation2] sm:$0xff] %v3464
    %3467 = vset.pattern.permute.xlu0 7
    %3468 = vperm.xlu0 %3467, %v485
    %v3469 = vpop.permute.xlu0 %3468
    %vm3470 = vcmp.eq.s32.totalorder %v3469, 1
    %v3471 = vsel %vm3470, %v3464, 0.0
    %s3472 = scalar_lea.vmem %s6, 56
    %3473 = vst [vmem:[%s3472] sm:$0xff] %v3471
  $region25: #{packed_lstm_forward.1} parent=0 // pred_fallthru
    _
  %p3474 = scmp.ge.s32.totalorder %s23, %s24
  // Predicated region
  $region30: #{packed_lstm_forward.1} parent=0 // pred_check
    %p3475 = pneg %p3474
  $region31: #{packed_lstm_forward.1} parent=0 // pred_check_branch
    %3477 = sbr.rel (%p3475) target = $region33
  $region32: #{packed_lstm_forward.1} parent=0 // pred_region
    %3478 = vst [vmem:[%s6] sm:$0xff] 0.0
    %3479 = vst [vmem:[%s6 + $0x8] sm:$0xff] 0.0
    %3480 = vst [vmem:[%s6 + $0x10] sm:$0xff] 0.0
    %3481 = vst [vmem:[%s6 + $0x18] sm:$0xff] 0.0
    %3482 = vst [vmem:[%s6 + $0x20] sm:$0xff] 0.0
    %3483 = vst [vmem:[%s6 + $0x28] sm:$0xff] 0.0
    %3484 = vst [vmem:[%s6 + $0x30] sm:$0xff] 0.0
    %3485 = vst [vmem:[%s6 + $0x38] sm:$0xff] 0.0
  $region33: #{packed_lstm_forward.1} parent=0 // pred_fallthru
    _
  // Predicated region
  $region34: #{packed_lstm_forward.1} parent=0 // pred_check
    _
  $region35: #{packed_lstm_forward.1} parent=0 // pred_check_branch
    %3487 = sbr.rel (0) target = $region37
  $region36: #{packed_lstm_forward.1} parent=0 // pred_region
    _
  $region37: #{packed_lstm_forward.1} parent=0 // pred_fallthru
    _
  // Predicated region
  $region38: #{packed_lstm_forward.1} parent=0 // pred_check
    _
  $region39: #{packed_lstm_forward.1} parent=0 // pred_check_branch
    %3489 = sbr.rel (0) target = $region41
  $region40: #{packed_lstm_forward.1} parent=0 // pred_region
    _
  $region41: #{packed_lstm_forward.1} parent=0 // pred_fallthru
    _

</llo_original>
